<compile_context>
chip_gen: v6e
topology: v6e:2x2x1
jax: 0.10.0
libtpu: 0.0.40
codegen_flags: <defaults>
</compile_context>

<pallas_src>
import jax
import jax.numpy as jnp
from jax.experimental import pallas as pl
from jax.experimental.pallas import tpu as pltpu


# --------------------------------------------------------------------------
# Fused HAN kernel factory (all shapes static / closed over)
# --------------------------------------------------------------------------
def _make_han_kernel(B, S, T, H, num_word_layers):
    Nw = S * B          # number of sentences seen by the word level
    H3 = 3 * H

    def gru_cell(gi, gh, h):
        # PyTorch GRU gate order (r, z, n); b_hn lives inside gh so it is scaled by r.
        r = jax.nn.sigmoid(gi[:, 0:H] + gh[:, 0:H])
        z = jax.nn.sigmoid(gi[:, H:2 * H] + gh[:, H:2 * H])
        n = jnp.tanh(gi[:, 2 * H:H3] + r * gh[:, 2 * H:H3])
        return (1.0 - z) * n + z * h

    def bigru(x2, Tn, N, wih_t, whh_f_t, whh_b_t, bih, bhh_f, bhh_b):
        """Fused fwd+bwd GRU over time-major [Tn*N, F] input.

        Input projection for both directions hoisted into ONE matmul; recurrence is a
        fully unrolled static loop so adjacent steps can overlap on MXU/VPU/EUP.
        """
        gi = jnp.dot(x2, wih_t, preferred_element_type=jnp.float32) + bih  # [Tn*N, 6H]
        bhh_f_b = jnp.broadcast_to(bhh_f, (N, H3))    # hoisted bias broadcasts
        bhh_b_b = jnp.broadcast_to(bhh_b, (N, H3))
        hf = jnp.zeros((N, H), jnp.float32)
        hb = jnp.zeros((N, H), jnp.float32)
        ho_f = [None] * Tn
        ho_b = [None] * Tn
        for step in range(Tn):                        # static -> fully unrolled
            tf = step
            tb = Tn - 1 - step
            gh_f = jnp.dot(hf, whh_f_t, preferred_element_type=jnp.float32) + bhh_f_b
            gh_b = jnp.dot(hb, whh_b_t, preferred_element_type=jnp.float32) + bhh_b_b
            hf = gru_cell(gi[tf * N:(tf + 1) * N, 0:H3], gh_f, hf)
            hb = gru_cell(gi[tb * N:(tb + 1) * N, H3:2 * H3], gh_b, hb)
            ho_f[tf] = hf
            ho_b[tb] = hb
        return ho_f, ho_b

    def cat_time(ho_f, ho_b):
        # [Tn*N, 2H] time-major sequence output, feature = concat(fwd, bwd).
        return jnp.concatenate(
            [jnp.concatenate([hf, hb], axis=1) for hf, hb in zip(ho_f, ho_b)], axis=0)

    def attn_pool(ho_f, ho_b, ho2, Tn, N, mask, wd_t, bd, av):
        # a = tanh(H @ Wd + bd) as ONE matmul over all (t, n) rows.
        a = jnp.tanh(jnp.dot(ho2, wd_t, preferred_element_type=jnp.float32) + bd)
        # attention vector applied as a lane reduction (no [D,1]/[T,1] tensors);
        # scores kept lane-dense as [N, Tn] with time on the lane axis.
        cols = [jnp.sum(a[t * N:(t + 1) * N, :] * av, axis=1, keepdims=True)
                for t in range(Tn)]
        scores = jnp.concatenate(cols, axis=1)                       # [N, Tn]
        m = jnp.max(scores, axis=1, keepdims=True)
        e = jnp.exp(scores - m)
        w = e / jnp.sum(e, axis=1, keepdims=True)                    # softmax over time
        w = w * mask                                                 # zero padded slots
        w = w / (jnp.sum(w, axis=1, keepdims=True) + 0.0001)         # renormalize
        pf = w[:, 0:1] * ho_f[0]
        pb = w[:, 0:1] * ho_b[0]
        for t in range(1, Tn):                                       # vectorized over N, D
            pf = pf + w[:, t:t + 1] * ho_f[t]
            pb = pb + w[:, t:t + 1] * ho_b[t]
        return jnp.concatenate([pf, pb], axis=1)                     # [N, 2H]

    def kernel(*refs):
        out_ref = refs[-1]
        vals = [r[...] for r in refs[:-1]]
        it = iter(vals)
        xe = next(it)        # [T*Nw, E]  time-major word embeddings (rows t*Nw + n)
        wmask = next(it)     # [Nw, T]    word-level padding mask
        smask = next(it)     # [B, S]     sentence-level padding mask

        # ---- word level: (multi-layer) bidirectional GRU + attention pooling ----
        x2 = xe
        ho_f = ho_b = None
        for _ in range(num_word_layers):
            wih_t, whh_f, whh_b, bih, bhh_f, bhh_b = [next(it) for _ in range(6)]
            ho_f, ho_b = bigru(x2, T, Nw, wih_t, whh_f, whh_b, bih, bhh_f, bhh_b)
            x2 = cat_time(ho_f, ho_b)                                # [T*Nw, 2H]
        wd_t, bd, av = [next(it) for _ in range(3)]
        sent_vec = attn_pool(ho_f, ho_b, x2, T, Nw, wmask, wd_t, bd, av)   # [Nw, 2H]
        # rows of sent_vec are ordered (s, b) -> already time-major for the next GRU.

        # ---- sentence level: bidirectional GRU + attention pooling ----
        wih_t, whh_f, whh_b, bih, bhh_f, bhh_b = [next(it) for _ in range(6)]
        so_f, so_b = bigru(sent_vec, S, B, wih_t, whh_f, whh_b, bih, bhh_f, bhh_b)
        so2 = cat_time(so_f, so_b)                                   # [S*B, 2H]
        wd_t, bd, av = [next(it) for _ in range(3)]
        doc_vec = attn_pool(so_f, so_b, so2, S, B, smask, wd_t, bd, av)    # [B, 2H]

        # ---- classifier fused into the epilogue; class dim padded to 128 lanes ----
        fcw, fcb = [next(it) for _ in range(2)]
        out_ref[...] = jnp.dot(doc_vec, fcw, preferred_element_type=jnp.float32) + fcb

    return kernel


# --------------------------------------------------------------------------
# JAX wrapper: weight prep + glue (embedding gather, masks) + single pallas_call
# --------------------------------------------------------------------------
def _prep_gru_layer(p):
    wih_t = jnp.concatenate([p["wih_f"].T, p["wih_b"].T], axis=1)    # [in, 6H]
    bih = jnp.concatenate([p["bih_f"], p["bih_b"]]).reshape(1, -1)   # [1, 6H]
    return [wih_t, p["whh_f"].T, p["whh_b"].T, bih,
            p["bhh_f"].reshape(1, -1), p["bhh_b"].reshape(1, -1)]


def han_forward(tokens, params):
    B, S, T = tokens.shape
    Nw = S * B
    H = params["word_gru"][0]["whh_f"].shape[1]
    D = 2 * H
    E = params["embedding"].shape[1]
    C = params["fc_w"].shape[1]
    Cpad = ((C + 127) // 128) * 128

    # Order sentences as (s, b): the word-level pooled vectors then come out directly
    # in the time-major row order the sentence-level GRU consumes (no in-kernel
    # transpose, no float-activation transpose anywhere).
    tok_sb = jnp.transpose(tokens, (1, 0, 2)).reshape(Nw, T)         # [S*B, T]
    # Embedding gather stays in JAX glue; gathering transposed indices writes the
    # word-GRU input directly in time-major layout.
    xe = jnp.take(params["embedding"], jnp.transpose(tok_sb), axis=0).reshape(T * Nw, E)
    wmask = (tok_sb != 0).astype(jnp.float32)                        # [Nw, T]
    smask = (jnp.sum(tokens, axis=2) != 0).astype(jnp.float32)       # [B, S]

    args = [xe, wmask, smask]
    for p in params["word_gru"]:
        args += _prep_gru_layer(p)
    args += [params["word_dense_w"], params["word_dense_b"].reshape(1, -1),
             params["word_att_v"].reshape(1, -1)]
    args += _prep_gru_layer(params["sent_gru"][0])
    args += [params["sent_dense_w"], params["sent_dense_b"].reshape(1, -1),
             params["sent_att_v"].reshape(1, -1)]
    fc_w_pad = jnp.zeros((D, Cpad), jnp.float32).at[:, :C].set(params["fc_w"])
    fc_b_pad = jnp.zeros((1, Cpad), jnp.float32).at[0, :C].set(params["fc_b"])
    args += [fc_w_pad, fc_b_pad]

    kernel = _make_han_kernel(B, S, T, H, len(params["word_gru"]))
    vmem = pl.BlockSpec(memory_space=pltpu.MemorySpace.VMEM)
    out = pl.pallas_call(
        kernel,
        out_shape=jax.ShapeDtypeStruct((B, Cpad), jnp.float32),
        in_specs=[vmem] * len(args),
        out_specs=vmem,
    )(*args)
    return out[:, :C]


# --------------------------------------------------------------------------
# Deterministic synthetic parameter initialization
# --------------------------------------------------------------------------
def _uniform(key, shape, scale):
    return jax.random.uniform(key, shape, jnp.float32, -scale, scale)


def init_gru_layer(key, input_size, hidden):
    ks = jax.random.split(key, 8)
    s = 1.0 / float(hidden) ** 0.5
    return dict(
        wih_f=_uniform(ks[0], (3 * hidden, input_size), s),
        whh_f=_uniform(ks[1], (3 * hidden, hidden), s),
        bih_f=_uniform(ks[2], (3 * hidden,), s),
        bhh_f=_uniform(ks[3], (3 * hidden,), s),
        wih_b=_uniform(ks[4], (3 * hidden, input_size), s),
        whh_b=_uniform(ks[5], (3 * hidden, hidden), s),
        bih_b=_uniform(ks[6], (3 * hidden,), s),
        bhh_b=_uniform(ks[7], (3 * hidden,), s),
    )


def init_params(key, vocab_size, embedding_size, gru_size, word_layers, class_num):
    ks = jax.random.split(key, 12)
    D = 2 * gru_size
    s_lin = 1.0 / float(D) ** 0.5
    word_gru = []
    gk = jax.random.split(ks[0], word_layers)
    for li in range(word_layers):
        in_size = embedding_size if li == 0 else D
        word_gru.append(init_gru_layer(gk[li], in_size, gru_size))
    return dict(
        embedding=jax.random.normal(ks[1], (vocab_size, embedding_size), jnp.float32),
        word_gru=word_gru,
        word_att_v=jax.random.uniform(ks[2], (D, 1), jnp.float32),   # torch.rand-like
        word_dense_w=_uniform(ks[3], (D, D), s_lin),                 # stored [in, out]
        word_dense_b=_uniform(ks[4], (D,), s_lin),
        sent_gru=[init_gru_layer(ks[5], D, gru_size)],               # sentence GRU: 1 layer
        sent_att_v=jax.random.uniform(ks[6], (D, 1), jnp.float32),
        sent_dense_w=_uniform(ks[7], (D, D), s_lin),
        sent_dense_b=_uniform(ks[8], (D,), s_lin),
        fc_w=_uniform(ks[9], (D, class_num), s_lin),
        fc_b=_uniform(ks[10], (class_num,), s_lin),
    )


if __name__ == "__main__":
    vocab_size = 50
    embedding_size = 32
    gru_size = 16          # => 2*gru_size = 32
    word_layers = 1
    class_num = 4
    B, S, T = 2, 4, 8      # batch, sentences per doc, words per sentence

    key = jax.random.PRNGKey(0)
    k_tok, k_par = jax.random.split(key)

    tokens = jax.random.randint(k_tok, (B, S, T), 0, vocab_size, dtype=jnp.int32)
    # explicit padding (token id 0), as in real HAN inputs
    tokens = tokens.at[:, -1, T // 2:].set(0)
    tokens = tokens.at[0, 0, -2:].set(0)

    params = init_params(k_par, vocab_size, embedding_size, gru_size,
                         word_layers, class_num)

    fwd = jax.jit(han_forward)
    out = fwd(tokens, params)
    out = jax.block_until_ready(out)

    assert out.shape == (B, class_num)
    assert bool(jnp.all(jnp.isfinite(out)))
    print("KERNEL_OK")
</pallas_src>

<mosaic_0001>
module attributes {stable_mosaic.version = 11 : i64} {
  func.func @kernel(%arg0: memref<64x32xf32, #tpu.memory_space<vmem>>, %arg1: memref<8x8xf32, #tpu.memory_space<vmem>>, %arg2: memref<2x4xf32, #tpu.memory_space<vmem>>, %arg3: memref<32x96xf32, #tpu.memory_space<vmem>>, %arg4: memref<16x48xf32, #tpu.memory_space<vmem>>, %arg5: memref<16x48xf32, #tpu.memory_space<vmem>>, %arg6: memref<1x96xf32, #tpu.memory_space<vmem>>, %arg7: memref<1x48xf32, #tpu.memory_space<vmem>>, %arg8: memref<1x48xf32, #tpu.memory_space<vmem>>, %arg9: memref<32x32xf32, #tpu.memory_space<vmem>>, %arg10: memref<1x32xf32, #tpu.memory_space<vmem>>, %arg11: memref<1x32xf32, #tpu.memory_space<vmem>>, %arg12: memref<32x96xf32, #tpu.memory_space<vmem>>, %arg13: memref<16x48xf32, #tpu.memory_space<vmem>>, %arg14: memref<16x48xf32, #tpu.memory_space<vmem>>, %arg15: memref<1x96xf32, #tpu.memory_space<vmem>>, %arg16: memref<1x48xf32, #tpu.memory_space<vmem>>, %arg17: memref<1x48xf32, #tpu.memory_space<vmem>>, %arg18: memref<32x32xf32, #tpu.memory_space<vmem>>, %arg19: memref<1x32xf32, #tpu.memory_space<vmem>>, %arg20: memref<1x32xf32, #tpu.memory_space<vmem>>, %arg21: memref<32x128xf32, #tpu.memory_space<vmem>>, %arg22: memref<1x128xf32, #tpu.memory_space<vmem>>, %arg23: memref<2x128xf32, #tpu.memory_space<vmem>>) attributes {dimension_semantics = [], scalar_prefetch = 0 : i64, scratch_operands = 0 : i64, tpu.core_type = #tpu.core_type<tc>} {
    %c0 = arith.constant 0 : index
    %c0_0 = arith.constant 0 : index
    %0 = vector.load %arg0[%c0, %c0_0] : memref<64x32xf32, #tpu.memory_space<vmem>>, vector<64x32xf32>
    %c0_1 = arith.constant 0 : index
    %c0_2 = arith.constant 0 : index
    %1 = vector.load %arg1[%c0_1, %c0_2] : memref<8x8xf32, #tpu.memory_space<vmem>>, vector<8x8xf32>
    %c0_3 = arith.constant 0 : index
    %c0_4 = arith.constant 0 : index
    %2 = vector.load %arg2[%c0_3, %c0_4] : memref<2x4xf32, #tpu.memory_space<vmem>>, vector<2x4xf32>
    %c0_5 = arith.constant 0 : index
    %c0_6 = arith.constant 0 : index
    %3 = vector.load %arg3[%c0_5, %c0_6] : memref<32x96xf32, #tpu.memory_space<vmem>>, vector<32x96xf32>
    %c0_7 = arith.constant 0 : index
    %c0_8 = arith.constant 0 : index
    %4 = vector.load %arg4[%c0_7, %c0_8] : memref<16x48xf32, #tpu.memory_space<vmem>>, vector<16x48xf32>
    %c0_9 = arith.constant 0 : index
    %c0_10 = arith.constant 0 : index
    %5 = vector.load %arg5[%c0_9, %c0_10] : memref<16x48xf32, #tpu.memory_space<vmem>>, vector<16x48xf32>
    %c0_11 = arith.constant 0 : index
    %c0_12 = arith.constant 0 : index
    %6 = vector.load %arg6[%c0_11, %c0_12] : memref<1x96xf32, #tpu.memory_space<vmem>>, vector<1x96xf32>
    %c0_13 = arith.constant 0 : index
    %c0_14 = arith.constant 0 : index
    %7 = vector.load %arg7[%c0_13, %c0_14] : memref<1x48xf32, #tpu.memory_space<vmem>>, vector<1x48xf32>
    %c0_15 = arith.constant 0 : index
    %c0_16 = arith.constant 0 : index
    %8 = vector.load %arg8[%c0_15, %c0_16] : memref<1x48xf32, #tpu.memory_space<vmem>>, vector<1x48xf32>
    %c0_17 = arith.constant 0 : index
    %c0_18 = arith.constant 0 : index
    %9 = vector.load %arg9[%c0_17, %c0_18] : memref<32x32xf32, #tpu.memory_space<vmem>>, vector<32x32xf32>
    %c0_19 = arith.constant 0 : index
    %c0_20 = arith.constant 0 : index
    %10 = vector.load %arg10[%c0_19, %c0_20] : memref<1x32xf32, #tpu.memory_space<vmem>>, vector<1x32xf32>
    %c0_21 = arith.constant 0 : index
    %c0_22 = arith.constant 0 : index
    %11 = vector.load %arg11[%c0_21, %c0_22] : memref<1x32xf32, #tpu.memory_space<vmem>>, vector<1x32xf32>
    %c0_23 = arith.constant 0 : index
    %c0_24 = arith.constant 0 : index
    %12 = vector.load %arg12[%c0_23, %c0_24] : memref<32x96xf32, #tpu.memory_space<vmem>>, vector<32x96xf32>
    %c0_25 = arith.constant 0 : index
    %c0_26 = arith.constant 0 : index
    %13 = vector.load %arg13[%c0_25, %c0_26] : memref<16x48xf32, #tpu.memory_space<vmem>>, vector<16x48xf32>
    %c0_27 = arith.constant 0 : index
    %c0_28 = arith.constant 0 : index
    %14 = vector.load %arg14[%c0_27, %c0_28] : memref<16x48xf32, #tpu.memory_space<vmem>>, vector<16x48xf32>
    %c0_29 = arith.constant 0 : index
    %c0_30 = arith.constant 0 : index
    %15 = vector.load %arg15[%c0_29, %c0_30] : memref<1x96xf32, #tpu.memory_space<vmem>>, vector<1x96xf32>
    %c0_31 = arith.constant 0 : index
    %c0_32 = arith.constant 0 : index
    %16 = vector.load %arg16[%c0_31, %c0_32] : memref<1x48xf32, #tpu.memory_space<vmem>>, vector<1x48xf32>
    %c0_33 = arith.constant 0 : index
    %c0_34 = arith.constant 0 : index
    %17 = vector.load %arg17[%c0_33, %c0_34] : memref<1x48xf32, #tpu.memory_space<vmem>>, vector<1x48xf32>
    %c0_35 = arith.constant 0 : index
    %c0_36 = arith.constant 0 : index
    %18 = vector.load %arg18[%c0_35, %c0_36] : memref<32x32xf32, #tpu.memory_space<vmem>>, vector<32x32xf32>
    %c0_37 = arith.constant 0 : index
    %c0_38 = arith.constant 0 : index
    %19 = vector.load %arg19[%c0_37, %c0_38] : memref<1x32xf32, #tpu.memory_space<vmem>>, vector<1x32xf32>
    %c0_39 = arith.constant 0 : index
    %c0_40 = arith.constant 0 : index
    %20 = vector.load %arg20[%c0_39, %c0_40] : memref<1x32xf32, #tpu.memory_space<vmem>>, vector<1x32xf32>
    %c0_41 = arith.constant 0 : index
    %c0_42 = arith.constant 0 : index
    %21 = vector.load %arg21[%c0_41, %c0_42] : memref<32x128xf32, #tpu.memory_space<vmem>>, vector<32x128xf32>
    %c0_43 = arith.constant 0 : index
    %c0_44 = arith.constant 0 : index
    %22 = vector.load %arg22[%c0_43, %c0_44] : memref<1x128xf32, #tpu.memory_space<vmem>>, vector<1x128xf32>
    %cst = arith.constant dense<0.000000e+00> : vector<64x96xf32>
    %23 = tpu.matmul %0, %3, %cst {dimension_numbers = #tpu.dot_dimension_numbers<[1], [0], [0], [1], [0, 0, 1, 1], [], []>} : vector<64x32xf32>, vector<32x96xf32>, vector<64x96xf32> -> vector<64x96xf32>
    %24 = vector.broadcast %6 : vector<1x96xf32> to vector<64x96xf32>
    %25 = arith.addf %23, %24 : vector<64x96xf32>
    %26 = vector.shape_cast %7 : vector<1x48xf32> to vector<1x48xf32>
    %27 = vector.broadcast %26 : vector<1x48xf32> to vector<8x48xf32>
    %28 = vector.shape_cast %8 : vector<1x48xf32> to vector<1x48xf32>
    %29 = vector.broadcast %28 : vector<1x48xf32> to vector<8x48xf32>
    %cst_45 = arith.constant 0.000000e+00 : f32
    %30 = vector.broadcast %cst_45 : f32 to vector<8x16xf32>
    %cst_46 = arith.constant 0.000000e+00 : f32
    %31 = vector.broadcast %cst_46 : f32 to vector<8x16xf32>
    %cst_47 = arith.constant dense<0.000000e+00> : vector<8x48xf32>
    %32 = tpu.matmul %30, %4, %cst_47 {dimension_numbers = #tpu.dot_dimension_numbers<[1], [0], [0], [1], [0, 0, 1, 1], [], []>} : vector<8x16xf32>, vector<16x48xf32>, vector<8x48xf32> -> vector<8x48xf32>
    %33 = arith.addf %32, %27 : vector<8x48xf32>
    %cst_48 = arith.constant dense<0.000000e+00> : vector<8x48xf32>
    %34 = tpu.matmul %31, %5, %cst_48 {dimension_numbers = #tpu.dot_dimension_numbers<[1], [0], [0], [1], [0, 0, 1, 1], [], []>} : vector<8x16xf32>, vector<16x48xf32>, vector<8x48xf32> -> vector<8x48xf32>
    %35 = arith.addf %34, %29 : vector<8x48xf32>
    %36 = vector.extract_strided_slice %25 {offsets = [0, 0], sizes = [8, 48], strides = [1, 1]} : vector<64x96xf32> to vector<8x48xf32>
    %37 = vector.extract_strided_slice %36 {offsets = [0, 0], sizes = [8, 16], strides = [1, 1]} : vector<8x48xf32> to vector<8x16xf32>
    %38 = vector.extract_strided_slice %33 {offsets = [0, 0], sizes = [8, 16], strides = [1, 1]} : vector<8x48xf32> to vector<8x16xf32>
    %39 = arith.addf %37, %38 : vector<8x16xf32>
    %40 = arith.negf %39 : vector<8x16xf32>
    %41 = math.exp %40 : vector<8x16xf32>
    %cst_49 = arith.constant 1.000000e+00 : f32
    %42 = vector.broadcast %cst_49 : f32 to vector<8x16xf32>
    %43 = arith.addf %42, %41 : vector<8x16xf32>
    %44 = arith.divf %42, %43 : vector<8x16xf32>
    %45 = vector.extract_strided_slice %36 {offsets = [0, 16], sizes = [8, 16], strides = [1, 1]} : vector<8x48xf32> to vector<8x16xf32>
    %46 = vector.extract_strided_slice %33 {offsets = [0, 16], sizes = [8, 16], strides = [1, 1]} : vector<8x48xf32> to vector<8x16xf32>
    %47 = arith.addf %45, %46 : vector<8x16xf32>
    %48 = arith.negf %47 : vector<8x16xf32>
    %49 = math.exp %48 : vector<8x16xf32>
    %cst_50 = arith.constant 1.000000e+00 : f32
    %50 = vector.broadcast %cst_50 : f32 to vector<8x16xf32>
    %51 = arith.addf %50, %49 : vector<8x16xf32>
    %52 = arith.divf %50, %51 : vector<8x16xf32>
    %53 = vector.extract_strided_slice %36 {offsets = [0, 32], sizes = [8, 16], strides = [1, 1]} : vector<8x48xf32> to vector<8x16xf32>
    %54 = vector.extract_strided_slice %33 {offsets = [0, 32], sizes = [8, 16], strides = [1, 1]} : vector<8x48xf32> to vector<8x16xf32>
    %55 = arith.mulf %44, %54 : vector<8x16xf32>
    %56 = arith.addf %53, %55 : vector<8x16xf32>
    %57 = math.tanh %56 : vector<8x16xf32>
    %cst_51 = arith.constant 1.000000e+00 : f32
    %58 = vector.broadcast %cst_51 : f32 to vector<8x16xf32>
    %59 = arith.subf %58, %52 : vector<8x16xf32>
    %60 = arith.mulf %59, %57 : vector<8x16xf32>
    %61 = arith.mulf %52, %30 : vector<8x16xf32>
    %62 = arith.addf %60, %61 : vector<8x16xf32>
    %63 = vector.extract_strided_slice %25 {offsets = [56, 48], sizes = [8, 48], strides = [1, 1]} : vector<64x96xf32> to vector<8x48xf32>
    %64 = vector.extract_strided_slice %63 {offsets = [0, 0], sizes = [8, 16], strides = [1, 1]} : vector<8x48xf32> to vector<8x16xf32>
    %65 = vector.extract_strided_slice %35 {offsets = [0, 0], sizes = [8, 16], strides = [1, 1]} : vector<8x48xf32> to vector<8x16xf32>
    %66 = arith.addf %64, %65 : vector<8x16xf32>
    %67 = arith.negf %66 : vector<8x16xf32>
    %68 = math.exp %67 : vector<8x16xf32>
    %cst_52 = arith.constant 1.000000e+00 : f32
    %69 = vector.broadcast %cst_52 : f32 to vector<8x16xf32>
    %70 = arith.addf %69, %68 : vector<8x16xf32>
    %71 = arith.divf %69, %70 : vector<8x16xf32>
    %72 = vector.extract_strided_slice %63 {offsets = [0, 16], sizes = [8, 16], strides = [1, 1]} : vector<8x48xf32> to vector<8x16xf32>
    %73 = vector.extract_strided_slice %35 {offsets = [0, 16], sizes = [8, 16], strides = [1, 1]} : vector<8x48xf32> to vector<8x16xf32>
    %74 = arith.addf %72, %73 : vector<8x16xf32>
    %75 = arith.negf %74 : vector<8x16xf32>
    %76 = math.exp %75 : vector<8x16xf32>
    %cst_53 = arith.constant 1.000000e+00 : f32
    %77 = vector.broadcast %cst_53 : f32 to vector<8x16xf32>
    %78 = arith.addf %77, %76 : vector<8x16xf32>
    %79 = arith.divf %77, %78 : vector<8x16xf32>
    %80 = vector.extract_strided_slice %63 {offsets = [0, 32], sizes = [8, 16], strides = [1, 1]} : vector<8x48xf32> to vector<8x16xf32>
    %81 = vector.extract_strided_slice %35 {offsets = [0, 32], sizes = [8, 16], strides = [1, 1]} : vector<8x48xf32> to vector<8x16xf32>
    %82 = arith.mulf %71, %81 : vector<8x16xf32>
    %83 = arith.addf %80, %82 : vector<8x16xf32>
    %84 = math.tanh %83 : vector<8x16xf32>
    %cst_54 = arith.constant 1.000000e+00 : f32
    %85 = vector.broadcast %cst_54 : f32 to vector<8x16xf32>
    %86 = arith.subf %85, %79 : vector<8x16xf32>
    %87 = arith.mulf %86, %84 : vector<8x16xf32>
    %88 = arith.mulf %79, %31 : vector<8x16xf32>
    %89 = arith.addf %87, %88 : vector<8x16xf32>
    %cst_55 = arith.constant dense<0.000000e+00> : vector<8x48xf32>
    %90 = tpu.matmul %62, %4, %cst_55 {dimension_numbers = #tpu.dot_dimension_numbers<[1], [0], [0], [1], [0, 0, 1, 1], [], []>} : vector<8x16xf32>, vector<16x48xf32>, vector<8x48xf32> -> vector<8x48xf32>
    %91 = arith.addf %90, %27 : vector<8x48xf32>
    %cst_56 = arith.constant dense<0.000000e+00> : vector<8x48xf32>
    %92 = tpu.matmul %89, %5, %cst_56 {dimension_numbers = #tpu.dot_dimension_numbers<[1], [0], [0], [1], [0, 0, 1, 1], [], []>} : vector<8x16xf32>, vector<16x48xf32>, vector<8x48xf32> -> vector<8x48xf32>
    %93 = arith.addf %92, %29 : vector<8x48xf32>
    %94 = vector.extract_strided_slice %25 {offsets = [8, 0], sizes = [8, 48], strides = [1, 1]} : vector<64x96xf32> to vector<8x48xf32>
    %95 = vector.extract_strided_slice %94 {offsets = [0, 0], sizes = [8, 16], strides = [1, 1]} : vector<8x48xf32> to vector<8x16xf32>
    %96 = vector.extract_strided_slice %91 {offsets = [0, 0], sizes = [8, 16], strides = [1, 1]} : vector<8x48xf32> to vector<8x16xf32>
    %97 = arith.addf %95, %96 : vector<8x16xf32>
    %98 = arith.negf %97 : vector<8x16xf32>
    %99 = math.exp %98 : vector<8x16xf32>
    %cst_57 = arith.constant 1.000000e+00 : f32
    %100 = vector.broadcast %cst_57 : f32 to vector<8x16xf32>
    %101 = arith.addf %100, %99 : vector<8x16xf32>
    %102 = arith.divf %100, %101 : vector<8x16xf32>
    %103 = vector.extract_strided_slice %94 {offsets = [0, 16], sizes = [8, 16], strides = [1, 1]} : vector<8x48xf32> to vector<8x16xf32>
    %104 = vector.extract_strided_slice %91 {offsets = [0, 16], sizes = [8, 16], strides = [1, 1]} : vector<8x48xf32> to vector<8x16xf32>
    %105 = arith.addf %103, %104 : vector<8x16xf32>
    %106 = arith.negf %105 : vector<8x16xf32>
    %107 = math.exp %106 : vector<8x16xf32>
    %cst_58 = arith.constant 1.000000e+00 : f32
    %108 = vector.broadcast %cst_58 : f32 to vector<8x16xf32>
    %109 = arith.addf %108, %107 : vector<8x16xf32>
    %110 = arith.divf %108, %109 : vector<8x16xf32>
    %111 = vector.extract_strided_slice %94 {offsets = [0, 32], sizes = [8, 16], strides = [1, 1]} : vector<8x48xf32> to vector<8x16xf32>
    %112 = vector.extract_strided_slice %91 {offsets = [0, 32], sizes = [8, 16], strides = [1, 1]} : vector<8x48xf32> to vector<8x16xf32>
    %113 = arith.mulf %102, %112 : vector<8x16xf32>
    %114 = arith.addf %111, %113 : vector<8x16xf32>
    %115 = math.tanh %114 : vector<8x16xf32>
    %cst_59 = arith.constant 1.000000e+00 : f32
    %116 = vector.broadcast %cst_59 : f32 to vector<8x16xf32>
    %117 = arith.subf %116, %110 : vector<8x16xf32>
    %118 = arith.mulf %117, %115 : vector<8x16xf32>
    %119 = arith.mulf %110, %62 : vector<8x16xf32>
    %120 = arith.addf %118, %119 : vector<8x16xf32>
    %121 = vector.extract_strided_slice %25 {offsets = [48, 48], sizes = [8, 48], strides = [1, 1]} : vector<64x96xf32> to vector<8x48xf32>
    %122 = vector.extract_strided_slice %121 {offsets = [0, 0], sizes = [8, 16], strides = [1, 1]} : vector<8x48xf32> to vector<8x16xf32>
    %123 = vector.extract_strided_slice %93 {offsets = [0, 0], sizes = [8, 16], strides = [1, 1]} : vector<8x48xf32> to vector<8x16xf32>
    %124 = arith.addf %122, %123 : vector<8x16xf32>
    %125 = arith.negf %124 : vector<8x16xf32>
    %126 = math.exp %125 : vector<8x16xf32>
    %cst_60 = arith.constant 1.000000e+00 : f32
    %127 = vector.broadcast %cst_60 : f32 to vector<8x16xf32>
    %128 = arith.addf %127, %126 : vector<8x16xf32>
    %129 = arith.divf %127, %128 : vector<8x16xf32>
    %130 = vector.extract_strided_slice %121 {offsets = [0, 16], sizes = [8, 16], strides = [1, 1]} : vector<8x48xf32> to vector<8x16xf32>
    %131 = vector.extract_strided_slice %93 {offsets = [0, 16], sizes = [8, 16], strides = [1, 1]} : vector<8x48xf32> to vector<8x16xf32>
    %132 = arith.addf %130, %131 : vector<8x16xf32>
    %133 = arith.negf %132 : vector<8x16xf32>
    %134 = math.exp %133 : vector<8x16xf32>
    %cst_61 = arith.constant 1.000000e+00 : f32
    %135 = vector.broadcast %cst_61 : f32 to vector<8x16xf32>
    %136 = arith.addf %135, %134 : vector<8x16xf32>
    %137 = arith.divf %135, %136 : vector<8x16xf32>
    %138 = vector.extract_strided_slice %121 {offsets = [0, 32], sizes = [8, 16], strides = [1, 1]} : vector<8x48xf32> to vector<8x16xf32>
    %139 = vector.extract_strided_slice %93 {offsets = [0, 32], sizes = [8, 16], strides = [1, 1]} : vector<8x48xf32> to vector<8x16xf32>
    %140 = arith.mulf %129, %139 : vector<8x16xf32>
    %141 = arith.addf %138, %140 : vector<8x16xf32>
    %142 = math.tanh %141 : vector<8x16xf32>
    %cst_62 = arith.constant 1.000000e+00 : f32
    %143 = vector.broadcast %cst_62 : f32 to vector<8x16xf32>
    %144 = arith.subf %143, %137 : vector<8x16xf32>
    %145 = arith.mulf %144, %142 : vector<8x16xf32>
    %146 = arith.mulf %137, %89 : vector<8x16xf32>
    %147 = arith.addf %145, %146 : vector<8x16xf32>
    %cst_63 = arith.constant dense<0.000000e+00> : vector<8x48xf32>
    %148 = tpu.matmul %120, %4, %cst_63 {dimension_numbers = #tpu.dot_dimension_numbers<[1], [0], [0], [1], [0, 0, 1, 1], [], []>} : vector<8x16xf32>, vector<16x48xf32>, vector<8x48xf32> -> vector<8x48xf32>
    %149 = arith.addf %148, %27 : vector<8x48xf32>
    %cst_64 = arith.constant dense<0.000000e+00> : vector<8x48xf32>
    %150 = tpu.matmul %147, %5, %cst_64 {dimension_numbers = #tpu.dot_dimension_numbers<[1], [0], [0], [1], [0, 0, 1, 1], [], []>} : vector<8x16xf32>, vector<16x48xf32>, vector<8x48xf32> -> vector<8x48xf32>
    %151 = arith.addf %150, %29 : vector<8x48xf32>
    %152 = vector.extract_strided_slice %25 {offsets = [16, 0], sizes = [8, 48], strides = [1, 1]} : vector<64x96xf32> to vector<8x48xf32>
    %153 = vector.extract_strided_slice %152 {offsets = [0, 0], sizes = [8, 16], strides = [1, 1]} : vector<8x48xf32> to vector<8x16xf32>
    %154 = vector.extract_strided_slice %149 {offsets = [0, 0], sizes = [8, 16], strides = [1, 1]} : vector<8x48xf32> to vector<8x16xf32>
    %155 = arith.addf %153, %154 : vector<8x16xf32>
    %156 = arith.negf %155 : vector<8x16xf32>
    %157 = math.exp %156 : vector<8x16xf32>
    %cst_65 = arith.constant 1.000000e+00 : f32
    %158 = vector.broadcast %cst_65 : f32 to vector<8x16xf32>
    %159 = arith.addf %158, %157 : vector<8x16xf32>
    %160 = arith.divf %158, %159 : vector<8x16xf32>
    %161 = vector.extract_strided_slice %152 {offsets = [0, 16], sizes = [8, 16], strides = [1, 1]} : vector<8x48xf32> to vector<8x16xf32>
    %162 = vector.extract_strided_slice %149 {offsets = [0, 16], sizes = [8, 16], strides = [1, 1]} : vector<8x48xf32> to vector<8x16xf32>
    %163 = arith.addf %161, %162 : vector<8x16xf32>
    %164 = arith.negf %163 : vector<8x16xf32>
    %165 = math.exp %164 : vector<8x16xf32>
    %cst_66 = arith.constant 1.000000e+00 : f32
    %166 = vector.broadcast %cst_66 : f32 to vector<8x16xf32>
    %167 = arith.addf %166, %165 : vector<8x16xf32>
    %168 = arith.divf %166, %167 : vector<8x16xf32>
    %169 = vector.extract_strided_slice %152 {offsets = [0, 32], sizes = [8, 16], strides = [1, 1]} : vector<8x48xf32> to vector<8x16xf32>
    %170 = vector.extract_strided_slice %149 {offsets = [0, 32], sizes = [8, 16], strides = [1, 1]} : vector<8x48xf32> to vector<8x16xf32>
    %171 = arith.mulf %160, %170 : vector<8x16xf32>
    %172 = arith.addf %169, %171 : vector<8x16xf32>
    %173 = math.tanh %172 : vector<8x16xf32>
    %cst_67 = arith.constant 1.000000e+00 : f32
    %174 = vector.broadcast %cst_67 : f32 to vector<8x16xf32>
    %175 = arith.subf %174, %168 : vector<8x16xf32>
    %176 = arith.mulf %175, %173 : vector<8x16xf32>
    %177 = arith.mulf %168, %120 : vector<8x16xf32>
    %178 = arith.addf %176, %177 : vector<8x16xf32>
    %179 = vector.extract_strided_slice %25 {offsets = [40, 48], sizes = [8, 48], strides = [1, 1]} : vector<64x96xf32> to vector<8x48xf32>
    %180 = vector.extract_strided_slice %179 {offsets = [0, 0], sizes = [8, 16], strides = [1, 1]} : vector<8x48xf32> to vector<8x16xf32>
    %181 = vector.extract_strided_slice %151 {offsets = [0, 0], sizes = [8, 16], strides = [1, 1]} : vector<8x48xf32> to vector<8x16xf32>
    %182 = arith.addf %180, %181 : vector<8x16xf32>
    %183 = arith.negf %182 : vector<8x16xf32>
    %184 = math.exp %183 : vector<8x16xf32>
    %cst_68 = arith.constant 1.000000e+00 : f32
    %185 = vector.broadcast %cst_68 : f32 to vector<8x16xf32>
    %186 = arith.addf %185, %184 : vector<8x16xf32>
    %187 = arith.divf %185, %186 : vector<8x16xf32>
    %188 = vector.extract_strided_slice %179 {offsets = [0, 16], sizes = [8, 16], strides = [1, 1]} : vector<8x48xf32> to vector<8x16xf32>
    %189 = vector.extract_strided_slice %151 {offsets = [0, 16], sizes = [8, 16], strides = [1, 1]} : vector<8x48xf32> to vector<8x16xf32>
    %190 = arith.addf %188, %189 : vector<8x16xf32>
    %191 = arith.negf %190 : vector<8x16xf32>
    %192 = math.exp %191 : vector<8x16xf32>
    %cst_69 = arith.constant 1.000000e+00 : f32
    %193 = vector.broadcast %cst_69 : f32 to vector<8x16xf32>
    %194 = arith.addf %193, %192 : vector<8x16xf32>
    %195 = arith.divf %193, %194 : vector<8x16xf32>
    %196 = vector.extract_strided_slice %179 {offsets = [0, 32], sizes = [8, 16], strides = [1, 1]} : vector<8x48xf32> to vector<8x16xf32>
    %197 = vector.extract_strided_slice %151 {offsets = [0, 32], sizes = [8, 16], strides = [1, 1]} : vector<8x48xf32> to vector<8x16xf32>
    %198 = arith.mulf %187, %197 : vector<8x16xf32>
    %199 = arith.addf %196, %198 : vector<8x16xf32>
    %200 = math.tanh %199 : vector<8x16xf32>
    %cst_70 = arith.constant 1.000000e+00 : f32
    %201 = vector.broadcast %cst_70 : f32 to vector<8x16xf32>
    %202 = arith.subf %201, %195 : vector<8x16xf32>
    %203 = arith.mulf %202, %200 : vector<8x16xf32>
    %204 = arith.mulf %195, %147 : vector<8x16xf32>
    %205 = arith.addf %203, %204 : vector<8x16xf32>
    %cst_71 = arith.constant dense<0.000000e+00> : vector<8x48xf32>
    %206 = tpu.matmul %178, %4, %cst_71 {dimension_numbers = #tpu.dot_dimension_numbers<[1], [0], [0], [1], [0, 0, 1, 1], [], []>} : vector<8x16xf32>, vector<16x48xf32>, vector<8x48xf32> -> vector<8x48xf32>
    %207 = arith.addf %206, %27 : vector<8x48xf32>
    %cst_72 = arith.constant dense<0.000000e+00> : vector<8x48xf32>
    %208 = tpu.matmul %205, %5, %cst_72 {dimension_numbers = #tpu.dot_dimension_numbers<[1], [0], [0], [1], [0, 0, 1, 1], [], []>} : vector<8x16xf32>, vector<16x48xf32>, vector<8x48xf32> -> vector<8x48xf32>
    %209 = arith.addf %208, %29 : vector<8x48xf32>
    %210 = vector.extract_strided_slice %25 {offsets = [24, 0], sizes = [8, 48], strides = [1, 1]} : vector<64x96xf32> to vector<8x48xf32>
    %211 = vector.extract_strided_slice %210 {offsets = [0, 0], sizes = [8, 16], strides = [1, 1]} : vector<8x48xf32> to vector<8x16xf32>
    %212 = vector.extract_strided_slice %207 {offsets = [0, 0], sizes = [8, 16], strides = [1, 1]} : vector<8x48xf32> to vector<8x16xf32>
    %213 = arith.addf %211, %212 : vector<8x16xf32>
    %214 = arith.negf %213 : vector<8x16xf32>
    %215 = math.exp %214 : vector<8x16xf32>
    %cst_73 = arith.constant 1.000000e+00 : f32
    %216 = vector.broadcast %cst_73 : f32 to vector<8x16xf32>
    %217 = arith.addf %216, %215 : vector<8x16xf32>
    %218 = arith.divf %216, %217 : vector<8x16xf32>
    %219 = vector.extract_strided_slice %210 {offsets = [0, 16], sizes = [8, 16], strides = [1, 1]} : vector<8x48xf32> to vector<8x16xf32>
    %220 = vector.extract_strided_slice %207 {offsets = [0, 16], sizes = [8, 16], strides = [1, 1]} : vector<8x48xf32> to vector<8x16xf32>
    %221 = arith.addf %219, %220 : vector<8x16xf32>
    %222 = arith.negf %221 : vector<8x16xf32>
    %223 = math.exp %222 : vector<8x16xf32>
    %cst_74 = arith.constant 1.000000e+00 : f32
    %224 = vector.broadcast %cst_74 : f32 to vector<8x16xf32>
    %225 = arith.addf %224, %223 : vector<8x16xf32>
    %226 = arith.divf %224, %225 : vector<8x16xf32>
    %227 = vector.extract_strided_slice %210 {offsets = [0, 32], sizes = [8, 16], strides = [1, 1]} : vector<8x48xf32> to vector<8x16xf32>
    %228 = vector.extract_strided_slice %207 {offsets = [0, 32], sizes = [8, 16], strides = [1, 1]} : vector<8x48xf32> to vector<8x16xf32>
    %229 = arith.mulf %218, %228 : vector<8x16xf32>
    %230 = arith.addf %227, %229 : vector<8x16xf32>
    %231 = math.tanh %230 : vector<8x16xf32>
    %cst_75 = arith.constant 1.000000e+00 : f32
    %232 = vector.broadcast %cst_75 : f32 to vector<8x16xf32>
    %233 = arith.subf %232, %226 : vector<8x16xf32>
    %234 = arith.mulf %233, %231 : vector<8x16xf32>
    %235 = arith.mulf %226, %178 : vector<8x16xf32>
    %236 = arith.addf %234, %235 : vector<8x16xf32>
    %237 = vector.extract_strided_slice %25 {offsets = [32, 48], sizes = [8, 48], strides = [1, 1]} : vector<64x96xf32> to vector<8x48xf32>
    %238 = vector.extract_strided_slice %237 {offsets = [0, 0], sizes = [8, 16], strides = [1, 1]} : vector<8x48xf32> to vector<8x16xf32>
    %239 = vector.extract_strided_slice %209 {offsets = [0, 0], sizes = [8, 16], strides = [1, 1]} : vector<8x48xf32> to vector<8x16xf32>
    %240 = arith.addf %238, %239 : vector<8x16xf32>
    %241 = arith.negf %240 : vector<8x16xf32>
    %242 = math.exp %241 : vector<8x16xf32>
    %cst_76 = arith.constant 1.000000e+00 : f32
    %243 = vector.broadcast %cst_76 : f32 to vector<8x16xf32>
    %244 = arith.addf %243, %242 : vector<8x16xf32>
    %245 = arith.divf %243, %244 : vector<8x16xf32>
    %246 = vector.extract_strided_slice %237 {offsets = [0, 16], sizes = [8, 16], strides = [1, 1]} : vector<8x48xf32> to vector<8x16xf32>
    %247 = vector.extract_strided_slice %209 {offsets = [0, 16], sizes = [8, 16], strides = [1, 1]} : vector<8x48xf32> to vector<8x16xf32>
    %248 = arith.addf %246, %247 : vector<8x16xf32>
    %249 = arith.negf %248 : vector<8x16xf32>
    %250 = math.exp %249 : vector<8x16xf32>
    %cst_77 = arith.constant 1.000000e+00 : f32
    %251 = vector.broadcast %cst_77 : f32 to vector<8x16xf32>
    %252 = arith.addf %251, %250 : vector<8x16xf32>
    %253 = arith.divf %251, %252 : vector<8x16xf32>
    %254 = vector.extract_strided_slice %237 {offsets = [0, 32], sizes = [8, 16], strides = [1, 1]} : vector<8x48xf32> to vector<8x16xf32>
    %255 = vector.extract_strided_slice %209 {offsets = [0, 32], sizes = [8, 16], strides = [1, 1]} : vector<8x48xf32> to vector<8x16xf32>
    %256 = arith.mulf %245, %255 : vector<8x16xf32>
    %257 = arith.addf %254, %256 : vector<8x16xf32>
    %258 = math.tanh %257 : vector<8x16xf32>
    %cst_78 = arith.constant 1.000000e+00 : f32
    %259 = vector.broadcast %cst_78 : f32 to vector<8x16xf32>
    %260 = arith.subf %259, %253 : vector<8x16xf32>
    %261 = arith.mulf %260, %258 : vector<8x16xf32>
    %262 = arith.mulf %253, %205 : vector<8x16xf32>
    %263 = arith.addf %261, %262 : vector<8x16xf32>
    %cst_79 = arith.constant dense<0.000000e+00> : vector<8x48xf32>
    %264 = tpu.matmul %236, %4, %cst_79 {dimension_numbers = #tpu.dot_dimension_numbers<[1], [0], [0], [1], [0, 0, 1, 1], [], []>} : vector<8x16xf32>, vector<16x48xf32>, vector<8x48xf32> -> vector<8x48xf32>
    %265 = arith.addf %264, %27 : vector<8x48xf32>
    %cst_80 = arith.constant dense<0.000000e+00> : vector<8x48xf32>
    %266 = tpu.matmul %263, %5, %cst_80 {dimension_numbers = #tpu.dot_dimension_numbers<[1], [0], [0], [1], [0, 0, 1, 1], [], []>} : vector<8x16xf32>, vector<16x48xf32>, vector<8x48xf32> -> vector<8x48xf32>
    %267 = arith.addf %266, %29 : vector<8x48xf32>
    %268 = vector.extract_strided_slice %25 {offsets = [32, 0], sizes = [8, 48], strides = [1, 1]} : vector<64x96xf32> to vector<8x48xf32>
    %269 = vector.extract_strided_slice %268 {offsets = [0, 0], sizes = [8, 16], strides = [1, 1]} : vector<8x48xf32> to vector<8x16xf32>
    %270 = vector.extract_strided_slice %265 {offsets = [0, 0], sizes = [8, 16], strides = [1, 1]} : vector<8x48xf32> to vector<8x16xf32>
    %271 = arith.addf %269, %270 : vector<8x16xf32>
    %272 = arith.negf %271 : vector<8x16xf32>
    %273 = math.exp %272 : vector<8x16xf32>
    %cst_81 = arith.constant 1.000000e+00 : f32
    %274 = vector.broadcast %cst_81 : f32 to vector<8x16xf32>
    %275 = arith.addf %274, %273 : vector<8x16xf32>
    %276 = arith.divf %274, %275 : vector<8x16xf32>
    %277 = vector.extract_strided_slice %268 {offsets = [0, 16], sizes = [8, 16], strides = [1, 1]} : vector<8x48xf32> to vector<8x16xf32>
    %278 = vector.extract_strided_slice %265 {offsets = [0, 16], sizes = [8, 16], strides = [1, 1]} : vector<8x48xf32> to vector<8x16xf32>
    %279 = arith.addf %277, %278 : vector<8x16xf32>
    %280 = arith.negf %279 : vector<8x16xf32>
    %281 = math.exp %280 : vector<8x16xf32>
    %cst_82 = arith.constant 1.000000e+00 : f32
    %282 = vector.broadcast %cst_82 : f32 to vector<8x16xf32>
    %283 = arith.addf %282, %281 : vector<8x16xf32>
    %284 = arith.divf %282, %283 : vector<8x16xf32>
    %285 = vector.extract_strided_slice %268 {offsets = [0, 32], sizes = [8, 16], strides = [1, 1]} : vector<8x48xf32> to vector<8x16xf32>
    %286 = vector.extract_strided_slice %265 {offsets = [0, 32], sizes = [8, 16], strides = [1, 1]} : vector<8x48xf32> to vector<8x16xf32>
    %287 = arith.mulf %276, %286 : vector<8x16xf32>
    %288 = arith.addf %285, %287 : vector<8x16xf32>
    %289 = math.tanh %288 : vector<8x16xf32>
    %cst_83 = arith.constant 1.000000e+00 : f32
    %290 = vector.broadcast %cst_83 : f32 to vector<8x16xf32>
    %291 = arith.subf %290, %284 : vector<8x16xf32>
    %292 = arith.mulf %291, %289 : vector<8x16xf32>
    %293 = arith.mulf %284, %236 : vector<8x16xf32>
    %294 = arith.addf %292, %293 : vector<8x16xf32>
    %295 = vector.extract_strided_slice %25 {offsets = [24, 48], sizes = [8, 48], strides = [1, 1]} : vector<64x96xf32> to vector<8x48xf32>
    %296 = vector.extract_strided_slice %295 {offsets = [0, 0], sizes = [8, 16], strides = [1, 1]} : vector<8x48xf32> to vector<8x16xf32>
    %297 = vector.extract_strided_slice %267 {offsets = [0, 0], sizes = [8, 16], strides = [1, 1]} : vector<8x48xf32> to vector<8x16xf32>
    %298 = arith.addf %296, %297 : vector<8x16xf32>
    %299 = arith.negf %298 : vector<8x16xf32>
    %300 = math.exp %299 : vector<8x16xf32>
    %cst_84 = arith.constant 1.000000e+00 : f32
    %301 = vector.broadcast %cst_84 : f32 to vector<8x16xf32>
    %302 = arith.addf %301, %300 : vector<8x16xf32>
    %303 = arith.divf %301, %302 : vector<8x16xf32>
    %304 = vector.extract_strided_slice %295 {offsets = [0, 16], sizes = [8, 16], strides = [1, 1]} : vector<8x48xf32> to vector<8x16xf32>
    %305 = vector.extract_strided_slice %267 {offsets = [0, 16], sizes = [8, 16], strides = [1, 1]} : vector<8x48xf32> to vector<8x16xf32>
    %306 = arith.addf %304, %305 : vector<8x16xf32>
    %307 = arith.negf %306 : vector<8x16xf32>
    %308 = math.exp %307 : vector<8x16xf32>
    %cst_85 = arith.constant 1.000000e+00 : f32
    %309 = vector.broadcast %cst_85 : f32 to vector<8x16xf32>
    %310 = arith.addf %309, %308 : vector<8x16xf32>
    %311 = arith.divf %309, %310 : vector<8x16xf32>
    %312 = vector.extract_strided_slice %295 {offsets = [0, 32], sizes = [8, 16], strides = [1, 1]} : vector<8x48xf32> to vector<8x16xf32>
    %313 = vector.extract_strided_slice %267 {offsets = [0, 32], sizes = [8, 16], strides = [1, 1]} : vector<8x48xf32> to vector<8x16xf32>
    %314 = arith.mulf %303, %313 : vector<8x16xf32>
    %315 = arith.addf %312, %314 : vector<8x16xf32>
    %316 = math.tanh %315 : vector<8x16xf32>
    %cst_86 = arith.constant 1.000000e+00 : f32
    %317 = vector.broadcast %cst_86 : f32 to vector<8x16xf32>
    %318 = arith.subf %317, %311 : vector<8x16xf32>
    %319 = arith.mulf %318, %316 : vector<8x16xf32>
    %320 = arith.mulf %311, %263 : vector<8x16xf32>
    %321 = arith.addf %319, %320 : vector<8x16xf32>
    %cst_87 = arith.constant dense<0.000000e+00> : vector<8x48xf32>
    %322 = tpu.matmul %294, %4, %cst_87 {dimension_numbers = #tpu.dot_dimension_numbers<[1], [0], [0], [1], [0, 0, 1, 1], [], []>} : vector<8x16xf32>, vector<16x48xf32>, vector<8x48xf32> -> vector<8x48xf32>
    %323 = arith.addf %322, %27 : vector<8x48xf32>
    %cst_88 = arith.constant dense<0.000000e+00> : vector<8x48xf32>
    %324 = tpu.matmul %321, %5, %cst_88 {dimension_numbers = #tpu.dot_dimension_numbers<[1], [0], [0], [1], [0, 0, 1, 1], [], []>} : vector<8x16xf32>, vector<16x48xf32>, vector<8x48xf32> -> vector<8x48xf32>
    %325 = arith.addf %324, %29 : vector<8x48xf32>
    %326 = vector.extract_strided_slice %25 {offsets = [40, 0], sizes = [8, 48], strides = [1, 1]} : vector<64x96xf32> to vector<8x48xf32>
    %327 = vector.extract_strided_slice %326 {offsets = [0, 0], sizes = [8, 16], strides = [1, 1]} : vector<8x48xf32> to vector<8x16xf32>
    %328 = vector.extract_strided_slice %323 {offsets = [0, 0], sizes = [8, 16], strides = [1, 1]} : vector<8x48xf32> to vector<8x16xf32>
    %329 = arith.addf %327, %328 : vector<8x16xf32>
    %330 = arith.negf %329 : vector<8x16xf32>
    %331 = math.exp %330 : vector<8x16xf32>
    %cst_89 = arith.constant 1.000000e+00 : f32
    %332 = vector.broadcast %cst_89 : f32 to vector<8x16xf32>
    %333 = arith.addf %332, %331 : vector<8x16xf32>
    %334 = arith.divf %332, %333 : vector<8x16xf32>
    %335 = vector.extract_strided_slice %326 {offsets = [0, 16], sizes = [8, 16], strides = [1, 1]} : vector<8x48xf32> to vector<8x16xf32>
    %336 = vector.extract_strided_slice %323 {offsets = [0, 16], sizes = [8, 16], strides = [1, 1]} : vector<8x48xf32> to vector<8x16xf32>
    %337 = arith.addf %335, %336 : vector<8x16xf32>
    %338 = arith.negf %337 : vector<8x16xf32>
    %339 = math.exp %338 : vector<8x16xf32>
    %cst_90 = arith.constant 1.000000e+00 : f32
    %340 = vector.broadcast %cst_90 : f32 to vector<8x16xf32>
    %341 = arith.addf %340, %339 : vector<8x16xf32>
    %342 = arith.divf %340, %341 : vector<8x16xf32>
    %343 = vector.extract_strided_slice %326 {offsets = [0, 32], sizes = [8, 16], strides = [1, 1]} : vector<8x48xf32> to vector<8x16xf32>
    %344 = vector.extract_strided_slice %323 {offsets = [0, 32], sizes = [8, 16], strides = [1, 1]} : vector<8x48xf32> to vector<8x16xf32>
    %345 = arith.mulf %334, %344 : vector<8x16xf32>
    %346 = arith.addf %343, %345 : vector<8x16xf32>
    %347 = math.tanh %346 : vector<8x16xf32>
    %cst_91 = arith.constant 1.000000e+00 : f32
    %348 = vector.broadcast %cst_91 : f32 to vector<8x16xf32>
    %349 = arith.subf %348, %342 : vector<8x16xf32>
    %350 = arith.mulf %349, %347 : vector<8x16xf32>
    %351 = arith.mulf %342, %294 : vector<8x16xf32>
    %352 = arith.addf %350, %351 : vector<8x16xf32>
    %353 = vector.extract_strided_slice %25 {offsets = [16, 48], sizes = [8, 48], strides = [1, 1]} : vector<64x96xf32> to vector<8x48xf32>
    %354 = vector.extract_strided_slice %353 {offsets = [0, 0], sizes = [8, 16], strides = [1, 1]} : vector<8x48xf32> to vector<8x16xf32>
    %355 = vector.extract_strided_slice %325 {offsets = [0, 0], sizes = [8, 16], strides = [1, 1]} : vector<8x48xf32> to vector<8x16xf32>
    %356 = arith.addf %354, %355 : vector<8x16xf32>
    %357 = arith.negf %356 : vector<8x16xf32>
    %358 = math.exp %357 : vector<8x16xf32>
    %cst_92 = arith.constant 1.000000e+00 : f32
    %359 = vector.broadcast %cst_92 : f32 to vector<8x16xf32>
    %360 = arith.addf %359, %358 : vector<8x16xf32>
    %361 = arith.divf %359, %360 : vector<8x16xf32>
    %362 = vector.extract_strided_slice %353 {offsets = [0, 16], sizes = [8, 16], strides = [1, 1]} : vector<8x48xf32> to vector<8x16xf32>
    %363 = vector.extract_strided_slice %325 {offsets = [0, 16], sizes = [8, 16], strides = [1, 1]} : vector<8x48xf32> to vector<8x16xf32>
    %364 = arith.addf %362, %363 : vector<8x16xf32>
    %365 = arith.negf %364 : vector<8x16xf32>
    %366 = math.exp %365 : vector<8x16xf32>
    %cst_93 = arith.constant 1.000000e+00 : f32
    %367 = vector.broadcast %cst_93 : f32 to vector<8x16xf32>
    %368 = arith.addf %367, %366 : vector<8x16xf32>
    %369 = arith.divf %367, %368 : vector<8x16xf32>
    %370 = vector.extract_strided_slice %353 {offsets = [0, 32], sizes = [8, 16], strides = [1, 1]} : vector<8x48xf32> to vector<8x16xf32>
    %371 = vector.extract_strided_slice %325 {offsets = [0, 32], sizes = [8, 16], strides = [1, 1]} : vector<8x48xf32> to vector<8x16xf32>
    %372 = arith.mulf %361, %371 : vector<8x16xf32>
    %373 = arith.addf %370, %372 : vector<8x16xf32>
    %374 = math.tanh %373 : vector<8x16xf32>
    %cst_94 = arith.constant 1.000000e+00 : f32
    %375 = vector.broadcast %cst_94 : f32 to vector<8x16xf32>
    %376 = arith.subf %375, %369 : vector<8x16xf32>
    %377 = arith.mulf %376, %374 : vector<8x16xf32>
    %378 = arith.mulf %369, %321 : vector<8x16xf32>
    %379 = arith.addf %377, %378 : vector<8x16xf32>
    %cst_95 = arith.constant dense<0.000000e+00> : vector<8x48xf32>
    %380 = tpu.matmul %352, %4, %cst_95 {dimension_numbers = #tpu.dot_dimension_numbers<[1], [0], [0], [1], [0, 0, 1, 1], [], []>} : vector<8x16xf32>, vector<16x48xf32>, vector<8x48xf32> -> vector<8x48xf32>
    %381 = arith.addf %380, %27 : vector<8x48xf32>
    %cst_96 = arith.constant dense<0.000000e+00> : vector<8x48xf32>
    %382 = tpu.matmul %379, %5, %cst_96 {dimension_numbers = #tpu.dot_dimension_numbers<[1], [0], [0], [1], [0, 0, 1, 1], [], []>} : vector<8x16xf32>, vector<16x48xf32>, vector<8x48xf32> -> vector<8x48xf32>
    %383 = arith.addf %382, %29 : vector<8x48xf32>
    %384 = vector.extract_strided_slice %25 {offsets = [48, 0], sizes = [8, 48], strides = [1, 1]} : vector<64x96xf32> to vector<8x48xf32>
    %385 = vector.extract_strided_slice %384 {offsets = [0, 0], sizes = [8, 16], strides = [1, 1]} : vector<8x48xf32> to vector<8x16xf32>
    %386 = vector.extract_strided_slice %381 {offsets = [0, 0], sizes = [8, 16], strides = [1, 1]} : vector<8x48xf32> to vector<8x16xf32>
    %387 = arith.addf %385, %386 : vector<8x16xf32>
    %388 = arith.negf %387 : vector<8x16xf32>
    %389 = math.exp %388 : vector<8x16xf32>
    %cst_97 = arith.constant 1.000000e+00 : f32
    %390 = vector.broadcast %cst_97 : f32 to vector<8x16xf32>
    %391 = arith.addf %390, %389 : vector<8x16xf32>
    %392 = arith.divf %390, %391 : vector<8x16xf32>
    %393 = vector.extract_strided_slice %384 {offsets = [0, 16], sizes = [8, 16], strides = [1, 1]} : vector<8x48xf32> to vector<8x16xf32>
    %394 = vector.extract_strided_slice %381 {offsets = [0, 16], sizes = [8, 16], strides = [1, 1]} : vector<8x48xf32> to vector<8x16xf32>
    %395 = arith.addf %393, %394 : vector<8x16xf32>
    %396 = arith.negf %395 : vector<8x16xf32>
    %397 = math.exp %396 : vector<8x16xf32>
    %cst_98 = arith.constant 1.000000e+00 : f32
    %398 = vector.broadcast %cst_98 : f32 to vector<8x16xf32>
    %399 = arith.addf %398, %397 : vector<8x16xf32>
    %400 = arith.divf %398, %399 : vector<8x16xf32>
    %401 = vector.extract_strided_slice %384 {offsets = [0, 32], sizes = [8, 16], strides = [1, 1]} : vector<8x48xf32> to vector<8x16xf32>
    %402 = vector.extract_strided_slice %381 {offsets = [0, 32], sizes = [8, 16], strides = [1, 1]} : vector<8x48xf32> to vector<8x16xf32>
    %403 = arith.mulf %392, %402 : vector<8x16xf32>
    %404 = arith.addf %401, %403 : vector<8x16xf32>
    %405 = math.tanh %404 : vector<8x16xf32>
    %cst_99 = arith.constant 1.000000e+00 : f32
    %406 = vector.broadcast %cst_99 : f32 to vector<8x16xf32>
    %407 = arith.subf %406, %400 : vector<8x16xf32>
    %408 = arith.mulf %407, %405 : vector<8x16xf32>
    %409 = arith.mulf %400, %352 : vector<8x16xf32>
    %410 = arith.addf %408, %409 : vector<8x16xf32>
    %411 = vector.extract_strided_slice %25 {offsets = [8, 48], sizes = [8, 48], strides = [1, 1]} : vector<64x96xf32> to vector<8x48xf32>
    %412 = vector.extract_strided_slice %411 {offsets = [0, 0], sizes = [8, 16], strides = [1, 1]} : vector<8x48xf32> to vector<8x16xf32>
    %413 = vector.extract_strided_slice %383 {offsets = [0, 0], sizes = [8, 16], strides = [1, 1]} : vector<8x48xf32> to vector<8x16xf32>
    %414 = arith.addf %412, %413 : vector<8x16xf32>
    %415 = arith.negf %414 : vector<8x16xf32>
    %416 = math.exp %415 : vector<8x16xf32>
    %cst_100 = arith.constant 1.000000e+00 : f32
    %417 = vector.broadcast %cst_100 : f32 to vector<8x16xf32>
    %418 = arith.addf %417, %416 : vector<8x16xf32>
    %419 = arith.divf %417, %418 : vector<8x16xf32>
    %420 = vector.extract_strided_slice %411 {offsets = [0, 16], sizes = [8, 16], strides = [1, 1]} : vector<8x48xf32> to vector<8x16xf32>
    %421 = vector.extract_strided_slice %383 {offsets = [0, 16], sizes = [8, 16], strides = [1, 1]} : vector<8x48xf32> to vector<8x16xf32>
    %422 = arith.addf %420, %421 : vector<8x16xf32>
    %423 = arith.negf %422 : vector<8x16xf32>
    %424 = math.exp %423 : vector<8x16xf32>
    %cst_101 = arith.constant 1.000000e+00 : f32
    %425 = vector.broadcast %cst_101 : f32 to vector<8x16xf32>
    %426 = arith.addf %425, %424 : vector<8x16xf32>
    %427 = arith.divf %425, %426 : vector<8x16xf32>
    %428 = vector.extract_strided_slice %411 {offsets = [0, 32], sizes = [8, 16], strides = [1, 1]} : vector<8x48xf32> to vector<8x16xf32>
    %429 = vector.extract_strided_slice %383 {offsets = [0, 32], sizes = [8, 16], strides = [1, 1]} : vector<8x48xf32> to vector<8x16xf32>
    %430 = arith.mulf %419, %429 : vector<8x16xf32>
    %431 = arith.addf %428, %430 : vector<8x16xf32>
    %432 = math.tanh %431 : vector<8x16xf32>
    %cst_102 = arith.constant 1.000000e+00 : f32
    %433 = vector.broadcast %cst_102 : f32 to vector<8x16xf32>
    %434 = arith.subf %433, %427 : vector<8x16xf32>
    %435 = arith.mulf %434, %432 : vector<8x16xf32>
    %436 = arith.mulf %427, %379 : vector<8x16xf32>
    %437 = arith.addf %435, %436 : vector<8x16xf32>
    %cst_103 = arith.constant dense<0.000000e+00> : vector<8x48xf32>
    %438 = tpu.matmul %410, %4, %cst_103 {dimension_numbers = #tpu.dot_dimension_numbers<[1], [0], [0], [1], [0, 0, 1, 1], [], []>} : vector<8x16xf32>, vector<16x48xf32>, vector<8x48xf32> -> vector<8x48xf32>
    %439 = arith.addf %438, %27 : vector<8x48xf32>
    %cst_104 = arith.constant dense<0.000000e+00> : vector<8x48xf32>
    %440 = tpu.matmul %437, %5, %cst_104 {dimension_numbers = #tpu.dot_dimension_numbers<[1], [0], [0], [1], [0, 0, 1, 1], [], []>} : vector<8x16xf32>, vector<16x48xf32>, vector<8x48xf32> -> vector<8x48xf32>
    %441 = arith.addf %440, %29 : vector<8x48xf32>
    %442 = vector.extract_strided_slice %25 {offsets = [56, 0], sizes = [8, 48], strides = [1, 1]} : vector<64x96xf32> to vector<8x48xf32>
    %443 = vector.extract_strided_slice %442 {offsets = [0, 0], sizes = [8, 16], strides = [1, 1]} : vector<8x48xf32> to vector<8x16xf32>
    %444 = vector.extract_strided_slice %439 {offsets = [0, 0], sizes = [8, 16], strides = [1, 1]} : vector<8x48xf32> to vector<8x16xf32>
    %445 = arith.addf %443, %444 : vector<8x16xf32>
    %446 = arith.negf %445 : vector<8x16xf32>
    %447 = math.exp %446 : vector<8x16xf32>
    %cst_105 = arith.constant 1.000000e+00 : f32
    %448 = vector.broadcast %cst_105 : f32 to vector<8x16xf32>
    %449 = arith.addf %448, %447 : vector<8x16xf32>
    %450 = arith.divf %448, %449 : vector<8x16xf32>
    %451 = vector.extract_strided_slice %442 {offsets = [0, 16], sizes = [8, 16], strides = [1, 1]} : vector<8x48xf32> to vector<8x16xf32>
    %452 = vector.extract_strided_slice %439 {offsets = [0, 16], sizes = [8, 16], strides = [1, 1]} : vector<8x48xf32> to vector<8x16xf32>
    %453 = arith.addf %451, %452 : vector<8x16xf32>
    %454 = arith.negf %453 : vector<8x16xf32>
    %455 = math.exp %454 : vector<8x16xf32>
    %cst_106 = arith.constant 1.000000e+00 : f32
    %456 = vector.broadcast %cst_106 : f32 to vector<8x16xf32>
    %457 = arith.addf %456, %455 : vector<8x16xf32>
    %458 = arith.divf %456, %457 : vector<8x16xf32>
    %459 = vector.extract_strided_slice %442 {offsets = [0, 32], sizes = [8, 16], strides = [1, 1]} : vector<8x48xf32> to vector<8x16xf32>
    %460 = vector.extract_strided_slice %439 {offsets = [0, 32], sizes = [8, 16], strides = [1, 1]} : vector<8x48xf32> to vector<8x16xf32>
    %461 = arith.mulf %450, %460 : vector<8x16xf32>
    %462 = arith.addf %459, %461 : vector<8x16xf32>
    %463 = math.tanh %462 : vector<8x16xf32>
    %cst_107 = arith.constant 1.000000e+00 : f32
    %464 = vector.broadcast %cst_107 : f32 to vector<8x16xf32>
    %465 = arith.subf %464, %458 : vector<8x16xf32>
    %466 = arith.mulf %465, %463 : vector<8x16xf32>
    %467 = arith.mulf %458, %410 : vector<8x16xf32>
    %468 = arith.addf %466, %467 : vector<8x16xf32>
    %469 = vector.extract_strided_slice %25 {offsets = [0, 48], sizes = [8, 48], strides = [1, 1]} : vector<64x96xf32> to vector<8x48xf32>
    %470 = vector.extract_strided_slice %469 {offsets = [0, 0], sizes = [8, 16], strides = [1, 1]} : vector<8x48xf32> to vector<8x16xf32>
    %471 = vector.extract_strided_slice %441 {offsets = [0, 0], sizes = [8, 16], strides = [1, 1]} : vector<8x48xf32> to vector<8x16xf32>
    %472 = arith.addf %470, %471 : vector<8x16xf32>
    %473 = arith.negf %472 : vector<8x16xf32>
    %474 = math.exp %473 : vector<8x16xf32>
    %cst_108 = arith.constant 1.000000e+00 : f32
    %475 = vector.broadcast %cst_108 : f32 to vector<8x16xf32>
    %476 = arith.addf %475, %474 : vector<8x16xf32>
    %477 = arith.divf %475, %476 : vector<8x16xf32>
    %478 = vector.extract_strided_slice %469 {offsets = [0, 16], sizes = [8, 16], strides = [1, 1]} : vector<8x48xf32> to vector<8x16xf32>
    %479 = vector.extract_strided_slice %441 {offsets = [0, 16], sizes = [8, 16], strides = [1, 1]} : vector<8x48xf32> to vector<8x16xf32>
    %480 = arith.addf %478, %479 : vector<8x16xf32>
    %481 = arith.negf %480 : vector<8x16xf32>
    %482 = math.exp %481 : vector<8x16xf32>
    %cst_109 = arith.constant 1.000000e+00 : f32
    %483 = vector.broadcast %cst_109 : f32 to vector<8x16xf32>
    %484 = arith.addf %483, %482 : vector<8x16xf32>
    %485 = arith.divf %483, %484 : vector<8x16xf32>
    %486 = vector.extract_strided_slice %469 {offsets = [0, 32], sizes = [8, 16], strides = [1, 1]} : vector<8x48xf32> to vector<8x16xf32>
    %487 = vector.extract_strided_slice %441 {offsets = [0, 32], sizes = [8, 16], strides = [1, 1]} : vector<8x48xf32> to vector<8x16xf32>
    %488 = arith.mulf %477, %487 : vector<8x16xf32>
    %489 = arith.addf %486, %488 : vector<8x16xf32>
    %490 = math.tanh %489 : vector<8x16xf32>
    %cst_110 = arith.constant 1.000000e+00 : f32
    %491 = vector.broadcast %cst_110 : f32 to vector<8x16xf32>
    %492 = arith.subf %491, %485 : vector<8x16xf32>
    %493 = arith.mulf %492, %490 : vector<8x16xf32>
    %494 = arith.mulf %485, %437 : vector<8x16xf32>
    %495 = arith.addf %493, %494 : vector<8x16xf32>
    %496 = tpu.concatenate %62, %495 in 1 : vector<8x16xf32>, vector<8x16xf32> -> vector<8x32xf32>
    %497 = tpu.concatenate %120, %437 in 1 : vector<8x16xf32>, vector<8x16xf32> -> vector<8x32xf32>
    %498 = tpu.concatenate %178, %379 in 1 : vector<8x16xf32>, vector<8x16xf32> -> vector<8x32xf32>
    %499 = tpu.concatenate %236, %321 in 1 : vector<8x16xf32>, vector<8x16xf32> -> vector<8x32xf32>
    %500 = tpu.concatenate %294, %263 in 1 : vector<8x16xf32>, vector<8x16xf32> -> vector<8x32xf32>
    %501 = tpu.concatenate %352, %205 in 1 : vector<8x16xf32>, vector<8x16xf32> -> vector<8x32xf32>
    %502 = tpu.concatenate %410, %147 in 1 : vector<8x16xf32>, vector<8x16xf32> -> vector<8x32xf32>
    %503 = tpu.concatenate %468, %89 in 1 : vector<8x16xf32>, vector<8x16xf32> -> vector<8x32xf32>
    %504 = tpu.concatenate %496, %497, %498, %499, %500, %501, %502, %503 in 0 : vector<8x32xf32>, vector<8x32xf32>, vector<8x32xf32>, vector<8x32xf32>, vector<8x32xf32>, vector<8x32xf32>, vector<8x32xf32>, vector<8x32xf32> -> vector<64x32xf32>
    %cst_111 = arith.constant dense<0.000000e+00> : vector<64x32xf32>
    %505 = tpu.matmul %504, %9, %cst_111 {dimension_numbers = #tpu.dot_dimension_numbers<[1], [0], [0], [1], [0, 0, 1, 1], [], []>} : vector<64x32xf32>, vector<32x32xf32>, vector<64x32xf32> -> vector<64x32xf32>
    %506 = vector.broadcast %10 : vector<1x32xf32> to vector<64x32xf32>
    %507 = arith.addf %505, %506 : vector<64x32xf32>
    %508 = math.tanh %507 : vector<64x32xf32>
    %509 = vector.extract_strided_slice %508 {offsets = [0, 0], sizes = [8, 32], strides = [1, 1]} : vector<64x32xf32> to vector<8x32xf32>
    %510 = vector.broadcast %11 : vector<1x32xf32> to vector<8x32xf32>
    %511 = arith.mulf %509, %510 : vector<8x32xf32>
    %cst_112 = arith.constant dense<0.000000e+00> : vector<8xf32>
    %512 = vector.multi_reduction <add>, %511, %cst_112 [1] : vector<8x32xf32> to vector<8xf32>
    %513 = vector.shape_cast %512 : vector<8xf32> to vector<8x1xf32>
    %514 = vector.extract_strided_slice %508 {offsets = [8, 0], sizes = [8, 32], strides = [1, 1]} : vector<64x32xf32> to vector<8x32xf32>
    %515 = vector.broadcast %11 : vector<1x32xf32> to vector<8x32xf32>
    %516 = arith.mulf %514, %515 : vector<8x32xf32>
    %cst_113 = arith.constant dense<0.000000e+00> : vector<8xf32>
    %517 = vector.multi_reduction <add>, %516, %cst_113 [1] : vector<8x32xf32> to vector<8xf32>
    %518 = vector.shape_cast %517 : vector<8xf32> to vector<8x1xf32>
    %519 = vector.extract_strided_slice %508 {offsets = [16, 0], sizes = [8, 32], strides = [1, 1]} : vector<64x32xf32> to vector<8x32xf32>
    %520 = vector.broadcast %11 : vector<1x32xf32> to vector<8x32xf32>
    %521 = arith.mulf %519, %520 : vector<8x32xf32>
    %cst_114 = arith.constant dense<0.000000e+00> : vector<8xf32>
    %522 = vector.multi_reduction <add>, %521, %cst_114 [1] : vector<8x32xf32> to vector<8xf32>
    %523 = vector.shape_cast %522 : vector<8xf32> to vector<8x1xf32>
    %524 = vector.extract_strided_slice %508 {offsets = [24, 0], sizes = [8, 32], strides = [1, 1]} : vector<64x32xf32> to vector<8x32xf32>
    %525 = vector.broadcast %11 : vector<1x32xf32> to vector<8x32xf32>
    %526 = arith.mulf %524, %525 : vector<8x32xf32>
    %cst_115 = arith.constant dense<0.000000e+00> : vector<8xf32>
    %527 = vector.multi_reduction <add>, %526, %cst_115 [1] : vector<8x32xf32> to vector<8xf32>
    %528 = vector.shape_cast %527 : vector<8xf32> to vector<8x1xf32>
    %529 = vector.extract_strided_slice %508 {offsets = [32, 0], sizes = [8, 32], strides = [1, 1]} : vector<64x32xf32> to vector<8x32xf32>
    %530 = vector.broadcast %11 : vector<1x32xf32> to vector<8x32xf32>
    %531 = arith.mulf %529, %530 : vector<8x32xf32>
    %cst_116 = arith.constant dense<0.000000e+00> : vector<8xf32>
    %532 = vector.multi_reduction <add>, %531, %cst_116 [1] : vector<8x32xf32> to vector<8xf32>
    %533 = vector.shape_cast %532 : vector<8xf32> to vector<8x1xf32>
    %534 = vector.extract_strided_slice %508 {offsets = [40, 0], sizes = [8, 32], strides = [1, 1]} : vector<64x32xf32> to vector<8x32xf32>
    %535 = vector.broadcast %11 : vector<1x32xf32> to vector<8x32xf32>
    %536 = arith.mulf %534, %535 : vector<8x32xf32>
    %cst_117 = arith.constant dense<0.000000e+00> : vector<8xf32>
    %537 = vector.multi_reduction <add>, %536, %cst_117 [1] : vector<8x32xf32> to vector<8xf32>
    %538 = vector.shape_cast %537 : vector<8xf32> to vector<8x1xf32>
    %539 = vector.extract_strided_slice %508 {offsets = [48, 0], sizes = [8, 32], strides = [1, 1]} : vector<64x32xf32> to vector<8x32xf32>
    %540 = vector.broadcast %11 : vector<1x32xf32> to vector<8x32xf32>
    %541 = arith.mulf %539, %540 : vector<8x32xf32>
    %cst_118 = arith.constant dense<0.000000e+00> : vector<8xf32>
    %542 = vector.multi_reduction <add>, %541, %cst_118 [1] : vector<8x32xf32> to vector<8xf32>
    %543 = vector.shape_cast %542 : vector<8xf32> to vector<8x1xf32>
    %544 = vector.extract_strided_slice %508 {offsets = [56, 0], sizes = [8, 32], strides = [1, 1]} : vector<64x32xf32> to vector<8x32xf32>
    %545 = vector.broadcast %11 : vector<1x32xf32> to vector<8x32xf32>
    %546 = arith.mulf %544, %545 : vector<8x32xf32>
    %cst_119 = arith.constant dense<0.000000e+00> : vector<8xf32>
    %547 = vector.multi_reduction <add>, %546, %cst_119 [1] : vector<8x32xf32> to vector<8xf32>
    %548 = vector.shape_cast %547 : vector<8xf32> to vector<8x1xf32>
    %549 = tpu.concatenate %513, %518, %523, %528, %533, %538, %543, %548 in 1 : vector<8x1xf32>, vector<8x1xf32>, vector<8x1xf32>, vector<8x1xf32>, vector<8x1xf32>, vector<8x1xf32>, vector<8x1xf32>, vector<8x1xf32> -> vector<8x8xf32>
    %cst_120 = arith.constant dense<0xFF800000> : vector<8xf32>
    %550 = vector.multi_reduction <maximumf>, %549, %cst_120 [1] : vector<8x8xf32> to vector<8xf32>
    %551 = vector.shape_cast %550 : vector<8xf32> to vector<8x1xf32>
    %552 = vector.broadcast %551 : vector<8x1xf32> to vector<8x8xf32>
    %553 = arith.subf %549, %552 : vector<8x8xf32>
    %554 = math.exp %553 : vector<8x8xf32>
    %cst_121 = arith.constant dense<0.000000e+00> : vector<8xf32>
    %555 = vector.multi_reduction <add>, %554, %cst_121 [1] : vector<8x8xf32> to vector<8xf32>
    %556 = vector.shape_cast %555 : vector<8xf32> to vector<8x1xf32>
    %557 = vector.broadcast %556 : vector<8x1xf32> to vector<8x8xf32>
    %558 = arith.divf %554, %557 : vector<8x8xf32>
    %559 = arith.mulf %558, %1 : vector<8x8xf32>
    %cst_122 = arith.constant dense<0.000000e+00> : vector<8xf32>
    %560 = vector.multi_reduction <add>, %559, %cst_122 [1] : vector<8x8xf32> to vector<8xf32>
    %561 = vector.shape_cast %560 : vector<8xf32> to vector<8x1xf32>
    %cst_123 = arith.constant 9.99999974E-5 : f32
    %562 = vector.broadcast %cst_123 : f32 to vector<8x1xf32>
    %563 = arith.addf %561, %562 : vector<8x1xf32>
    %564 = vector.broadcast %563 : vector<8x1xf32> to vector<8x8xf32>
    %565 = arith.divf %559, %564 : vector<8x8xf32>
    %566 = vector.extract_strided_slice %565 {offsets = [0, 0], sizes = [8, 1], strides = [1, 1]} : vector<8x8xf32> to vector<8x1xf32>
    %567 = vector.broadcast %566 : vector<8x1xf32> to vector<8x16xf32>
    %568 = arith.mulf %567, %62 : vector<8x16xf32>
    %569 = vector.extract_strided_slice %565 {offsets = [0, 0], sizes = [8, 1], strides = [1, 1]} : vector<8x8xf32> to vector<8x1xf32>
    %570 = vector.broadcast %569 : vector<8x1xf32> to vector<8x16xf32>
    %571 = arith.mulf %570, %495 : vector<8x16xf32>
    %572 = vector.extract_strided_slice %565 {offsets = [0, 1], sizes = [8, 1], strides = [1, 1]} : vector<8x8xf32> to vector<8x1xf32>
    %573 = vector.broadcast %572 : vector<8x1xf32> to vector<8x16xf32>
    %574 = arith.mulf %573, %120 : vector<8x16xf32>
    %575 = arith.addf %568, %574 : vector<8x16xf32>
    %576 = vector.extract_strided_slice %565 {offsets = [0, 1], sizes = [8, 1], strides = [1, 1]} : vector<8x8xf32> to vector<8x1xf32>
    %577 = vector.broadcast %576 : vector<8x1xf32> to vector<8x16xf32>
    %578 = arith.mulf %577, %437 : vector<8x16xf32>
    %579 = arith.addf %571, %578 : vector<8x16xf32>
    %580 = vector.extract_strided_slice %565 {offsets = [0, 2], sizes = [8, 1], strides = [1, 1]} : vector<8x8xf32> to vector<8x1xf32>
    %581 = vector.broadcast %580 : vector<8x1xf32> to vector<8x16xf32>
    %582 = arith.mulf %581, %178 : vector<8x16xf32>
    %583 = arith.addf %575, %582 : vector<8x16xf32>
    %584 = vector.extract_strided_slice %565 {offsets = [0, 2], sizes = [8, 1], strides = [1, 1]} : vector<8x8xf32> to vector<8x1xf32>
    %585 = vector.broadcast %584 : vector<8x1xf32> to vector<8x16xf32>
    %586 = arith.mulf %585, %379 : vector<8x16xf32>
    %587 = arith.addf %579, %586 : vector<8x16xf32>
    %588 = vector.extract_strided_slice %565 {offsets = [0, 3], sizes = [8, 1], strides = [1, 1]} : vector<8x8xf32> to vector<8x1xf32>
    %589 = vector.broadcast %588 : vector<8x1xf32> to vector<8x16xf32>
    %590 = arith.mulf %589, %236 : vector<8x16xf32>
    %591 = arith.addf %583, %590 : vector<8x16xf32>
    %592 = vector.extract_strided_slice %565 {offsets = [0, 3], sizes = [8, 1], strides = [1, 1]} : vector<8x8xf32> to vector<8x1xf32>
    %593 = vector.broadcast %592 : vector<8x1xf32> to vector<8x16xf32>
    %594 = arith.mulf %593, %321 : vector<8x16xf32>
    %595 = arith.addf %587, %594 : vector<8x16xf32>
    %596 = vector.extract_strided_slice %565 {offsets = [0, 4], sizes = [8, 1], strides = [1, 1]} : vector<8x8xf32> to vector<8x1xf32>
    %597 = vector.broadcast %596 : vector<8x1xf32> to vector<8x16xf32>
    %598 = arith.mulf %597, %294 : vector<8x16xf32>
    %599 = arith.addf %591, %598 : vector<8x16xf32>
    %600 = vector.extract_strided_slice %565 {offsets = [0, 4], sizes = [8, 1], strides = [1, 1]} : vector<8x8xf32> to vector<8x1xf32>
    %601 = vector.broadcast %600 : vector<8x1xf32> to vector<8x16xf32>
    %602 = arith.mulf %601, %263 : vector<8x16xf32>
    %603 = arith.addf %595, %602 : vector<8x16xf32>
    %604 = vector.extract_strided_slice %565 {offsets = [0, 5], sizes = [8, 1], strides = [1, 1]} : vector<8x8xf32> to vector<8x1xf32>
    %605 = vector.broadcast %604 : vector<8x1xf32> to vector<8x16xf32>
    %606 = arith.mulf %605, %352 : vector<8x16xf32>
    %607 = arith.addf %599, %606 : vector<8x16xf32>
    %608 = vector.extract_strided_slice %565 {offsets = [0, 5], sizes = [8, 1], strides = [1, 1]} : vector<8x8xf32> to vector<8x1xf32>
    %609 = vector.broadcast %608 : vector<8x1xf32> to vector<8x16xf32>
    %610 = arith.mulf %609, %205 : vector<8x16xf32>
    %611 = arith.addf %603, %610 : vector<8x16xf32>
    %612 = vector.extract_strided_slice %565 {offsets = [0, 6], sizes = [8, 1], strides = [1, 1]} : vector<8x8xf32> to vector<8x1xf32>
    %613 = vector.broadcast %612 : vector<8x1xf32> to vector<8x16xf32>
    %614 = arith.mulf %613, %410 : vector<8x16xf32>
    %615 = arith.addf %607, %614 : vector<8x16xf32>
    %616 = vector.extract_strided_slice %565 {offsets = [0, 6], sizes = [8, 1], strides = [1, 1]} : vector<8x8xf32> to vector<8x1xf32>
    %617 = vector.broadcast %616 : vector<8x1xf32> to vector<8x16xf32>
    %618 = arith.mulf %617, %147 : vector<8x16xf32>
    %619 = arith.addf %611, %618 : vector<8x16xf32>
    %620 = vector.extract_strided_slice %565 {offsets = [0, 7], sizes = [8, 1], strides = [1, 1]} : vector<8x8xf32> to vector<8x1xf32>
    %621 = vector.broadcast %620 : vector<8x1xf32> to vector<8x16xf32>
    %622 = arith.mulf %621, %468 : vector<8x16xf32>
    %623 = arith.addf %615, %622 : vector<8x16xf32>
    %624 = vector.extract_strided_slice %565 {offsets = [0, 7], sizes = [8, 1], strides = [1, 1]} : vector<8x8xf32> to vector<8x1xf32>
    %625 = vector.broadcast %624 : vector<8x1xf32> to vector<8x16xf32>
    %626 = arith.mulf %625, %89 : vector<8x16xf32>
    %627 = arith.addf %619, %626 : vector<8x16xf32>
    %628 = tpu.concatenate %623, %627 in 1 : vector<8x16xf32>, vector<8x16xf32> -> vector<8x32xf32>
    %cst_124 = arith.constant dense<0.000000e+00> : vector<8x96xf32>
    %629 = tpu.matmul %628, %12, %cst_124 {dimension_numbers = #tpu.dot_dimension_numbers<[1], [0], [0], [1], [0, 0, 1, 1], [], []>} : vector<8x32xf32>, vector<32x96xf32>, vector<8x96xf32> -> vector<8x96xf32>
    %630 = vector.broadcast %15 : vector<1x96xf32> to vector<8x96xf32>
    %631 = arith.addf %629, %630 : vector<8x96xf32>
    %632 = vector.shape_cast %16 : vector<1x48xf32> to vector<1x48xf32>
    %633 = vector.broadcast %632 : vector<1x48xf32> to vector<2x48xf32>
    %634 = vector.shape_cast %17 : vector<1x48xf32> to vector<1x48xf32>
    %635 = vector.broadcast %634 : vector<1x48xf32> to vector<2x48xf32>
    %cst_125 = arith.constant 0.000000e+00 : f32
    %636 = vector.broadcast %cst_125 : f32 to vector<2x16xf32>
    %cst_126 = arith.constant 0.000000e+00 : f32
    %637 = vector.broadcast %cst_126 : f32 to vector<2x16xf32>
    %cst_127 = arith.constant dense<0.000000e+00> : vector<2x48xf32>
    %638 = tpu.matmul %636, %13, %cst_127 {dimension_numbers = #tpu.dot_dimension_numbers<[1], [0], [0], [1], [0, 0, 1, 1], [], []>} : vector<2x16xf32>, vector<16x48xf32>, vector<2x48xf32> -> vector<2x48xf32>
    %639 = arith.addf %638, %633 : vector<2x48xf32>
    %cst_128 = arith.constant dense<0.000000e+00> : vector<2x48xf32>
    %640 = tpu.matmul %637, %14, %cst_128 {dimension_numbers = #tpu.dot_dimension_numbers<[1], [0], [0], [1], [0, 0, 1, 1], [], []>} : vector<2x16xf32>, vector<16x48xf32>, vector<2x48xf32> -> vector<2x48xf32>
    %641 = arith.addf %640, %635 : vector<2x48xf32>
    %642 = vector.extract_strided_slice %631 {offsets = [0, 0], sizes = [2, 48], strides = [1, 1]} : vector<8x96xf32> to vector<2x48xf32>
    %643 = vector.extract_strided_slice %642 {offsets = [0, 0], sizes = [2, 16], strides = [1, 1]} : vector<2x48xf32> to vector<2x16xf32>
    %644 = vector.extract_strided_slice %639 {offsets = [0, 0], sizes = [2, 16], strides = [1, 1]} : vector<2x48xf32> to vector<2x16xf32>
    %645 = arith.addf %643, %644 : vector<2x16xf32>
    %646 = arith.negf %645 : vector<2x16xf32>
    %647 = math.exp %646 : vector<2x16xf32>
    %cst_129 = arith.constant 1.000000e+00 : f32
    %648 = vector.broadcast %cst_129 : f32 to vector<2x16xf32>
    %649 = arith.addf %648, %647 : vector<2x16xf32>
    %650 = arith.divf %648, %649 : vector<2x16xf32>
    %651 = vector.extract_strided_slice %642 {offsets = [0, 16], sizes = [2, 16], strides = [1, 1]} : vector<2x48xf32> to vector<2x16xf32>
    %652 = vector.extract_strided_slice %639 {offsets = [0, 16], sizes = [2, 16], strides = [1, 1]} : vector<2x48xf32> to vector<2x16xf32>
    %653 = arith.addf %651, %652 : vector<2x16xf32>
    %654 = arith.negf %653 : vector<2x16xf32>
    %655 = math.exp %654 : vector<2x16xf32>
    %cst_130 = arith.constant 1.000000e+00 : f32
    %656 = vector.broadcast %cst_130 : f32 to vector<2x16xf32>
    %657 = arith.addf %656, %655 : vector<2x16xf32>
    %658 = arith.divf %656, %657 : vector<2x16xf32>
    %659 = vector.extract_strided_slice %642 {offsets = [0, 32], sizes = [2, 16], strides = [1, 1]} : vector<2x48xf32> to vector<2x16xf32>
    %660 = vector.extract_strided_slice %639 {offsets = [0, 32], sizes = [2, 16], strides = [1, 1]} : vector<2x48xf32> to vector<2x16xf32>
    %661 = arith.mulf %650, %660 : vector<2x16xf32>
    %662 = arith.addf %659, %661 : vector<2x16xf32>
    %663 = math.tanh %662 : vector<2x16xf32>
    %cst_131 = arith.constant 1.000000e+00 : f32
    %664 = vector.broadcast %cst_131 : f32 to vector<2x16xf32>
    %665 = arith.subf %664, %658 : vector<2x16xf32>
    %666 = arith.mulf %665, %663 : vector<2x16xf32>
    %667 = arith.mulf %658, %636 : vector<2x16xf32>
    %668 = arith.addf %666, %667 : vector<2x16xf32>
    %669 = vector.extract_strided_slice %631 {offsets = [6, 48], sizes = [2, 48], strides = [1, 1]} : vector<8x96xf32> to vector<2x48xf32>
    %670 = vector.extract_strided_slice %669 {offsets = [0, 0], sizes = [2, 16], strides = [1, 1]} : vector<2x48xf32> to vector<2x16xf32>
    %671 = vector.extract_strided_slice %641 {offsets = [0, 0], sizes = [2, 16], strides = [1, 1]} : vector<2x48xf32> to vector<2x16xf32>
    %672 = arith.addf %670, %671 : vector<2x16xf32>
    %673 = arith.negf %672 : vector<2x16xf32>
    %674 = math.exp %673 : vector<2x16xf32>
    %cst_132 = arith.constant 1.000000e+00 : f32
    %675 = vector.broadcast %cst_132 : f32 to vector<2x16xf32>
    %676 = arith.addf %675, %674 : vector<2x16xf32>
    %677 = arith.divf %675, %676 : vector<2x16xf32>
    %678 = vector.extract_strided_slice %669 {offsets = [0, 16], sizes = [2, 16], strides = [1, 1]} : vector<2x48xf32> to vector<2x16xf32>
    %679 = vector.extract_strided_slice %641 {offsets = [0, 16], sizes = [2, 16], strides = [1, 1]} : vector<2x48xf32> to vector<2x16xf32>
    %680 = arith.addf %678, %679 : vector<2x16xf32>
    %681 = arith.negf %680 : vector<2x16xf32>
    %682 = math.exp %681 : vector<2x16xf32>
    %cst_133 = arith.constant 1.000000e+00 : f32
    %683 = vector.broadcast %cst_133 : f32 to vector<2x16xf32>
    %684 = arith.addf %683, %682 : vector<2x16xf32>
    %685 = arith.divf %683, %684 : vector<2x16xf32>
    %686 = vector.extract_strided_slice %669 {offsets = [0, 32], sizes = [2, 16], strides = [1, 1]} : vector<2x48xf32> to vector<2x16xf32>
    %687 = vector.extract_strided_slice %641 {offsets = [0, 32], sizes = [2, 16], strides = [1, 1]} : vector<2x48xf32> to vector<2x16xf32>
    %688 = arith.mulf %677, %687 : vector<2x16xf32>
    %689 = arith.addf %686, %688 : vector<2x16xf32>
    %690 = math.tanh %689 : vector<2x16xf32>
    %cst_134 = arith.constant 1.000000e+00 : f32
    %691 = vector.broadcast %cst_134 : f32 to vector<2x16xf32>
    %692 = arith.subf %691, %685 : vector<2x16xf32>
    %693 = arith.mulf %692, %690 : vector<2x16xf32>
    %694 = arith.mulf %685, %637 : vector<2x16xf32>
    %695 = arith.addf %693, %694 : vector<2x16xf32>
    %cst_135 = arith.constant dense<0.000000e+00> : vector<2x48xf32>
    %696 = tpu.matmul %668, %13, %cst_135 {dimension_numbers = #tpu.dot_dimension_numbers<[1], [0], [0], [1], [0, 0, 1, 1], [], []>} : vector<2x16xf32>, vector<16x48xf32>, vector<2x48xf32> -> vector<2x48xf32>
    %697 = arith.addf %696, %633 : vector<2x48xf32>
    %cst_136 = arith.constant dense<0.000000e+00> : vector<2x48xf32>
    %698 = tpu.matmul %695, %14, %cst_136 {dimension_numbers = #tpu.dot_dimension_numbers<[1], [0], [0], [1], [0, 0, 1, 1], [], []>} : vector<2x16xf32>, vector<16x48xf32>, vector<2x48xf32> -> vector<2x48xf32>
    %699 = arith.addf %698, %635 : vector<2x48xf32>
    %700 = vector.extract_strided_slice %631 {offsets = [2, 0], sizes = [2, 48], strides = [1, 1]} : vector<8x96xf32> to vector<2x48xf32>
    %701 = vector.extract_strided_slice %700 {offsets = [0, 0], sizes = [2, 16], strides = [1, 1]} : vector<2x48xf32> to vector<2x16xf32>
    %702 = vector.extract_strided_slice %697 {offsets = [0, 0], sizes = [2, 16], strides = [1, 1]} : vector<2x48xf32> to vector<2x16xf32>
    %703 = arith.addf %701, %702 : vector<2x16xf32>
    %704 = arith.negf %703 : vector<2x16xf32>
    %705 = math.exp %704 : vector<2x16xf32>
    %cst_137 = arith.constant 1.000000e+00 : f32
    %706 = vector.broadcast %cst_137 : f32 to vector<2x16xf32>
    %707 = arith.addf %706, %705 : vector<2x16xf32>
    %708 = arith.divf %706, %707 : vector<2x16xf32>
    %709 = vector.extract_strided_slice %700 {offsets = [0, 16], sizes = [2, 16], strides = [1, 1]} : vector<2x48xf32> to vector<2x16xf32>
    %710 = vector.extract_strided_slice %697 {offsets = [0, 16], sizes = [2, 16], strides = [1, 1]} : vector<2x48xf32> to vector<2x16xf32>
    %711 = arith.addf %709, %710 : vector<2x16xf32>
    %712 = arith.negf %711 : vector<2x16xf32>
    %713 = math.exp %712 : vector<2x16xf32>
    %cst_138 = arith.constant 1.000000e+00 : f32
    %714 = vector.broadcast %cst_138 : f32 to vector<2x16xf32>
    %715 = arith.addf %714, %713 : vector<2x16xf32>
    %716 = arith.divf %714, %715 : vector<2x16xf32>
    %717 = vector.extract_strided_slice %700 {offsets = [0, 32], sizes = [2, 16], strides = [1, 1]} : vector<2x48xf32> to vector<2x16xf32>
    %718 = vector.extract_strided_slice %697 {offsets = [0, 32], sizes = [2, 16], strides = [1, 1]} : vector<2x48xf32> to vector<2x16xf32>
    %719 = arith.mulf %708, %718 : vector<2x16xf32>
    %720 = arith.addf %717, %719 : vector<2x16xf32>
    %721 = math.tanh %720 : vector<2x16xf32>
    %cst_139 = arith.constant 1.000000e+00 : f32
    %722 = vector.broadcast %cst_139 : f32 to vector<2x16xf32>
    %723 = arith.subf %722, %716 : vector<2x16xf32>
    %724 = arith.mulf %723, %721 : vector<2x16xf32>
    %725 = arith.mulf %716, %668 : vector<2x16xf32>
    %726 = arith.addf %724, %725 : vector<2x16xf32>
    %727 = vector.extract_strided_slice %631 {offsets = [4, 48], sizes = [2, 48], strides = [1, 1]} : vector<8x96xf32> to vector<2x48xf32>
    %728 = vector.extract_strided_slice %727 {offsets = [0, 0], sizes = [2, 16], strides = [1, 1]} : vector<2x48xf32> to vector<2x16xf32>
    %729 = vector.extract_strided_slice %699 {offsets = [0, 0], sizes = [2, 16], strides = [1, 1]} : vector<2x48xf32> to vector<2x16xf32>
    %730 = arith.addf %728, %729 : vector<2x16xf32>
    %731 = arith.negf %730 : vector<2x16xf32>
    %732 = math.exp %731 : vector<2x16xf32>
    %cst_140 = arith.constant 1.000000e+00 : f32
    %733 = vector.broadcast %cst_140 : f32 to vector<2x16xf32>
    %734 = arith.addf %733, %732 : vector<2x16xf32>
    %735 = arith.divf %733, %734 : vector<2x16xf32>
    %736 = vector.extract_strided_slice %727 {offsets = [0, 16], sizes = [2, 16], strides = [1, 1]} : vector<2x48xf32> to vector<2x16xf32>
    %737 = vector.extract_strided_slice %699 {offsets = [0, 16], sizes = [2, 16], strides = [1, 1]} : vector<2x48xf32> to vector<2x16xf32>
    %738 = arith.addf %736, %737 : vector<2x16xf32>
    %739 = arith.negf %738 : vector<2x16xf32>
    %740 = math.exp %739 : vector<2x16xf32>
    %cst_141 = arith.constant 1.000000e+00 : f32
    %741 = vector.broadcast %cst_141 : f32 to vector<2x16xf32>
    %742 = arith.addf %741, %740 : vector<2x16xf32>
    %743 = arith.divf %741, %742 : vector<2x16xf32>
    %744 = vector.extract_strided_slice %727 {offsets = [0, 32], sizes = [2, 16], strides = [1, 1]} : vector<2x48xf32> to vector<2x16xf32>
    %745 = vector.extract_strided_slice %699 {offsets = [0, 32], sizes = [2, 16], strides = [1, 1]} : vector<2x48xf32> to vector<2x16xf32>
    %746 = arith.mulf %735, %745 : vector<2x16xf32>
    %747 = arith.addf %744, %746 : vector<2x16xf32>
    %748 = math.tanh %747 : vector<2x16xf32>
    %cst_142 = arith.constant 1.000000e+00 : f32
    %749 = vector.broadcast %cst_142 : f32 to vector<2x16xf32>
    %750 = arith.subf %749, %743 : vector<2x16xf32>
    %751 = arith.mulf %750, %748 : vector<2x16xf32>
    %752 = arith.mulf %743, %695 : vector<2x16xf32>
    %753 = arith.addf %751, %752 : vector<2x16xf32>
    %cst_143 = arith.constant dense<0.000000e+00> : vector<2x48xf32>
    %754 = tpu.matmul %726, %13, %cst_143 {dimension_numbers = #tpu.dot_dimension_numbers<[1], [0], [0], [1], [0, 0, 1, 1], [], []>} : vector<2x16xf32>, vector<16x48xf32>, vector<2x48xf32> -> vector<2x48xf32>
    %755 = arith.addf %754, %633 : vector<2x48xf32>
    %cst_144 = arith.constant dense<0.000000e+00> : vector<2x48xf32>
    %756 = tpu.matmul %753, %14, %cst_144 {dimension_numbers = #tpu.dot_dimension_numbers<[1], [0], [0], [1], [0, 0, 1, 1], [], []>} : vector<2x16xf32>, vector<16x48xf32>, vector<2x48xf32> -> vector<2x48xf32>
    %757 = arith.addf %756, %635 : vector<2x48xf32>
    %758 = vector.extract_strided_slice %631 {offsets = [4, 0], sizes = [2, 48], strides = [1, 1]} : vector<8x96xf32> to vector<2x48xf32>
    %759 = vector.extract_strided_slice %758 {offsets = [0, 0], sizes = [2, 16], strides = [1, 1]} : vector<2x48xf32> to vector<2x16xf32>
    %760 = vector.extract_strided_slice %755 {offsets = [0, 0], sizes = [2, 16], strides = [1, 1]} : vector<2x48xf32> to vector<2x16xf32>
    %761 = arith.addf %759, %760 : vector<2x16xf32>
    %762 = arith.negf %761 : vector<2x16xf32>
    %763 = math.exp %762 : vector<2x16xf32>
    %cst_145 = arith.constant 1.000000e+00 : f32
    %764 = vector.broadcast %cst_145 : f32 to vector<2x16xf32>
    %765 = arith.addf %764, %763 : vector<2x16xf32>
    %766 = arith.divf %764, %765 : vector<2x16xf32>
    %767 = vector.extract_strided_slice %758 {offsets = [0, 16], sizes = [2, 16], strides = [1, 1]} : vector<2x48xf32> to vector<2x16xf32>
    %768 = vector.extract_strided_slice %755 {offsets = [0, 16], sizes = [2, 16], strides = [1, 1]} : vector<2x48xf32> to vector<2x16xf32>
    %769 = arith.addf %767, %768 : vector<2x16xf32>
    %770 = arith.negf %769 : vector<2x16xf32>
    %771 = math.exp %770 : vector<2x16xf32>
    %cst_146 = arith.constant 1.000000e+00 : f32
    %772 = vector.broadcast %cst_146 : f32 to vector<2x16xf32>
    %773 = arith.addf %772, %771 : vector<2x16xf32>
    %774 = arith.divf %772, %773 : vector<2x16xf32>
    %775 = vector.extract_strided_slice %758 {offsets = [0, 32], sizes = [2, 16], strides = [1, 1]} : vector<2x48xf32> to vector<2x16xf32>
    %776 = vector.extract_strided_slice %755 {offsets = [0, 32], sizes = [2, 16], strides = [1, 1]} : vector<2x48xf32> to vector<2x16xf32>
    %777 = arith.mulf %766, %776 : vector<2x16xf32>
    %778 = arith.addf %775, %777 : vector<2x16xf32>
    %779 = math.tanh %778 : vector<2x16xf32>
    %cst_147 = arith.constant 1.000000e+00 : f32
    %780 = vector.broadcast %cst_147 : f32 to vector<2x16xf32>
    %781 = arith.subf %780, %774 : vector<2x16xf32>
    %782 = arith.mulf %781, %779 : vector<2x16xf32>
    %783 = arith.mulf %774, %726 : vector<2x16xf32>
    %784 = arith.addf %782, %783 : vector<2x16xf32>
    %785 = vector.extract_strided_slice %631 {offsets = [2, 48], sizes = [2, 48], strides = [1, 1]} : vector<8x96xf32> to vector<2x48xf32>
    %786 = vector.extract_strided_slice %785 {offsets = [0, 0], sizes = [2, 16], strides = [1, 1]} : vector<2x48xf32> to vector<2x16xf32>
    %787 = vector.extract_strided_slice %757 {offsets = [0, 0], sizes = [2, 16], strides = [1, 1]} : vector<2x48xf32> to vector<2x16xf32>
    %788 = arith.addf %786, %787 : vector<2x16xf32>
    %789 = arith.negf %788 : vector<2x16xf32>
    %790 = math.exp %789 : vector<2x16xf32>
    %cst_148 = arith.constant 1.000000e+00 : f32
    %791 = vector.broadcast %cst_148 : f32 to vector<2x16xf32>
    %792 = arith.addf %791, %790 : vector<2x16xf32>
    %793 = arith.divf %791, %792 : vector<2x16xf32>
    %794 = vector.extract_strided_slice %785 {offsets = [0, 16], sizes = [2, 16], strides = [1, 1]} : vector<2x48xf32> to vector<2x16xf32>
    %795 = vector.extract_strided_slice %757 {offsets = [0, 16], sizes = [2, 16], strides = [1, 1]} : vector<2x48xf32> to vector<2x16xf32>
    %796 = arith.addf %794, %795 : vector<2x16xf32>
    %797 = arith.negf %796 : vector<2x16xf32>
    %798 = math.exp %797 : vector<2x16xf32>
    %cst_149 = arith.constant 1.000000e+00 : f32
    %799 = vector.broadcast %cst_149 : f32 to vector<2x16xf32>
    %800 = arith.addf %799, %798 : vector<2x16xf32>
    %801 = arith.divf %799, %800 : vector<2x16xf32>
    %802 = vector.extract_strided_slice %785 {offsets = [0, 32], sizes = [2, 16], strides = [1, 1]} : vector<2x48xf32> to vector<2x16xf32>
    %803 = vector.extract_strided_slice %757 {offsets = [0, 32], sizes = [2, 16], strides = [1, 1]} : vector<2x48xf32> to vector<2x16xf32>
    %804 = arith.mulf %793, %803 : vector<2x16xf32>
    %805 = arith.addf %802, %804 : vector<2x16xf32>
    %806 = math.tanh %805 : vector<2x16xf32>
    %cst_150 = arith.constant 1.000000e+00 : f32
    %807 = vector.broadcast %cst_150 : f32 to vector<2x16xf32>
    %808 = arith.subf %807, %801 : vector<2x16xf32>
    %809 = arith.mulf %808, %806 : vector<2x16xf32>
    %810 = arith.mulf %801, %753 : vector<2x16xf32>
    %811 = arith.addf %809, %810 : vector<2x16xf32>
    %cst_151 = arith.constant dense<0.000000e+00> : vector<2x48xf32>
    %812 = tpu.matmul %784, %13, %cst_151 {dimension_numbers = #tpu.dot_dimension_numbers<[1], [0], [0], [1], [0, 0, 1, 1], [], []>} : vector<2x16xf32>, vector<16x48xf32>, vector<2x48xf32> -> vector<2x48xf32>
    %813 = arith.addf %812, %633 : vector<2x48xf32>
    %cst_152 = arith.constant dense<0.000000e+00> : vector<2x48xf32>
    %814 = tpu.matmul %811, %14, %cst_152 {dimension_numbers = #tpu.dot_dimension_numbers<[1], [0], [0], [1], [0, 0, 1, 1], [], []>} : vector<2x16xf32>, vector<16x48xf32>, vector<2x48xf32> -> vector<2x48xf32>
    %815 = arith.addf %814, %635 : vector<2x48xf32>
    %816 = vector.extract_strided_slice %631 {offsets = [6, 0], sizes = [2, 48], strides = [1, 1]} : vector<8x96xf32> to vector<2x48xf32>
    %817 = vector.extract_strided_slice %816 {offsets = [0, 0], sizes = [2, 16], strides = [1, 1]} : vector<2x48xf32> to vector<2x16xf32>
    %818 = vector.extract_strided_slice %813 {offsets = [0, 0], sizes = [2, 16], strides = [1, 1]} : vector<2x48xf32> to vector<2x16xf32>
    %819 = arith.addf %817, %818 : vector<2x16xf32>
    %820 = arith.negf %819 : vector<2x16xf32>
    %821 = math.exp %820 : vector<2x16xf32>
    %cst_153 = arith.constant 1.000000e+00 : f32
    %822 = vector.broadcast %cst_153 : f32 to vector<2x16xf32>
    %823 = arith.addf %822, %821 : vector<2x16xf32>
    %824 = arith.divf %822, %823 : vector<2x16xf32>
    %825 = vector.extract_strided_slice %816 {offsets = [0, 16], sizes = [2, 16], strides = [1, 1]} : vector<2x48xf32> to vector<2x16xf32>
    %826 = vector.extract_strided_slice %813 {offsets = [0, 16], sizes = [2, 16], strides = [1, 1]} : vector<2x48xf32> to vector<2x16xf32>
    %827 = arith.addf %825, %826 : vector<2x16xf32>
    %828 = arith.negf %827 : vector<2x16xf32>
    %829 = math.exp %828 : vector<2x16xf32>
    %cst_154 = arith.constant 1.000000e+00 : f32
    %830 = vector.broadcast %cst_154 : f32 to vector<2x16xf32>
    %831 = arith.addf %830, %829 : vector<2x16xf32>
    %832 = arith.divf %830, %831 : vector<2x16xf32>
    %833 = vector.extract_strided_slice %816 {offsets = [0, 32], sizes = [2, 16], strides = [1, 1]} : vector<2x48xf32> to vector<2x16xf32>
    %834 = vector.extract_strided_slice %813 {offsets = [0, 32], sizes = [2, 16], strides = [1, 1]} : vector<2x48xf32> to vector<2x16xf32>
    %835 = arith.mulf %824, %834 : vector<2x16xf32>
    %836 = arith.addf %833, %835 : vector<2x16xf32>
    %837 = math.tanh %836 : vector<2x16xf32>
    %cst_155 = arith.constant 1.000000e+00 : f32
    %838 = vector.broadcast %cst_155 : f32 to vector<2x16xf32>
    %839 = arith.subf %838, %832 : vector<2x16xf32>
    %840 = arith.mulf %839, %837 : vector<2x16xf32>
    %841 = arith.mulf %832, %784 : vector<2x16xf32>
    %842 = arith.addf %840, %841 : vector<2x16xf32>
    %843 = vector.extract_strided_slice %631 {offsets = [0, 48], sizes = [2, 48], strides = [1, 1]} : vector<8x96xf32> to vector<2x48xf32>
    %844 = vector.extract_strided_slice %843 {offsets = [0, 0], sizes = [2, 16], strides = [1, 1]} : vector<2x48xf32> to vector<2x16xf32>
    %845 = vector.extract_strided_slice %815 {offsets = [0, 0], sizes = [2, 16], strides = [1, 1]} : vector<2x48xf32> to vector<2x16xf32>
    %846 = arith.addf %844, %845 : vector<2x16xf32>
    %847 = arith.negf %846 : vector<2x16xf32>
    %848 = math.exp %847 : vector<2x16xf32>
    %cst_156 = arith.constant 1.000000e+00 : f32
    %849 = vector.broadcast %cst_156 : f32 to vector<2x16xf32>
    %850 = arith.addf %849, %848 : vector<2x16xf32>
    %851 = arith.divf %849, %850 : vector<2x16xf32>
    %852 = vector.extract_strided_slice %843 {offsets = [0, 16], sizes = [2, 16], strides = [1, 1]} : vector<2x48xf32> to vector<2x16xf32>
    %853 = vector.extract_strided_slice %815 {offsets = [0, 16], sizes = [2, 16], strides = [1, 1]} : vector<2x48xf32> to vector<2x16xf32>
    %854 = arith.addf %852, %853 : vector<2x16xf32>
    %855 = arith.negf %854 : vector<2x16xf32>
    %856 = math.exp %855 : vector<2x16xf32>
    %cst_157 = arith.constant 1.000000e+00 : f32
    %857 = vector.broadcast %cst_157 : f32 to vector<2x16xf32>
    %858 = arith.addf %857, %856 : vector<2x16xf32>
    %859 = arith.divf %857, %858 : vector<2x16xf32>
    %860 = vector.extract_strided_slice %843 {offsets = [0, 32], sizes = [2, 16], strides = [1, 1]} : vector<2x48xf32> to vector<2x16xf32>
    %861 = vector.extract_strided_slice %815 {offsets = [0, 32], sizes = [2, 16], strides = [1, 1]} : vector<2x48xf32> to vector<2x16xf32>
    %862 = arith.mulf %851, %861 : vector<2x16xf32>
    %863 = arith.addf %860, %862 : vector<2x16xf32>
    %864 = math.tanh %863 : vector<2x16xf32>
    %cst_158 = arith.constant 1.000000e+00 : f32
    %865 = vector.broadcast %cst_158 : f32 to vector<2x16xf32>
    %866 = arith.subf %865, %859 : vector<2x16xf32>
    %867 = arith.mulf %866, %864 : vector<2x16xf32>
    %868 = arith.mulf %859, %811 : vector<2x16xf32>
    %869 = arith.addf %867, %868 : vector<2x16xf32>
    %870 = tpu.concatenate %668, %869 in 1 : vector<2x16xf32>, vector<2x16xf32> -> vector<2x32xf32>
    %871 = tpu.concatenate %726, %811 in 1 : vector<2x16xf32>, vector<2x16xf32> -> vector<2x32xf32>
    %872 = tpu.concatenate %784, %753 in 1 : vector<2x16xf32>, vector<2x16xf32> -> vector<2x32xf32>
    %873 = tpu.concatenate %842, %695 in 1 : vector<2x16xf32>, vector<2x16xf32> -> vector<2x32xf32>
    %874 = tpu.concatenate %870, %871, %872, %873 in 0 : vector<2x32xf32>, vector<2x32xf32>, vector<2x32xf32>, vector<2x32xf32> -> vector<8x32xf32>
    %cst_159 = arith.constant dense<0.000000e+00> : vector<8x32xf32>
    %875 = tpu.matmul %874, %18, %cst_159 {dimension_numbers = #tpu.dot_dimension_numbers<[1], [0], [0], [1], [0, 0, 1, 1], [], []>} : vector<8x32xf32>, vector<32x32xf32>, vector<8x32xf32> -> vector<8x32xf32>
    %876 = vector.broadcast %19 : vector<1x32xf32> to vector<8x32xf32>
    %877 = arith.addf %875, %876 : vector<8x32xf32>
    %878 = math.tanh %877 : vector<8x32xf32>
    %879 = vector.extract_strided_slice %878 {offsets = [0, 0], sizes = [2, 32], strides = [1, 1]} : vector<8x32xf32> to vector<2x32xf32>
    %880 = vector.broadcast %20 : vector<1x32xf32> to vector<2x32xf32>
    %881 = arith.mulf %879, %880 : vector<2x32xf32>
    %cst_160 = arith.constant dense<0.000000e+00> : vector<2xf32>
    %882 = vector.multi_reduction <add>, %881, %cst_160 [1] : vector<2x32xf32> to vector<2xf32>
    %883 = vector.shape_cast %882 : vector<2xf32> to vector<2x1xf32>
    %884 = vector.extract_strided_slice %878 {offsets = [2, 0], sizes = [2, 32], strides = [1, 1]} : vector<8x32xf32> to vector<2x32xf32>
    %885 = vector.broadcast %20 : vector<1x32xf32> to vector<2x32xf32>
    %886 = arith.mulf %884, %885 : vector<2x32xf32>
    %cst_161 = arith.constant dense<0.000000e+00> : vector<2xf32>
    %887 = vector.multi_reduction <add>, %886, %cst_161 [1] : vector<2x32xf32> to vector<2xf32>
    %888 = vector.shape_cast %887 : vector<2xf32> to vector<2x1xf32>
    %889 = vector.extract_strided_slice %878 {offsets = [4, 0], sizes = [2, 32], strides = [1, 1]} : vector<8x32xf32> to vector<2x32xf32>
    %890 = vector.broadcast %20 : vector<1x32xf32> to vector<2x32xf32>
    %891 = arith.mulf %889, %890 : vector<2x32xf32>
    %cst_162 = arith.constant dense<0.000000e+00> : vector<2xf32>
    %892 = vector.multi_reduction <add>, %891, %cst_162 [1] : vector<2x32xf32> to vector<2xf32>
    %893 = vector.shape_cast %892 : vector<2xf32> to vector<2x1xf32>
    %894 = vector.extract_strided_slice %878 {offsets = [6, 0], sizes = [2, 32], strides = [1, 1]} : vector<8x32xf32> to vector<2x32xf32>
    %895 = vector.broadcast %20 : vector<1x32xf32> to vector<2x32xf32>
    %896 = arith.mulf %894, %895 : vector<2x32xf32>
    %cst_163 = arith.constant dense<0.000000e+00> : vector<2xf32>
    %897 = vector.multi_reduction <add>, %896, %cst_163 [1] : vector<2x32xf32> to vector<2xf32>
    %898 = vector.shape_cast %897 : vector<2xf32> to vector<2x1xf32>
    %899 = tpu.concatenate %883, %888, %893, %898 in 1 : vector<2x1xf32>, vector<2x1xf32>, vector<2x1xf32>, vector<2x1xf32> -> vector<2x4xf32>
    %cst_164 = arith.constant dense<0xFF800000> : vector<2xf32>
    %900 = vector.multi_reduction <maximumf>, %899, %cst_164 [1] : vector<2x4xf32> to vector<2xf32>
    %901 = vector.shape_cast %900 : vector<2xf32> to vector<2x1xf32>
    %902 = vector.broadcast %901 : vector<2x1xf32> to vector<2x4xf32>
    %903 = arith.subf %899, %902 : vector<2x4xf32>
    %904 = math.exp %903 : vector<2x4xf32>
    %cst_165 = arith.constant dense<0.000000e+00> : vector<2xf32>
    %905 = vector.multi_reduction <add>, %904, %cst_165 [1] : vector<2x4xf32> to vector<2xf32>
    %906 = vector.shape_cast %905 : vector<2xf32> to vector<2x1xf32>
    %907 = vector.broadcast %906 : vector<2x1xf32> to vector<2x4xf32>
    %908 = arith.divf %904, %907 : vector<2x4xf32>
    %909 = arith.mulf %908, %2 : vector<2x4xf32>
    %cst_166 = arith.constant dense<0.000000e+00> : vector<2xf32>
    %910 = vector.multi_reduction <add>, %909, %cst_166 [1] : vector<2x4xf32> to vector<2xf32>
    %911 = vector.shape_cast %910 : vector<2xf32> to vector<2x1xf32>
    %cst_167 = arith.constant 9.99999974E-5 : f32
    %912 = vector.broadcast %cst_167 : f32 to vector<2x1xf32>
    %913 = arith.addf %911, %912 : vector<2x1xf32>
    %914 = vector.broadcast %913 : vector<2x1xf32> to vector<2x4xf32>
    %915 = arith.divf %909, %914 : vector<2x4xf32>
    %916 = vector.extract_strided_slice %915 {offsets = [0, 0], sizes = [2, 1], strides = [1, 1]} : vector<2x4xf32> to vector<2x1xf32>
    %917 = vector.broadcast %916 : vector<2x1xf32> to vector<2x16xf32>
    %918 = arith.mulf %917, %668 : vector<2x16xf32>
    %919 = vector.extract_strided_slice %915 {offsets = [0, 0], sizes = [2, 1], strides = [1, 1]} : vector<2x4xf32> to vector<2x1xf32>
    %920 = vector.broadcast %919 : vector<2x1xf32> to vector<2x16xf32>
    %921 = arith.mulf %920, %869 : vector<2x16xf32>
    %922 = vector.extract_strided_slice %915 {offsets = [0, 1], sizes = [2, 1], strides = [1, 1]} : vector<2x4xf32> to vector<2x1xf32>
    %923 = vector.broadcast %922 : vector<2x1xf32> to vector<2x16xf32>
    %924 = arith.mulf %923, %726 : vector<2x16xf32>
    %925 = arith.addf %918, %924 : vector<2x16xf32>
    %926 = vector.extract_strided_slice %915 {offsets = [0, 1], sizes = [2, 1], strides = [1, 1]} : vector<2x4xf32> to vector<2x1xf32>
    %927 = vector.broadcast %926 : vector<2x1xf32> to vector<2x16xf32>
    %928 = arith.mulf %927, %811 : vector<2x16xf32>
    %929 = arith.addf %921, %928 : vector<2x16xf32>
    %930 = vector.extract_strided_slice %915 {offsets = [0, 2], sizes = [2, 1], strides = [1, 1]} : vector<2x4xf32> to vector<2x1xf32>
    %931 = vector.broadcast %930 : vector<2x1xf32> to vector<2x16xf32>
    %932 = arith.mulf %931, %784 : vector<2x16xf32>
    %933 = arith.addf %925, %932 : vector<2x16xf32>
    %934 = vector.extract_strided_slice %915 {offsets = [0, 2], sizes = [2, 1], strides = [1, 1]} : vector<2x4xf32> to vector<2x1xf32>
    %935 = vector.broadcast %934 : vector<2x1xf32> to vector<2x16xf32>
    %936 = arith.mulf %935, %753 : vector<2x16xf32>
    %937 = arith.addf %929, %936 : vector<2x16xf32>
    %938 = vector.extract_strided_slice %915 {offsets = [0, 3], sizes = [2, 1], strides = [1, 1]} : vector<2x4xf32> to vector<2x1xf32>
    %939 = vector.broadcast %938 : vector<2x1xf32> to vector<2x16xf32>
    %940 = arith.mulf %939, %842 : vector<2x16xf32>
    %941 = arith.addf %933, %940 : vector<2x16xf32>
    %942 = vector.extract_strided_slice %915 {offsets = [0, 3], sizes = [2, 1], strides = [1, 1]} : vector<2x4xf32> to vector<2x1xf32>
    %943 = vector.broadcast %942 : vector<2x1xf32> to vector<2x16xf32>
    %944 = arith.mulf %943, %695 : vector<2x16xf32>
    %945 = arith.addf %937, %944 : vector<2x16xf32>
    %946 = tpu.concatenate %941, %945 in 1 : vector<2x16xf32>, vector<2x16xf32> -> vector<2x32xf32>
    %cst_168 = arith.constant dense<0.000000e+00> : vector<2x128xf32>
    %947 = tpu.matmul %946, %21, %cst_168 {dimension_numbers = #tpu.dot_dimension_numbers<[1], [0], [0], [1], [0, 0, 1, 1], [], []>} : vector<2x32xf32>, vector<32x128xf32>, vector<2x128xf32> -> vector<2x128xf32>
    %948 = vector.broadcast %22 : vector<1x128xf32> to vector<2x128xf32>
    %949 = arith.addf %947, %948 : vector<2x128xf32>
    %c0_169 = arith.constant 0 : index
    %c0_170 = arith.constant 0 : index
    %950 = vector.load %arg23[%c0_169, %c0_170] : memref<2x128xf32, #tpu.memory_space<vmem>>, vector<2x128xf32>
    tpu.vector_store %arg23[%c0_169, %c0_170], %949 {strides = array<i32>} : memref<2x128xf32, #tpu.memory_space<vmem>>, vector<2x128xf32>,
    return
  }
}

</mosaic_0001>

<llo_original>
// kernel: han_forward.1
$region0: #{han_forward.1}
  #allocation0 [shape = 'u32[]', space=smem, size = 0x4, offset = 0x4, fixed_abs, tag = 'smem constant byte address 0x4 - core index']
  #allocation1 [shape = 'u32[144,128]{1,0:T(1,128)}', space=vmem, size = 0x12000, scoped, tag = 'internal scratch']
  %s0 = inlined_call_operand.vmem [shape: f32[64,32], index: 0, kind: input, shape index: {}]
  %s1 = inlined_call_operand.vmem [shape: f32[8,8], index: 1, kind: input, shape index: {}]
  %s2 = inlined_call_operand.vmem [shape: f32[2,4], index: 2, kind: input, shape index: {}]
  %s3 = inlined_call_operand.vmem [shape: f32[32,96], index: 3, kind: input, shape index: {}]
  %s4 = inlined_call_operand.vmem [shape: f32[16,48], index: 4, kind: input, shape index: {}]
  %s5 = inlined_call_operand.vmem [shape: f32[16,48], index: 5, kind: input, shape index: {}]
  %s6 = inlined_call_operand.vmem [shape: f32[1,96], index: 6, kind: input, shape index: {}]
  %s7 = inlined_call_operand.vmem [shape: f32[1,48], index: 7, kind: input, shape index: {}]
  %s8 = inlined_call_operand.vmem [shape: f32[1,48], index: 8, kind: input, shape index: {}]
  %s9 = inlined_call_operand.vmem [shape: f32[32,32], index: 9, kind: input, shape index: {}]
  %s10 = inlined_call_operand.vmem [shape: f32[1,32], index: 10, kind: input, shape index: {}]
  %s11 = inlined_call_operand.vmem [shape: f32[1,32], index: 11, kind: input, shape index: {}]
  %s12 = inlined_call_operand.vmem [shape: f32[32,96], index: 12, kind: input, shape index: {}]
  %s13 = inlined_call_operand.vmem [shape: f32[16,48], index: 13, kind: input, shape index: {}]
  %s14 = inlined_call_operand.vmem [shape: f32[16,48], index: 14, kind: input, shape index: {}]
  %s15 = inlined_call_operand.vmem [shape: f32[1,96], index: 15, kind: input, shape index: {}]
  %s16 = inlined_call_operand.vmem [shape: f32[1,48], index: 16, kind: input, shape index: {}]
  %s17 = inlined_call_operand.vmem [shape: f32[1,48], index: 17, kind: input, shape index: {}]
  %s18 = inlined_call_operand.vmem [shape: f32[32,32], index: 18, kind: input, shape index: {}]
  %s19 = inlined_call_operand.vmem [shape: f32[1,32], index: 19, kind: input, shape index: {}]
  %s20 = inlined_call_operand.vmem [shape: f32[1,32], index: 20, kind: input, shape index: {}]
  %s21 = inlined_call_operand.vmem [shape: f32[32,128], index: 21, kind: input, shape index: {}]
  %s22 = inlined_call_operand.vmem [shape: f32[1,128], index: 22, kind: input, shape index: {}]
  %s23 = inlined_call_operand.hbm [shape: f32[2,128], index: 23, kind: output, shape index: {}]
  %s24 = sld [smem:[#allocation0]]
  $region102: #{han_forward.1} parent=0
    _
  %s26 = ssub.s32 1, %s24
  %s27 = scalar_select 0, %s26, %s24
  $region1: #{han_forward.1} parent=0
    #allocation2 [shape = 'u8[1024]{0}', space=vmem, size = 0x400, scoped, tag = 'output window, operand 0, single buffered']
    #allocation3 [shape = 's32[1]{0}', space=sflag, size = 0x4, scoped, tag = 'scoped memory for han_forward.1']
    %28 = vsyncpa [#allocation3], 0
    // Predicated region
    $region2: #{han_forward.1} parent=1 // pred_check
      _
    $region3: #{han_forward.1} parent=1 // pred_check_branch
      %30 = sbr.rel (0) target = $region5
    $region4: #{han_forward.1} parent=1 // pred_region
      _
    $region5: #{han_forward.1} parent=1 // pred_fallthru
      _
    // Predicated region
    $region6: #{han_forward.1} parent=1 // pred_check
      _
    $region7: #{han_forward.1} parent=1 // pred_check_branch
      %32 = sbr.rel (0) target = $region9
    $region8: #{han_forward.1} parent=1 // pred_region
      _
    $region9: #{han_forward.1} parent=1 // pred_fallthru
      _
    // Predicated region
    $region10: #{han_forward.1} parent=1 // pred_check
      _
    $region11: #{han_forward.1} parent=1 // pred_check_branch
      %34 = sbr.rel (0) target = $region13
    $region12: #{han_forward.1} parent=1 // pred_region
      _
    $region13: #{han_forward.1} parent=1 // pred_fallthru
      _
    // Predicated region
    $region14: #{han_forward.1} parent=1 // pred_check
      _
    $region15: #{han_forward.1} parent=1 // pred_check_branch
      %36 = sbr.rel (0) target = $region17
    $region16: #{han_forward.1} parent=1 // pred_region
      _
    $region17: #{han_forward.1} parent=1 // pred_fallthru
      _
    // Predicated region
    $region18: #{han_forward.1} parent=1 // pred_check
      _
    $region19: #{han_forward.1} parent=1 // pred_check_branch
      %38 = sbr.rel (0) target = $region21
    $region20: #{han_forward.1} parent=1 // pred_region
      _
    $region21: #{han_forward.1} parent=1 // pred_fallthru
      _
    // Predicated region
    $region22: #{han_forward.1} parent=1 // pred_check
      _
    $region23: #{han_forward.1} parent=1 // pred_check_branch
      %40 = sbr.rel (0) target = $region25
    $region24: #{han_forward.1} parent=1 // pred_region
      _
    $region25: #{han_forward.1} parent=1 // pred_fallthru
      _
    // Predicated region
    $region26: #{han_forward.1} parent=1 // pred_check
      _
    $region27: #{han_forward.1} parent=1 // pred_check_branch
      %42 = sbr.rel (0) target = $region29
    $region28: #{han_forward.1} parent=1 // pred_region
      _
    $region29: #{han_forward.1} parent=1 // pred_fallthru
      _
    // Predicated region
    $region30: #{han_forward.1} parent=1 // pred_check
      _
    $region31: #{han_forward.1} parent=1 // pred_check_branch
      %44 = sbr.rel (0) target = $region33
    $region32: #{han_forward.1} parent=1 // pred_region
      _
    $region33: #{han_forward.1} parent=1 // pred_fallthru
      _
    // Predicated region
    $region34: #{han_forward.1} parent=1 // pred_check
      _
    $region35: #{han_forward.1} parent=1 // pred_check_branch
      %46 = sbr.rel (0) target = $region37
    $region36: #{han_forward.1} parent=1 // pred_region
      _
    $region37: #{han_forward.1} parent=1 // pred_fallthru
      _
    // Predicated region
    $region38: #{han_forward.1} parent=1 // pred_check
      _
    $region39: #{han_forward.1} parent=1 // pred_check_branch
      %48 = sbr.rel (0) target = $region41
    $region40: #{han_forward.1} parent=1 // pred_region
      _
    $region41: #{han_forward.1} parent=1 // pred_fallthru
      _
    // Predicated region
    $region42: #{han_forward.1} parent=1 // pred_check
      _
    $region43: #{han_forward.1} parent=1 // pred_check_branch
      %50 = sbr.rel (0) target = $region45
    $region44: #{han_forward.1} parent=1 // pred_region
      _
    $region45: #{han_forward.1} parent=1 // pred_fallthru
      _
    // Predicated region
    $region46: #{han_forward.1} parent=1 // pred_check
      _
    $region47: #{han_forward.1} parent=1 // pred_check_branch
      %52 = sbr.rel (0) target = $region49
    $region48: #{han_forward.1} parent=1 // pred_region
      _
    $region49: #{han_forward.1} parent=1 // pred_fallthru
      _
    // Predicated region
    $region50: #{han_forward.1} parent=1 // pred_check
      _
    $region51: #{han_forward.1} parent=1 // pred_check_branch
      %54 = sbr.rel (0) target = $region53
    $region52: #{han_forward.1} parent=1 // pred_region
      _
    $region53: #{han_forward.1} parent=1 // pred_fallthru
      _
    // Predicated region
    $region54: #{han_forward.1} parent=1 // pred_check
      _
    $region55: #{han_forward.1} parent=1 // pred_check_branch
      %56 = sbr.rel (0) target = $region57
    $region56: #{han_forward.1} parent=1 // pred_region
      _
    $region57: #{han_forward.1} parent=1 // pred_fallthru
      _
    // Predicated region
    $region58: #{han_forward.1} parent=1 // pred_check
      _
    $region59: #{han_forward.1} parent=1 // pred_check_branch
      %58 = sbr.rel (0) target = $region61
    $region60: #{han_forward.1} parent=1 // pred_region
      _
    $region61: #{han_forward.1} parent=1 // pred_fallthru
      _
    // Predicated region
    $region62: #{han_forward.1} parent=1 // pred_check
      _
    $region63: #{han_forward.1} parent=1 // pred_check_branch
      %60 = sbr.rel (0) target = $region65
    $region64: #{han_forward.1} parent=1 // pred_region
      _
    $region65: #{han_forward.1} parent=1 // pred_fallthru
      _
    // Predicated region
    $region66: #{han_forward.1} parent=1 // pred_check
      _
    $region67: #{han_forward.1} parent=1 // pred_check_branch
      %62 = sbr.rel (0) target = $region69
    $region68: #{han_forward.1} parent=1 // pred_region
      _
    $region69: #{han_forward.1} parent=1 // pred_fallthru
      _
    // Predicated region
    $region70: #{han_forward.1} parent=1 // pred_check
      _
    $region71: #{han_forward.1} parent=1 // pred_check_branch
      %64 = sbr.rel (0) target = $region73
    $region72: #{han_forward.1} parent=1 // pred_region
      _
    $region73: #{han_forward.1} parent=1 // pred_fallthru
      _
    // Predicated region
    $region74: #{han_forward.1} parent=1 // pred_check
      _
    $region75: #{han_forward.1} parent=1 // pred_check_branch
      %66 = sbr.rel (0) target = $region77
    $region76: #{han_forward.1} parent=1 // pred_region
      _
    $region77: #{han_forward.1} parent=1 // pred_fallthru
      _
    // Predicated region
    $region78: #{han_forward.1} parent=1 // pred_check
      _
    $region79: #{han_forward.1} parent=1 // pred_check_branch
      %68 = sbr.rel (0) target = $region81
    $region80: #{han_forward.1} parent=1 // pred_region
      _
    $region81: #{han_forward.1} parent=1 // pred_fallthru
      _
    // Predicated region
    $region82: #{han_forward.1} parent=1 // pred_check
      _
    $region83: #{han_forward.1} parent=1 // pred_check_branch
      %70 = sbr.rel (0) target = $region85
    $region84: #{han_forward.1} parent=1 // pred_region
      _
    $region85: #{han_forward.1} parent=1 // pred_fallthru
      _
    // Predicated region
    $region86: #{han_forward.1} parent=1 // pred_check
      _
    $region87: #{han_forward.1} parent=1 // pred_check_branch
      %72 = sbr.rel (0) target = $region89
    $region88: #{han_forward.1} parent=1 // pred_region
      _
    $region89: #{han_forward.1} parent=1 // pred_fallthru
      _
    // Predicated region
    $region90: #{han_forward.1} parent=1 // pred_check
      _
    $region91: #{han_forward.1} parent=1 // pred_check_branch
      %74 = sbr.rel (0) target = $region93
    $region92: #{han_forward.1} parent=1 // pred_region
      _
    $region93: #{han_forward.1} parent=1 // pred_fallthru
      _
    %v75 = vld [vmem:[%s0] sm:$0xff]
    %v76 = vld [vmem:[%s0 + $0x8] sm:$0xff]
    %v77 = vld [vmem:[%s0 + $0x10] sm:$0xff]
    %v78 = vld [vmem:[%s0 + $0x18] sm:$0xff]
    %v79 = vld [vmem:[%s0 + $0x20] sm:$0xff]
    %v80 = vld [vmem:[%s0 + $0x28] sm:$0xff]
    %v81 = vld [vmem:[%s0 + $0x30] sm:$0xff]
    %v82 = vld [vmem:[%s0 + $0x38] sm:$0xff]
    %v83 = vld [vmem:[%s1] sm:$0xff]
    %v84 = vld [vmem:[%s2] sm:$0x3]
    %v85 = vld [vmem:[%s3] sm:$0xff]
    %v86 = vld [vmem:[%s3 + $0x8] sm:$0xff]
    %v87 = vld [vmem:[%s3 + $0x10] sm:$0xff]
    %v88 = vld [vmem:[%s3 + $0x18] sm:$0xff]
    %v89 = vld [vmem:[%s4] sm:$0xff]
    %v90 = vld [vmem:[%s4 + $0x8] sm:$0xff]
    %v91 = vld [vmem:[%s5] sm:$0xff]
    %v92 = vld [vmem:[%s5 + $0x8] sm:$0xff]
    %v93 = vld [vmem:[%s6] sm:$0x1]
    %v94 = vld [vmem:[%s7] sm:$0x1]
    %v95 = vld [vmem:[%s8] sm:$0x1]
    %v96 = vld [vmem:[%s9] sm:$0xff]
    %v97 = vld [vmem:[%s9 + $0x8] sm:$0xff]
    %v98 = vld [vmem:[%s9 + $0x10] sm:$0xff]
    %v99 = vld [vmem:[%s9 + $0x18] sm:$0xff]
    %v100 = vld [vmem:[%s10] sm:$0x1]
    %v101 = vld [vmem:[%s11] sm:$0x1]
    %v102 = vld [vmem:[%s12] sm:$0xff]
    %v103 = vld [vmem:[%s12 + $0x8] sm:$0xff]
    %v104 = vld [vmem:[%s12 + $0x10] sm:$0xff]
    %v105 = vld [vmem:[%s12 + $0x18] sm:$0xff]
    %v106 = vld [vmem:[%s13] sm:$0xff]
    %v107 = vld [vmem:[%s13 + $0x8] sm:$0xff]
    %v108 = vld [vmem:[%s14] sm:$0xff]
    %v109 = vld [vmem:[%s14 + $0x8] sm:$0xff]
    %v110 = vld [vmem:[%s15] sm:$0x1]
    %v111 = vld [vmem:[%s16] sm:$0x1]
    %v112 = vld [vmem:[%s17] sm:$0x1]
    %v113 = vld [vmem:[%s18] sm:$0xff]
    %v114 = vld [vmem:[%s18 + $0x8] sm:$0xff]
    %v115 = vld [vmem:[%s18 + $0x10] sm:$0xff]
    %v116 = vld [vmem:[%s18 + $0x18] sm:$0xff]
    %v117 = vld [vmem:[%s19] sm:$0x1]
    %v118 = vld [vmem:[%s20] sm:$0x1]
    %v119 = vld [vmem:[%s21] sm:$0xff]
    %v120 = vld [vmem:[%s21 + $0x8] sm:$0xff]
    %v121 = vld [vmem:[%s21 + $0x10] sm:$0xff]
    %v122 = vld [vmem:[%s21 + $0x18] sm:$0xff]
    %v123 = vld [vmem:[%s22] sm:$0x1]
    %v125 = vlaneseq
    %v126 = vshrl.u32 %v125, 7
    %v127 = vsub.s32 0, %v126
    %v128 = vrot.slane %v93, %v127
    %vm130 = vcmask 261120
    %v132 = vsel %vm130, %v75, 0
    %v135 = vsel %vm130, %v76, 0
    %v138 = vsel %vm130, %v77, 0
    %v141 = vsel %vm130, %v78, 0
    %v144 = vsel %vm130, %v79, 0
    %v147 = vsel %vm130, %v80, 0
    %v150 = vsel %vm130, %v81, 0
    %v153 = vsel %vm130, %v82, 0
    %155 = vmatprep.subr.mxu0 0.0
    %156 = vmatpush1.msra.mxu0 0.0
    %157 = vmatprep.subr.mxu0 0.0
    %158 = vmatpush1.msra.mxu0 0.0
    %159 = vmatprep.subr.mxu0 0.0
    %160 = vmatpush1.msra.mxu0 0.0
    %161 = vmatprep.subr.mxu0 0.0
    %162 = vmatpush1.msra.mxu0 0.0
    %163 = vmatprep.subr.mxu0 0.0
    %164 = vmatpush1.msra.mxu0 0.0
    %165 = vmatprep.subr.mxu0 0.0
    %166 = vmatpush1.msra.mxu0 0.0
    %167 = vmatprep.subr.mxu0 0.0
    %168 = vmatpush1.msra.mxu0 0.0
    %169 = vmatprep.subr.mxu0 0.0
    %170 = vmatpush1.msra.mxu0 0.0
    %171 = vmatprep.subr.mxu0 0.0
    %172 = vmatpush1.msra.mxu0 0.0
    %173 = vmatprep.subr.mxu0 0.0
    %174 = vmatpush1.msra.mxu0 0.0
    %175 = vmatprep.subr.mxu0 0.0
    %176 = vmatpush1.msra.mxu0 0.0
    %177 = vmatprep.subr.mxu0 0.0
    %178 = vmatpush1.msra.mxu0 0.0
    %179 = vmatprep.subr.mxu0 0.0
    %180 = vmatpush1.msra.mxu0 %v88
    %181 = vmatprep.subr.mxu0 0.0
    %182 = vmatpush1.msra.mxu0 %v87
    %183 = vmatprep.subr.mxu0 0.0
    %184 = vmatpush1.msra.mxu0 %v86
    %185 = vmatprep.subr.mxu0 0.0
    %186 = vmatpush1.msra.mxu0 %v85
    %187 = vmatprep.subr.mxu0 0.0
    %188 = vmatpush2.msra.mxu0 0.0
    %189 = vmatprep.subr.mxu0 0.0
    %190 = vmatpush2.msra.mxu0 0.0
    %191 = vmatprep.subr.mxu0 0.0
    %192 = vmatpush2.msra.mxu0 0.0
    %193 = vmatprep.subr.mxu0 0.0
    %194 = vmatpush2.msra.mxu0 0.0
    %195 = vmatprep.subr.mxu0 0.0
    %196 = vmatpush2.msra.mxu0 0.0
    %197 = vmatprep.subr.mxu0 0.0
    %198 = vmatpush2.msra.mxu0 0.0
    %199 = vmatprep.subr.mxu0 0.0
    %200 = vmatpush2.msra.mxu0 0.0
    %201 = vmatprep.subr.mxu0 0.0
    %202 = vmatpush2.msra.mxu0 0.0
    %203 = vmatprep.subr.mxu0 0.0
    %204 = vmatpush2.msra.mxu0 0.0
    %205 = vmatprep.subr.mxu0 0.0
    %206 = vmatpush2.msra.mxu0 0.0
    %207 = vmatprep.subr.mxu0 0.0
    %208 = vmatpush2.msra.mxu0 0.0
    %209 = vmatprep.subr.mxu0 0.0
    %210 = vmatpush2.msra.mxu0 0.0
    %211 = vmatprep.subr.mxu0 0.0
    %212 = vmatpush2.msra.mxu0 0.0
    %213 = vmatprep.subr.mxu0 0.0
    %214 = vmatpush2.msra.mxu0 0.0
    %215 = vmatprep.subr.mxu0 0.0
    %216 = vmatpush2.msra.mxu0 0.0
    %217 = vmatprep.subr.mxu0 0.0
    %218 = vmatpush2.msra.mxu0 0.0
    %219 = vmatprep.mubr.f32.mxu0 0.0
    %220 = vmatmul.mubr.f32.gmra.mxu0 %v132
    %v221 = vpop.f32.mrf.mxu0
    %v222 = vadd.f32 %v128, %v221
    %v223 = vpop.f32.mrf.mxu0
    %224 = vmatprep.mubr.f32.mxu0 0.0
    %225 = vmatmul.mubr.f32.gmra.mxu0 %v135
    %v226 = vpop.f32.mrf.mxu0
    %v227 = vadd.f32 %v128, %v226
    %v228 = vpop.f32.mrf.mxu0
    %229 = vmatprep.mubr.f32.mxu0 0.0
    %230 = vmatmul.mubr.f32.gmra.mxu0 %v138
    %v231 = vpop.f32.mrf.mxu0
    %v232 = vadd.f32 %v128, %v231
    %v233 = vpop.f32.mrf.mxu0
    %234 = vmatprep.mubr.f32.mxu0 0.0
    %235 = vmatmul.mubr.f32.gmra.mxu0 %v141
    %v236 = vpop.f32.mrf.mxu0
    %v237 = vadd.f32 %v128, %v236
    %v238 = vpop.f32.mrf.mxu0
    %239 = vmatprep.mubr.f32.mxu0 0.0
    %240 = vmatmul.mubr.f32.gmra.mxu0 %v144
    %v241 = vpop.f32.mrf.mxu0
    %v242 = vadd.f32 %v128, %v241
    %v243 = vpop.f32.mrf.mxu0
    %244 = vmatprep.mubr.f32.mxu0 0.0
    %245 = vmatmul.mubr.f32.gmra.mxu0 %v147
    %v246 = vpop.f32.mrf.mxu0
    %v247 = vadd.f32 %v128, %v246
    %v248 = vpop.f32.mrf.mxu0
    %249 = vmatprep.mubr.f32.mxu0 0.0
    %250 = vmatmul.mubr.f32.gmra.mxu0 %v150
    %v251 = vpop.f32.mrf.mxu0
    %v252 = vadd.f32 %v128, %v251
    %v253 = vpop.f32.mrf.mxu0
    %254 = vmatprep.mubr.f32.mxu0 0.0
    %255 = vmatmul.mubr.f32.gmra.mxu0 %v153
    %v256 = vpop.f32.mrf.mxu0
    %v257 = vadd.f32 %v128, %v256
    %v258 = vpop.f32.mrf.mxu0
    %259 = vdwg.mxu0
    %v261 = vlaneseq
    %v262 = vshrl.u32 %v261, 7
    %v263 = vsub.s32 0, %v262
    %v264 = vrot.slane %v94, %v263
    %v267 = vlaneseq
    %v268 = vshrl.u32 %v267, 7
    %v269 = vsub.s32 0, %v268
    %v270 = vrot.slane %v95, %v269
    %vm272 = vcmask 130048
    %v274 = vsel %vm272, 0.0, 0
    %276 = vmatprep.subr.mxu0 0.0
    %277 = vmatpush1.msra.mxu0 0.0
    %278 = vmatprep.subr.mxu0 0.0
    %279 = vmatpush1.msra.mxu0 0.0
    %280 = vmatprep.subr.mxu0 0.0
    %281 = vmatpush1.msra.mxu0 0.0
    %282 = vmatprep.subr.mxu0 0.0
    %283 = vmatpush1.msra.mxu0 0.0
    %284 = vmatprep.subr.mxu0 0.0
    %285 = vmatpush1.msra.mxu0 0.0
    %286 = vmatprep.subr.mxu0 0.0
    %287 = vmatpush1.msra.mxu0 0.0
    %288 = vmatprep.subr.mxu0 0.0
    %289 = vmatpush1.msra.mxu0 0.0
    %290 = vmatprep.subr.mxu0 0.0
    %291 = vmatpush1.msra.mxu0 0.0
    %292 = vmatprep.subr.mxu0 0.0
    %293 = vmatpush1.msra.mxu0 0.0
    %294 = vmatprep.subr.mxu0 0.0
    %295 = vmatpush1.msra.mxu0 0.0
    %296 = vmatprep.subr.mxu0 0.0
    %297 = vmatpush1.msra.mxu0 0.0
    %298 = vmatprep.subr.mxu0 0.0
    %299 = vmatpush1.msra.mxu0 0.0
    %300 = vmatprep.subr.mxu0 0.0
    %301 = vmatpush1.msra.mxu0 0.0
    %302 = vmatprep.subr.mxu0 0.0
    %303 = vmatpush1.msra.mxu0 0.0
    %304 = vmatprep.subr.mxu0 0.0
    %305 = vmatpush1.msra.mxu0 %v90
    %306 = vmatprep.subr.mxu0 0.0
    %307 = vmatpush1.msra.mxu0 %v89
    %308 = vmatprep.subr.mxu0 0.0
    %309 = vmatpush2.msra.mxu0 0.0
    %310 = vmatprep.subr.mxu0 0.0
    %311 = vmatpush2.msra.mxu0 0.0
    %312 = vmatprep.subr.mxu0 0.0
    %313 = vmatpush2.msra.mxu0 0.0
    %314 = vmatprep.subr.mxu0 0.0
    %315 = vmatpush2.msra.mxu0 0.0
    %316 = vmatprep.subr.mxu0 0.0
    %317 = vmatpush2.msra.mxu0 0.0
    %318 = vmatprep.subr.mxu0 0.0
    %319 = vmatpush2.msra.mxu0 0.0
    %320 = vmatprep.subr.mxu0 0.0
    %321 = vmatpush2.msra.mxu0 0.0
    %322 = vmatprep.subr.mxu0 0.0
    %323 = vmatpush2.msra.mxu0 0.0
    %324 = vmatprep.subr.mxu0 0.0
    %325 = vmatpush2.msra.mxu0 0.0
    %326 = vmatprep.subr.mxu0 0.0
    %327 = vmatpush2.msra.mxu0 0.0
    %328 = vmatprep.subr.mxu0 0.0
    %329 = vmatpush2.msra.mxu0 0.0
    %330 = vmatprep.subr.mxu0 0.0
    %331 = vmatpush2.msra.mxu0 0.0
    %332 = vmatprep.subr.mxu0 0.0
    %333 = vmatpush2.msra.mxu0 0.0
    %334 = vmatprep.subr.mxu0 0.0
    %335 = vmatpush2.msra.mxu0 0.0
    %336 = vmatprep.subr.mxu0 0.0
    %337 = vmatpush2.msra.mxu0 0.0
    %338 = vmatprep.subr.mxu0 0.0
    %339 = vmatpush2.msra.mxu0 0.0
    %340 = vmatprep.mubr.f32.mxu0 0.0
    %341 = vmatmul.mubr.f32.gmra.mxu0 %v274
    %v342 = vpop.f32.mrf.mxu0
    %v343 = vadd.f32 %v264, %v342
    %v344 = vpop.f32.mrf.mxu0
    %345 = vdwg.mxu0
    %346 = vmatprep.subr.mxu0 0.0
    %347 = vmatpush1.msra.mxu0 0.0
    %348 = vmatprep.subr.mxu0 0.0
    %349 = vmatpush1.msra.mxu0 0.0
    %350 = vmatprep.subr.mxu0 0.0
    %351 = vmatpush1.msra.mxu0 0.0
    %352 = vmatprep.subr.mxu0 0.0
    %353 = vmatpush1.msra.mxu0 0.0
    %354 = vmatprep.subr.mxu0 0.0
    %355 = vmatpush1.msra.mxu0 0.0
    %356 = vmatprep.subr.mxu0 0.0
    %357 = vmatpush1.msra.mxu0 0.0
    %358 = vmatprep.subr.mxu0 0.0
    %359 = vmatpush1.msra.mxu0 0.0
    %360 = vmatprep.subr.mxu0 0.0
    %361 = vmatpush1.msra.mxu0 0.0
    %362 = vmatprep.subr.mxu0 0.0
    %363 = vmatpush1.msra.mxu0 0.0
    %364 = vmatprep.subr.mxu0 0.0
    %365 = vmatpush1.msra.mxu0 0.0
    %366 = vmatprep.subr.mxu0 0.0
    %367 = vmatpush1.msra.mxu0 0.0
    %368 = vmatprep.subr.mxu0 0.0
    %369 = vmatpush1.msra.mxu0 0.0
    %370 = vmatprep.subr.mxu0 0.0
    %371 = vmatpush1.msra.mxu0 0.0
    %372 = vmatprep.subr.mxu0 0.0
    %373 = vmatpush1.msra.mxu0 0.0
    %374 = vmatprep.subr.mxu0 0.0
    %375 = vmatpush1.msra.mxu0 %v92
    %376 = vmatprep.subr.mxu0 0.0
    %377 = vmatpush1.msra.mxu0 %v91
    %378 = vmatprep.subr.mxu0 0.0
    %379 = vmatpush2.msra.mxu0 0.0
    %380 = vmatprep.subr.mxu0 0.0
    %381 = vmatpush2.msra.mxu0 0.0
    %382 = vmatprep.subr.mxu0 0.0
    %383 = vmatpush2.msra.mxu0 0.0
    %384 = vmatprep.subr.mxu0 0.0
    %385 = vmatpush2.msra.mxu0 0.0
    %386 = vmatprep.subr.mxu0 0.0
    %387 = vmatpush2.msra.mxu0 0.0
    %388 = vmatprep.subr.mxu0 0.0
    %389 = vmatpush2.msra.mxu0 0.0
    %390 = vmatprep.subr.mxu0 0.0
    %391 = vmatpush2.msra.mxu0 0.0
    %392 = vmatprep.subr.mxu0 0.0
    %393 = vmatpush2.msra.mxu0 0.0
    %394 = vmatprep.subr.mxu0 0.0
    %395 = vmatpush2.msra.mxu0 0.0
    %396 = vmatprep.subr.mxu0 0.0
    %397 = vmatpush2.msra.mxu0 0.0
    %398 = vmatprep.subr.mxu0 0.0
    %399 = vmatpush2.msra.mxu0 0.0
    %400 = vmatprep.subr.mxu0 0.0
    %401 = vmatpush2.msra.mxu0 0.0
    %402 = vmatprep.subr.mxu0 0.0
    %403 = vmatpush2.msra.mxu0 0.0
    %404 = vmatprep.subr.mxu0 0.0
    %405 = vmatpush2.msra.mxu0 0.0
    %406 = vmatprep.subr.mxu0 0.0
    %407 = vmatpush2.msra.mxu0 0.0
    %408 = vmatprep.subr.mxu0 0.0
    %409 = vmatpush2.msra.mxu0 0.0
    %410 = vmatprep.mubr.f32.mxu0 0.0
    %411 = vmatmul.mubr.f32.gmra.mxu0 %v274
    %v412 = vpop.f32.mrf.mxu0
    %v413 = vadd.f32 %v270, %v412
    %v414 = vpop.f32.mrf.mxu0
    %415 = vdwg.mxu0
    %v416 = vadd.f32 %v222, %v343
    %v417 = vxor.u32 %v416, 2147483648
    %v418 = vmul.f32 %v417, 1.442695
    %v419 = vpow.pop %v418
    %v420 = vadd.f32 %v419, 1.0
    %v421 = vrcp.pop %v420
    %v422 = vmul.f32 1.0, %v421
    %424 = vrot.lane.b32.xlu0 %v343, 96
    %v425 = vpop.permute.xlu0 %424
    %v427 = vmul.f32 %v422, %v425
    %429 = vrot.lane.b32.xlu0 %v427, 32
    %v430 = vpop.permute.xlu0 %429
    %v432 = vadd.f32 %v222, %v430
    %v433 = vtanh.pop %v432
    %v434 = vsub.f32 1.0, %v422
    %436 = vrot.lane.b32.xlu0 %v433, 112
    %v437 = vpop.permute.xlu0 %436
    %v439 = vmul.f32 %v434, %v437
    %v440 = vmul.f32 %v422, 0.0
    %v441 = vadd.f32 %v439, %v440
    %443 = vrot.lane.b32.xlu0 %v413, 48
    %v444 = vpop.permute.xlu0 %443
    %v446 = vadd.f32 %v257, %v444
    %v447 = vxor.u32 %v446, 2147483648
    %v448 = vmul.f32 %v447, 1.442695
    %v449 = vpow.pop %v448
    %v450 = vadd.f32 %v449, 1.0
    %v451 = vrcp.pop %v450
    %v452 = vmul.f32 1.0, %v451
    %453 = vrot.lane.b32.xlu0 %v413, 16
    %v454 = vpop.permute.xlu0 %453
    %v456 = vmul.f32 %v452, %v454
    %458 = vrot.lane.b32.xlu0 %v456, 32
    %v459 = vpop.permute.xlu0 %458
    %v461 = vadd.f32 %v257, %v459
    %v462 = vtanh.pop %v461
    %v463 = vsub.f32 1.0, %v452
    %465 = vrot.lane.b32.xlu0 %v462, 112
    %v466 = vpop.permute.xlu0 %465
    %v468 = vmul.f32 %v463, %v466
    %v469 = vmul.f32 %v452, 0.0
    %v470 = vadd.f32 %v468, %v469
    %472 = vrot.lane.b32.xlu0 %v441, 112
    %v473 = vpop.permute.xlu0 %472
    %v474 = vsel %vm272, %v473, 0
    %476 = vmatprep.subr.mxu0 0.0
    %477 = vmatpush1.msra.mxu0 0.0
    %478 = vmatprep.subr.mxu0 0.0
    %479 = vmatpush1.msra.mxu0 0.0
    %480 = vmatprep.subr.mxu0 0.0
    %481 = vmatpush1.msra.mxu0 0.0
    %482 = vmatprep.subr.mxu0 0.0
    %483 = vmatpush1.msra.mxu0 0.0
    %484 = vmatprep.subr.mxu0 0.0
    %485 = vmatpush1.msra.mxu0 0.0
    %486 = vmatprep.subr.mxu0 0.0
    %487 = vmatpush1.msra.mxu0 0.0
    %488 = vmatprep.subr.mxu0 0.0
    %489 = vmatpush1.msra.mxu0 0.0
    %490 = vmatprep.subr.mxu0 0.0
    %491 = vmatpush1.msra.mxu0 0.0
    %492 = vmatprep.subr.mxu0 0.0
    %493 = vmatpush1.msra.mxu0 0.0
    %494 = vmatprep.subr.mxu0 0.0
    %495 = vmatpush1.msra.mxu0 0.0
    %496 = vmatprep.subr.mxu0 0.0
    %497 = vmatpush1.msra.mxu0 0.0
    %498 = vmatprep.subr.mxu0 0.0
    %499 = vmatpush1.msra.mxu0 0.0
    %500 = vmatprep.subr.mxu0 0.0
    %501 = vmatpush1.msra.mxu0 0.0
    %502 = vmatprep.subr.mxu0 0.0
    %503 = vmatpush1.msra.mxu0 0.0
    %504 = vmatprep.subr.mxu0 0.0
    %505 = vmatpush1.msra.mxu0 %v90
    %506 = vmatprep.subr.mxu0 0.0
    %507 = vmatpush1.msra.mxu0 %v89
    %508 = vmatprep.subr.mxu0 0.0
    %509 = vmatpush2.msra.mxu0 0.0
    %510 = vmatprep.subr.mxu0 0.0
    %511 = vmatpush2.msra.mxu0 0.0
    %512 = vmatprep.subr.mxu0 0.0
    %513 = vmatpush2.msra.mxu0 0.0
    %514 = vmatprep.subr.mxu0 0.0
    %515 = vmatpush2.msra.mxu0 0.0
    %516 = vmatprep.subr.mxu0 0.0
    %517 = vmatpush2.msra.mxu0 0.0
    %518 = vmatprep.subr.mxu0 0.0
    %519 = vmatpush2.msra.mxu0 0.0
    %520 = vmatprep.subr.mxu0 0.0
    %521 = vmatpush2.msra.mxu0 0.0
    %522 = vmatprep.subr.mxu0 0.0
    %523 = vmatpush2.msra.mxu0 0.0
    %524 = vmatprep.subr.mxu0 0.0
    %525 = vmatpush2.msra.mxu0 0.0
    %526 = vmatprep.subr.mxu0 0.0
    %527 = vmatpush2.msra.mxu0 0.0
    %528 = vmatprep.subr.mxu0 0.0
    %529 = vmatpush2.msra.mxu0 0.0
    %530 = vmatprep.subr.mxu0 0.0
    %531 = vmatpush2.msra.mxu0 0.0
    %532 = vmatprep.subr.mxu0 0.0
    %533 = vmatpush2.msra.mxu0 0.0
    %534 = vmatprep.subr.mxu0 0.0
    %535 = vmatpush2.msra.mxu0 0.0
    %536 = vmatprep.subr.mxu0 0.0
    %537 = vmatpush2.msra.mxu0 0.0
    %538 = vmatprep.subr.mxu0 0.0
    %539 = vmatpush2.msra.mxu0 0.0
    %540 = vmatprep.mubr.f32.mxu0 0.0
    %541 = vmatmul.mubr.f32.gmra.mxu0 %v474
    %v542 = vpop.f32.mrf.mxu0
    %v543 = vadd.f32 %v264, %v542
    %v544 = vpop.f32.mrf.mxu0
    %545 = vdwg.mxu0
    %547 = vrot.lane.b32.xlu0 %v470, 64
    %v548 = vpop.permute.xlu0 %547
    %v549 = vsel %vm272, %v548, 0
    %551 = vmatprep.subr.mxu0 0.0
    %552 = vmatpush1.msra.mxu0 0.0
    %553 = vmatprep.subr.mxu0 0.0
    %554 = vmatpush1.msra.mxu0 0.0
    %555 = vmatprep.subr.mxu0 0.0
    %556 = vmatpush1.msra.mxu0 0.0
    %557 = vmatprep.subr.mxu0 0.0
    %558 = vmatpush1.msra.mxu0 0.0
    %559 = vmatprep.subr.mxu0 0.0
    %560 = vmatpush1.msra.mxu0 0.0
    %561 = vmatprep.subr.mxu0 0.0
    %562 = vmatpush1.msra.mxu0 0.0
    %563 = vmatprep.subr.mxu0 0.0
    %564 = vmatpush1.msra.mxu0 0.0
    %565 = vmatprep.subr.mxu0 0.0
    %566 = vmatpush1.msra.mxu0 0.0
    %567 = vmatprep.subr.mxu0 0.0
    %568 = vmatpush1.msra.mxu0 0.0
    %569 = vmatprep.subr.mxu0 0.0
    %570 = vmatpush1.msra.mxu0 0.0
    %571 = vmatprep.subr.mxu0 0.0
    %572 = vmatpush1.msra.mxu0 0.0
    %573 = vmatprep.subr.mxu0 0.0
    %574 = vmatpush1.msra.mxu0 0.0
    %575 = vmatprep.subr.mxu0 0.0
    %576 = vmatpush1.msra.mxu0 0.0
    %577 = vmatprep.subr.mxu0 0.0
    %578 = vmatpush1.msra.mxu0 0.0
    %579 = vmatprep.subr.mxu0 0.0
    %580 = vmatpush1.msra.mxu0 %v92
    %581 = vmatprep.subr.mxu0 0.0
    %582 = vmatpush1.msra.mxu0 %v91
    %583 = vmatprep.subr.mxu0 0.0
    %584 = vmatpush2.msra.mxu0 0.0
    %585 = vmatprep.subr.mxu0 0.0
    %586 = vmatpush2.msra.mxu0 0.0
    %587 = vmatprep.subr.mxu0 0.0
    %588 = vmatpush2.msra.mxu0 0.0
    %589 = vmatprep.subr.mxu0 0.0
    %590 = vmatpush2.msra.mxu0 0.0
    %591 = vmatprep.subr.mxu0 0.0
    %592 = vmatpush2.msra.mxu0 0.0
    %593 = vmatprep.subr.mxu0 0.0
    %594 = vmatpush2.msra.mxu0 0.0
    %595 = vmatprep.subr.mxu0 0.0
    %596 = vmatpush2.msra.mxu0 0.0
    %597 = vmatprep.subr.mxu0 0.0
    %598 = vmatpush2.msra.mxu0 0.0
    %599 = vmatprep.subr.mxu0 0.0
    %600 = vmatpush2.msra.mxu0 0.0
    %601 = vmatprep.subr.mxu0 0.0
    %602 = vmatpush2.msra.mxu0 0.0
    %603 = vmatprep.subr.mxu0 0.0
    %604 = vmatpush2.msra.mxu0 0.0
    %605 = vmatprep.subr.mxu0 0.0
    %606 = vmatpush2.msra.mxu0 0.0
    %607 = vmatprep.subr.mxu0 0.0
    %608 = vmatpush2.msra.mxu0 0.0
    %609 = vmatprep.subr.mxu0 0.0
    %610 = vmatpush2.msra.mxu0 0.0
    %611 = vmatprep.subr.mxu0 0.0
    %612 = vmatpush2.msra.mxu0 0.0
    %613 = vmatprep.subr.mxu0 0.0
    %614 = vmatpush2.msra.mxu0 0.0
    %615 = vmatprep.mubr.f32.mxu0 0.0
    %616 = vmatmul.mubr.f32.gmra.mxu0 %v549
    %v617 = vpop.f32.mrf.mxu0
    %v618 = vadd.f32 %v270, %v617
    %v619 = vpop.f32.mrf.mxu0
    %620 = vdwg.mxu0
    %v621 = vadd.f32 %v227, %v543
    %v622 = vxor.u32 %v621, 2147483648
    %v623 = vmul.f32 %v622, 1.442695
    %v624 = vpow.pop %v623
    %v625 = vadd.f32 %v624, 1.0
    %v626 = vrcp.pop %v625
    %v627 = vmul.f32 1.0, %v626
    %629 = vrot.lane.b32.xlu0 %v543, 96
    %v630 = vpop.permute.xlu0 %629
    %v632 = vmul.f32 %v627, %v630
    %634 = vrot.lane.b32.xlu0 %v632, 32
    %v635 = vpop.permute.xlu0 %634
    %v637 = vadd.f32 %v227, %v635
    %v638 = vtanh.pop %v637
    %v639 = vsub.f32 1.0, %v627
    %641 = vrot.lane.b32.xlu0 %v638, 112
    %v642 = vpop.permute.xlu0 %641
    %v644 = vmul.f32 %v639, %v642
    %v645 = vmul.f32 %v627, %v441
    %v646 = vadd.f32 %v644, %v645
    %648 = vrot.lane.b32.xlu0 %v618, 48
    %v649 = vpop.permute.xlu0 %648
    %v651 = vadd.f32 %v252, %v649
    %v652 = vxor.u32 %v651, 2147483648
    %v653 = vmul.f32 %v652, 1.442695
    %v654 = vpow.pop %v653
    %v655 = vadd.f32 %v654, 1.0
    %v656 = vrcp.pop %v655
    %v657 = vmul.f32 1.0, %v656
    %658 = vrot.lane.b32.xlu0 %v618, 16
    %v659 = vpop.permute.xlu0 %658
    %v661 = vmul.f32 %v657, %v659
    %663 = vrot.lane.b32.xlu0 %v661, 32
    %v664 = vpop.permute.xlu0 %663
    %v666 = vadd.f32 %v252, %v664
    %v667 = vtanh.pop %v666
    %v668 = vsub.f32 1.0, %v657
    %670 = vrot.lane.b32.xlu0 %v667, 112
    %v671 = vpop.permute.xlu0 %670
    %v673 = vmul.f32 %v668, %v671
    %v674 = vmul.f32 %v657, %v470
    %v675 = vadd.f32 %v673, %v674
    %677 = vrot.lane.b32.xlu0 %v646, 112
    %v678 = vpop.permute.xlu0 %677
    %v679 = vsel %vm272, %v678, 0
    %681 = vmatprep.subr.mxu0 0.0
    %682 = vmatpush1.msra.mxu0 0.0
    %683 = vmatprep.subr.mxu0 0.0
    %684 = vmatpush1.msra.mxu0 0.0
    %685 = vmatprep.subr.mxu0 0.0
    %686 = vmatpush1.msra.mxu0 0.0
    %687 = vmatprep.subr.mxu0 0.0
    %688 = vmatpush1.msra.mxu0 0.0
    %689 = vmatprep.subr.mxu0 0.0
    %690 = vmatpush1.msra.mxu0 0.0
    %691 = vmatprep.subr.mxu0 0.0
    %692 = vmatpush1.msra.mxu0 0.0
    %693 = vmatprep.subr.mxu0 0.0
    %694 = vmatpush1.msra.mxu0 0.0
    %695 = vmatprep.subr.mxu0 0.0
    %696 = vmatpush1.msra.mxu0 0.0
    %697 = vmatprep.subr.mxu0 0.0
    %698 = vmatpush1.msra.mxu0 0.0
    %699 = vmatprep.subr.mxu0 0.0
    %700 = vmatpush1.msra.mxu0 0.0
    %701 = vmatprep.subr.mxu0 0.0
    %702 = vmatpush1.msra.mxu0 0.0
    %703 = vmatprep.subr.mxu0 0.0
    %704 = vmatpush1.msra.mxu0 0.0
    %705 = vmatprep.subr.mxu0 0.0
    %706 = vmatpush1.msra.mxu0 0.0
    %707 = vmatprep.subr.mxu0 0.0
    %708 = vmatpush1.msra.mxu0 0.0
    %709 = vmatprep.subr.mxu0 0.0
    %710 = vmatpush1.msra.mxu0 %v90
    %711 = vmatprep.subr.mxu0 0.0
    %712 = vmatpush1.msra.mxu0 %v89
    %713 = vmatprep.subr.mxu0 0.0
    %714 = vmatpush2.msra.mxu0 0.0
    %715 = vmatprep.subr.mxu0 0.0
    %716 = vmatpush2.msra.mxu0 0.0
    %717 = vmatprep.subr.mxu0 0.0
    %718 = vmatpush2.msra.mxu0 0.0
    %719 = vmatprep.subr.mxu0 0.0
    %720 = vmatpush2.msra.mxu0 0.0
    %721 = vmatprep.subr.mxu0 0.0
    %722 = vmatpush2.msra.mxu0 0.0
    %723 = vmatprep.subr.mxu0 0.0
    %724 = vmatpush2.msra.mxu0 0.0
    %725 = vmatprep.subr.mxu0 0.0
    %726 = vmatpush2.msra.mxu0 0.0
    %727 = vmatprep.subr.mxu0 0.0
    %728 = vmatpush2.msra.mxu0 0.0
    %729 = vmatprep.subr.mxu0 0.0
    %730 = vmatpush2.msra.mxu0 0.0
    %731 = vmatprep.subr.mxu0 0.0
    %732 = vmatpush2.msra.mxu0 0.0
    %733 = vmatprep.subr.mxu0 0.0
    %734 = vmatpush2.msra.mxu0 0.0
    %735 = vmatprep.subr.mxu0 0.0
    %736 = vmatpush2.msra.mxu0 0.0
    %737 = vmatprep.subr.mxu0 0.0
    %738 = vmatpush2.msra.mxu0 0.0
    %739 = vmatprep.subr.mxu0 0.0
    %740 = vmatpush2.msra.mxu0 0.0
    %741 = vmatprep.subr.mxu0 0.0
    %742 = vmatpush2.msra.mxu0 0.0
    %743 = vmatprep.subr.mxu0 0.0
    %744 = vmatpush2.msra.mxu0 0.0
    %745 = vmatprep.mubr.f32.mxu0 0.0
    %746 = vmatmul.mubr.f32.gmra.mxu0 %v679
    %v747 = vpop.f32.mrf.mxu0
    %v748 = vadd.f32 %v264, %v747
    %v749 = vpop.f32.mrf.mxu0
    %750 = vdwg.mxu0
    %752 = vrot.lane.b32.xlu0 %v675, 64
    %v753 = vpop.permute.xlu0 %752
    %v754 = vsel %vm272, %v753, 0
    %756 = vmatprep.subr.mxu0 0.0
    %757 = vmatpush1.msra.mxu0 0.0
    %758 = vmatprep.subr.mxu0 0.0
    %759 = vmatpush1.msra.mxu0 0.0
    %760 = vmatprep.subr.mxu0 0.0
    %761 = vmatpush1.msra.mxu0 0.0
    %762 = vmatprep.subr.mxu0 0.0
    %763 = vmatpush1.msra.mxu0 0.0
    %764 = vmatprep.subr.mxu0 0.0
    %765 = vmatpush1.msra.mxu0 0.0
    %766 = vmatprep.subr.mxu0 0.0
    %767 = vmatpush1.msra.mxu0 0.0
    %768 = vmatprep.subr.mxu0 0.0
    %769 = vmatpush1.msra.mxu0 0.0
    %770 = vmatprep.subr.mxu0 0.0
    %771 = vmatpush1.msra.mxu0 0.0
    %772 = vmatprep.subr.mxu0 0.0
    %773 = vmatpush1.msra.mxu0 0.0
    %774 = vmatprep.subr.mxu0 0.0
    %775 = vmatpush1.msra.mxu0 0.0
    %776 = vmatprep.subr.mxu0 0.0
    %777 = vmatpush1.msra.mxu0 0.0
    %778 = vmatprep.subr.mxu0 0.0
    %779 = vmatpush1.msra.mxu0 0.0
    %780 = vmatprep.subr.mxu0 0.0
    %781 = vmatpush1.msra.mxu0 0.0
    %782 = vmatprep.subr.mxu0 0.0
    %783 = vmatpush1.msra.mxu0 0.0
    %784 = vmatprep.subr.mxu0 0.0
    %785 = vmatpush1.msra.mxu0 %v92
    %786 = vmatprep.subr.mxu0 0.0
    %787 = vmatpush1.msra.mxu0 %v91
    %788 = vmatprep.subr.mxu0 0.0
    %789 = vmatpush2.msra.mxu0 0.0
    %790 = vmatprep.subr.mxu0 0.0
    %791 = vmatpush2.msra.mxu0 0.0
    %792 = vmatprep.subr.mxu0 0.0
    %793 = vmatpush2.msra.mxu0 0.0
    %794 = vmatprep.subr.mxu0 0.0
    %795 = vmatpush2.msra.mxu0 0.0
    %796 = vmatprep.subr.mxu0 0.0
    %797 = vmatpush2.msra.mxu0 0.0
    %798 = vmatprep.subr.mxu0 0.0
    %799 = vmatpush2.msra.mxu0 0.0
    %800 = vmatprep.subr.mxu0 0.0
    %801 = vmatpush2.msra.mxu0 0.0
    %802 = vmatprep.subr.mxu0 0.0
    %803 = vmatpush2.msra.mxu0 0.0
    %804 = vmatprep.subr.mxu0 0.0
    %805 = vmatpush2.msra.mxu0 0.0
    %806 = vmatprep.subr.mxu0 0.0
    %807 = vmatpush2.msra.mxu0 0.0
    %808 = vmatprep.subr.mxu0 0.0
    %809 = vmatpush2.msra.mxu0 0.0
    %810 = vmatprep.subr.mxu0 0.0
    %811 = vmatpush2.msra.mxu0 0.0
    %812 = vmatprep.subr.mxu0 0.0
    %813 = vmatpush2.msra.mxu0 0.0
    %814 = vmatprep.subr.mxu0 0.0
    %815 = vmatpush2.msra.mxu0 0.0
    %816 = vmatprep.subr.mxu0 0.0
    %817 = vmatpush2.msra.mxu0 0.0
    %818 = vmatprep.subr.mxu0 0.0
    %819 = vmatpush2.msra.mxu0 0.0
    %820 = vmatprep.mubr.f32.mxu0 0.0
    %821 = vmatmul.mubr.f32.gmra.mxu0 %v754
    %v822 = vpop.f32.mrf.mxu0
    %v823 = vadd.f32 %v270, %v822
    %v824 = vpop.f32.mrf.mxu0
    %825 = vdwg.mxu0
    %v826 = vadd.f32 %v232, %v748
    %v827 = vxor.u32 %v826, 2147483648
    %v828 = vmul.f32 %v827, 1.442695
    %v829 = vpow.pop %v828
    %v830 = vadd.f32 %v829, 1.0
    %v831 = vrcp.pop %v830
    %v832 = vmul.f32 1.0, %v831
    %834 = vrot.lane.b32.xlu0 %v748, 96
    %v835 = vpop.permute.xlu0 %834
    %v837 = vmul.f32 %v832, %v835
    %839 = vrot.lane.b32.xlu0 %v837, 32
    %v840 = vpop.permute.xlu0 %839
    %v842 = vadd.f32 %v232, %v840
    %v843 = vtanh.pop %v842
    %v844 = vsub.f32 1.0, %v832
    %846 = vrot.lane.b32.xlu0 %v843, 112
    %v847 = vpop.permute.xlu0 %846
    %v849 = vmul.f32 %v844, %v847
    %v850 = vmul.f32 %v832, %v646
    %v851 = vadd.f32 %v849, %v850
    %853 = vrot.lane.b32.xlu0 %v823, 48
    %v854 = vpop.permute.xlu0 %853
    %v856 = vadd.f32 %v247, %v854
    %v857 = vxor.u32 %v856, 2147483648
    %v858 = vmul.f32 %v857, 1.442695
    %v859 = vpow.pop %v858
    %v860 = vadd.f32 %v859, 1.0
    %v861 = vrcp.pop %v860
    %v862 = vmul.f32 1.0, %v861
    %863 = vrot.lane.b32.xlu0 %v823, 16
    %v864 = vpop.permute.xlu0 %863
    %v866 = vmul.f32 %v862, %v864
    %868 = vrot.lane.b32.xlu0 %v866, 32
    %v869 = vpop.permute.xlu0 %868
    %v871 = vadd.f32 %v247, %v869
    %v872 = vtanh.pop %v871
    %v873 = vsub.f32 1.0, %v862
    %875 = vrot.lane.b32.xlu0 %v872, 112
    %v876 = vpop.permute.xlu0 %875
    %v878 = vmul.f32 %v873, %v876
    %v879 = vmul.f32 %v862, %v675
    %v880 = vadd.f32 %v878, %v879
    %882 = vrot.lane.b32.xlu0 %v851, 112
    %v883 = vpop.permute.xlu0 %882
    %v884 = vsel %vm272, %v883, 0
    %886 = vmatprep.subr.mxu0 0.0
    %887 = vmatpush1.msra.mxu0 0.0
    %888 = vmatprep.subr.mxu0 0.0
    %889 = vmatpush1.msra.mxu0 0.0
    %890 = vmatprep.subr.mxu0 0.0
    %891 = vmatpush1.msra.mxu0 0.0
    %892 = vmatprep.subr.mxu0 0.0
    %893 = vmatpush1.msra.mxu0 0.0
    %894 = vmatprep.subr.mxu0 0.0
    %895 = vmatpush1.msra.mxu0 0.0
    %896 = vmatprep.subr.mxu0 0.0
    %897 = vmatpush1.msra.mxu0 0.0
    %898 = vmatprep.subr.mxu0 0.0
    %899 = vmatpush1.msra.mxu0 0.0
    %900 = vmatprep.subr.mxu0 0.0
    %901 = vmatpush1.msra.mxu0 0.0
    %902 = vmatprep.subr.mxu0 0.0
    %903 = vmatpush1.msra.mxu0 0.0
    %904 = vmatprep.subr.mxu0 0.0
    %905 = vmatpush1.msra.mxu0 0.0
    %906 = vmatprep.subr.mxu0 0.0
    %907 = vmatpush1.msra.mxu0 0.0
    %908 = vmatprep.subr.mxu0 0.0
    %909 = vmatpush1.msra.mxu0 0.0
    %910 = vmatprep.subr.mxu0 0.0
    %911 = vmatpush1.msra.mxu0 0.0
    %912 = vmatprep.subr.mxu0 0.0
    %913 = vmatpush1.msra.mxu0 0.0
    %914 = vmatprep.subr.mxu0 0.0
    %915 = vmatpush1.msra.mxu0 %v90
    %916 = vmatprep.subr.mxu0 0.0
    %917 = vmatpush1.msra.mxu0 %v89
    %918 = vmatprep.subr.mxu0 0.0
    %919 = vmatpush2.msra.mxu0 0.0
    %920 = vmatprep.subr.mxu0 0.0
    %921 = vmatpush2.msra.mxu0 0.0
    %922 = vmatprep.subr.mxu0 0.0
    %923 = vmatpush2.msra.mxu0 0.0
    %924 = vmatprep.subr.mxu0 0.0
    %925 = vmatpush2.msra.mxu0 0.0
    %926 = vmatprep.subr.mxu0 0.0
    %927 = vmatpush2.msra.mxu0 0.0
    %928 = vmatprep.subr.mxu0 0.0
    %929 = vmatpush2.msra.mxu0 0.0
    %930 = vmatprep.subr.mxu0 0.0
    %931 = vmatpush2.msra.mxu0 0.0
    %932 = vmatprep.subr.mxu0 0.0
    %933 = vmatpush2.msra.mxu0 0.0
    %934 = vmatprep.subr.mxu0 0.0
    %935 = vmatpush2.msra.mxu0 0.0
    %936 = vmatprep.subr.mxu0 0.0
    %937 = vmatpush2.msra.mxu0 0.0
    %938 = vmatprep.subr.mxu0 0.0
    %939 = vmatpush2.msra.mxu0 0.0
    %940 = vmatprep.subr.mxu0 0.0
    %941 = vmatpush2.msra.mxu0 0.0
    %942 = vmatprep.subr.mxu0 0.0
    %943 = vmatpush2.msra.mxu0 0.0
    %944 = vmatprep.subr.mxu0 0.0
    %945 = vmatpush2.msra.mxu0 0.0
    %946 = vmatprep.subr.mxu0 0.0
    %947 = vmatpush2.msra.mxu0 0.0
    %948 = vmatprep.subr.mxu0 0.0
    %949 = vmatpush2.msra.mxu0 0.0
    %950 = vmatprep.mubr.f32.mxu0 0.0
    %951 = vmatmul.mubr.f32.gmra.mxu0 %v884
    %v952 = vpop.f32.mrf.mxu0
    %v953 = vadd.f32 %v264, %v952
    %v954 = vpop.f32.mrf.mxu0
    %955 = vdwg.mxu0
    %957 = vrot.lane.b32.xlu0 %v880, 64
    %v958 = vpop.permute.xlu0 %957
    %v959 = vsel %vm272, %v958, 0
    %961 = vmatprep.subr.mxu0 0.0
    %962 = vmatpush1.msra.mxu0 0.0
    %963 = vmatprep.subr.mxu0 0.0
    %964 = vmatpush1.msra.mxu0 0.0
    %965 = vmatprep.subr.mxu0 0.0
    %966 = vmatpush1.msra.mxu0 0.0
    %967 = vmatprep.subr.mxu0 0.0
    %968 = vmatpush1.msra.mxu0 0.0
    %969 = vmatprep.subr.mxu0 0.0
    %970 = vmatpush1.msra.mxu0 0.0
    %971 = vmatprep.subr.mxu0 0.0
    %972 = vmatpush1.msra.mxu0 0.0
    %973 = vmatprep.subr.mxu0 0.0
    %974 = vmatpush1.msra.mxu0 0.0
    %975 = vmatprep.subr.mxu0 0.0
    %976 = vmatpush1.msra.mxu0 0.0
    %977 = vmatprep.subr.mxu0 0.0
    %978 = vmatpush1.msra.mxu0 0.0
    %979 = vmatprep.subr.mxu0 0.0
    %980 = vmatpush1.msra.mxu0 0.0
    %981 = vmatprep.subr.mxu0 0.0
    %982 = vmatpush1.msra.mxu0 0.0
    %983 = vmatprep.subr.mxu0 0.0
    %984 = vmatpush1.msra.mxu0 0.0
    %985 = vmatprep.subr.mxu0 0.0
    %986 = vmatpush1.msra.mxu0 0.0
    %987 = vmatprep.subr.mxu0 0.0
    %988 = vmatpush1.msra.mxu0 0.0
    %989 = vmatprep.subr.mxu0 0.0
    %990 = vmatpush1.msra.mxu0 %v92
    %991 = vmatprep.subr.mxu0 0.0
    %992 = vmatpush1.msra.mxu0 %v91
    %993 = vmatprep.subr.mxu0 0.0
    %994 = vmatpush2.msra.mxu0 0.0
    %995 = vmatprep.subr.mxu0 0.0
    %996 = vmatpush2.msra.mxu0 0.0
    %997 = vmatprep.subr.mxu0 0.0
    %998 = vmatpush2.msra.mxu0 0.0
    %999 = vmatprep.subr.mxu0 0.0
    %1000 = vmatpush2.msra.mxu0 0.0
    %1001 = vmatprep.subr.mxu0 0.0
    %1002 = vmatpush2.msra.mxu0 0.0
    %1003 = vmatprep.subr.mxu0 0.0
    %1004 = vmatpush2.msra.mxu0 0.0
    %1005 = vmatprep.subr.mxu0 0.0
    %1006 = vmatpush2.msra.mxu0 0.0
    %1007 = vmatprep.subr.mxu0 0.0
    %1008 = vmatpush2.msra.mxu0 0.0
    %1009 = vmatprep.subr.mxu0 0.0
    %1010 = vmatpush2.msra.mxu0 0.0
    %1011 = vmatprep.subr.mxu0 0.0
    %1012 = vmatpush2.msra.mxu0 0.0
    %1013 = vmatprep.subr.mxu0 0.0
    %1014 = vmatpush2.msra.mxu0 0.0
    %1015 = vmatprep.subr.mxu0 0.0
    %1016 = vmatpush2.msra.mxu0 0.0
    %1017 = vmatprep.subr.mxu0 0.0
    %1018 = vmatpush2.msra.mxu0 0.0
    %1019 = vmatprep.subr.mxu0 0.0
    %1020 = vmatpush2.msra.mxu0 0.0
    %1021 = vmatprep.subr.mxu0 0.0
    %1022 = vmatpush2.msra.mxu0 0.0
    %1023 = vmatprep.subr.mxu0 0.0
    %1024 = vmatpush2.msra.mxu0 0.0
    %1025 = vmatprep.mubr.f32.mxu0 0.0
    %1026 = vmatmul.mubr.f32.gmra.mxu0 %v959
    %v1027 = vpop.f32.mrf.mxu0
    %v1028 = vadd.f32 %v270, %v1027
    %v1029 = vpop.f32.mrf.mxu0
    %1030 = vdwg.mxu0
    %v1031 = vadd.f32 %v237, %v953
    %v1032 = vxor.u32 %v1031, 2147483648
    %v1033 = vmul.f32 %v1032, 1.442695
    %v1034 = vpow.pop %v1033
    %v1035 = vadd.f32 %v1034, 1.0
    %v1036 = vrcp.pop %v1035
    %v1037 = vmul.f32 1.0, %v1036
    %1039 = vrot.lane.b32.xlu0 %v953, 96
    %v1040 = vpop.permute.xlu0 %1039
    %v1042 = vmul.f32 %v1037, %v1040
    %1044 = vrot.lane.b32.xlu0 %v1042, 32
    %v1045 = vpop.permute.xlu0 %1044
    %v1047 = vadd.f32 %v237, %v1045
    %v1048 = vtanh.pop %v1047
    %v1049 = vsub.f32 1.0, %v1037
    %1051 = vrot.lane.b32.xlu0 %v1048, 112
    %v1052 = vpop.permute.xlu0 %1051
    %v1054 = vmul.f32 %v1049, %v1052
    %v1055 = vmul.f32 %v1037, %v851
    %v1056 = vadd.f32 %v1054, %v1055
    %1058 = vrot.lane.b32.xlu0 %v1028, 48
    %v1059 = vpop.permute.xlu0 %1058
    %v1061 = vadd.f32 %v242, %v1059
    %v1062 = vxor.u32 %v1061, 2147483648
    %v1063 = vmul.f32 %v1062, 1.442695
    %v1064 = vpow.pop %v1063
    %v1065 = vadd.f32 %v1064, 1.0
    %v1066 = vrcp.pop %v1065
    %v1067 = vmul.f32 1.0, %v1066
    %1068 = vrot.lane.b32.xlu0 %v1028, 16
    %v1069 = vpop.permute.xlu0 %1068
    %v1071 = vmul.f32 %v1067, %v1069
    %1073 = vrot.lane.b32.xlu0 %v1071, 32
    %v1074 = vpop.permute.xlu0 %1073
    %v1076 = vadd.f32 %v242, %v1074
    %v1077 = vtanh.pop %v1076
    %v1078 = vsub.f32 1.0, %v1067
    %1080 = vrot.lane.b32.xlu0 %v1077, 112
    %v1081 = vpop.permute.xlu0 %1080
    %v1083 = vmul.f32 %v1078, %v1081
    %v1084 = vmul.f32 %v1067, %v880
    %v1085 = vadd.f32 %v1083, %v1084
    %1087 = vrot.lane.b32.xlu0 %v1056, 112
    %v1088 = vpop.permute.xlu0 %1087
    %v1089 = vsel %vm272, %v1088, 0
    %1091 = vmatprep.subr.mxu0 0.0
    %1092 = vmatpush1.msra.mxu0 0.0
    %1093 = vmatprep.subr.mxu0 0.0
    %1094 = vmatpush1.msra.mxu0 0.0
    %1095 = vmatprep.subr.mxu0 0.0
    %1096 = vmatpush1.msra.mxu0 0.0
    %1097 = vmatprep.subr.mxu0 0.0
    %1098 = vmatpush1.msra.mxu0 0.0
    %1099 = vmatprep.subr.mxu0 0.0
    %1100 = vmatpush1.msra.mxu0 0.0
    %1101 = vmatprep.subr.mxu0 0.0
    %1102 = vmatpush1.msra.mxu0 0.0
    %1103 = vmatprep.subr.mxu0 0.0
    %1104 = vmatpush1.msra.mxu0 0.0
    %1105 = vmatprep.subr.mxu0 0.0
    %1106 = vmatpush1.msra.mxu0 0.0
    %1107 = vmatprep.subr.mxu0 0.0
    %1108 = vmatpush1.msra.mxu0 0.0
    %1109 = vmatprep.subr.mxu0 0.0
    %1110 = vmatpush1.msra.mxu0 0.0
    %1111 = vmatprep.subr.mxu0 0.0
    %1112 = vmatpush1.msra.mxu0 0.0
    %1113 = vmatprep.subr.mxu0 0.0
    %1114 = vmatpush1.msra.mxu0 0.0
    %1115 = vmatprep.subr.mxu0 0.0
    %1116 = vmatpush1.msra.mxu0 0.0
    %1117 = vmatprep.subr.mxu0 0.0
    %1118 = vmatpush1.msra.mxu0 0.0
    %1119 = vmatprep.subr.mxu0 0.0
    %1120 = vmatpush1.msra.mxu0 %v90
    %1121 = vmatprep.subr.mxu0 0.0
    %1122 = vmatpush1.msra.mxu0 %v89
    %1123 = vmatprep.subr.mxu0 0.0
    %1124 = vmatpush2.msra.mxu0 0.0
    %1125 = vmatprep.subr.mxu0 0.0
    %1126 = vmatpush2.msra.mxu0 0.0
    %1127 = vmatprep.subr.mxu0 0.0
    %1128 = vmatpush2.msra.mxu0 0.0
    %1129 = vmatprep.subr.mxu0 0.0
    %1130 = vmatpush2.msra.mxu0 0.0
    %1131 = vmatprep.subr.mxu0 0.0
    %1132 = vmatpush2.msra.mxu0 0.0
    %1133 = vmatprep.subr.mxu0 0.0
    %1134 = vmatpush2.msra.mxu0 0.0
    %1135 = vmatprep.subr.mxu0 0.0
    %1136 = vmatpush2.msra.mxu0 0.0
    %1137 = vmatprep.subr.mxu0 0.0
    %1138 = vmatpush2.msra.mxu0 0.0
    %1139 = vmatprep.subr.mxu0 0.0
    %1140 = vmatpush2.msra.mxu0 0.0
    %1141 = vmatprep.subr.mxu0 0.0
    %1142 = vmatpush2.msra.mxu0 0.0
    %1143 = vmatprep.subr.mxu0 0.0
    %1144 = vmatpush2.msra.mxu0 0.0
    %1145 = vmatprep.subr.mxu0 0.0
    %1146 = vmatpush2.msra.mxu0 0.0
    %1147 = vmatprep.subr.mxu0 0.0
    %1148 = vmatpush2.msra.mxu0 0.0
    %1149 = vmatprep.subr.mxu0 0.0
    %1150 = vmatpush2.msra.mxu0 0.0
    %1151 = vmatprep.subr.mxu0 0.0
    %1152 = vmatpush2.msra.mxu0 0.0
    %1153 = vmatprep.subr.mxu0 0.0
    %1154 = vmatpush2.msra.mxu0 0.0
    %1155 = vmatprep.mubr.f32.mxu0 0.0
    %1156 = vmatmul.mubr.f32.gmra.mxu0 %v1089
    %v1157 = vpop.f32.mrf.mxu0
    %v1158 = vadd.f32 %v264, %v1157
    %v1159 = vpop.f32.mrf.mxu0
    %1160 = vdwg.mxu0
    %1162 = vrot.lane.b32.xlu0 %v1085, 64
    %v1163 = vpop.permute.xlu0 %1162
    %v1164 = vsel %vm272, %v1163, 0
    %1166 = vmatprep.subr.mxu0 0.0
    %1167 = vmatpush1.msra.mxu0 0.0
    %1168 = vmatprep.subr.mxu0 0.0
    %1169 = vmatpush1.msra.mxu0 0.0
    %1170 = vmatprep.subr.mxu0 0.0
    %1171 = vmatpush1.msra.mxu0 0.0
    %1172 = vmatprep.subr.mxu0 0.0
    %1173 = vmatpush1.msra.mxu0 0.0
    %1174 = vmatprep.subr.mxu0 0.0
    %1175 = vmatpush1.msra.mxu0 0.0
    %1176 = vmatprep.subr.mxu0 0.0
    %1177 = vmatpush1.msra.mxu0 0.0
    %1178 = vmatprep.subr.mxu0 0.0
    %1179 = vmatpush1.msra.mxu0 0.0
    %1180 = vmatprep.subr.mxu0 0.0
    %1181 = vmatpush1.msra.mxu0 0.0
    %1182 = vmatprep.subr.mxu0 0.0
    %1183 = vmatpush1.msra.mxu0 0.0
    %1184 = vmatprep.subr.mxu0 0.0
    %1185 = vmatpush1.msra.mxu0 0.0
    %1186 = vmatprep.subr.mxu0 0.0
    %1187 = vmatpush1.msra.mxu0 0.0
    %1188 = vmatprep.subr.mxu0 0.0
    %1189 = vmatpush1.msra.mxu0 0.0
    %1190 = vmatprep.subr.mxu0 0.0
    %1191 = vmatpush1.msra.mxu0 0.0
    %1192 = vmatprep.subr.mxu0 0.0
    %1193 = vmatpush1.msra.mxu0 0.0
    %1194 = vmatprep.subr.mxu0 0.0
    %1195 = vmatpush1.msra.mxu0 %v92
    %1196 = vmatprep.subr.mxu0 0.0
    %1197 = vmatpush1.msra.mxu0 %v91
    %1198 = vmatprep.subr.mxu0 0.0
    %1199 = vmatpush2.msra.mxu0 0.0
    %1200 = vmatprep.subr.mxu0 0.0
    %1201 = vmatpush2.msra.mxu0 0.0
    %1202 = vmatprep.subr.mxu0 0.0
    %1203 = vmatpush2.msra.mxu0 0.0
    %1204 = vmatprep.subr.mxu0 0.0
    %1205 = vmatpush2.msra.mxu0 0.0
    %1206 = vmatprep.subr.mxu0 0.0
    %1207 = vmatpush2.msra.mxu0 0.0
    %1208 = vmatprep.subr.mxu0 0.0
    %1209 = vmatpush2.msra.mxu0 0.0
    %1210 = vmatprep.subr.mxu0 0.0
    %1211 = vmatpush2.msra.mxu0 0.0
    %1212 = vmatprep.subr.mxu0 0.0
    %1213 = vmatpush2.msra.mxu0 0.0
    %1214 = vmatprep.subr.mxu0 0.0
    %1215 = vmatpush2.msra.mxu0 0.0
    %1216 = vmatprep.subr.mxu0 0.0
    %1217 = vmatpush2.msra.mxu0 0.0
    %1218 = vmatprep.subr.mxu0 0.0
    %1219 = vmatpush2.msra.mxu0 0.0
    %1220 = vmatprep.subr.mxu0 0.0
    %1221 = vmatpush2.msra.mxu0 0.0
    %1222 = vmatprep.subr.mxu0 0.0
    %1223 = vmatpush2.msra.mxu0 0.0
    %1224 = vmatprep.subr.mxu0 0.0
    %1225 = vmatpush2.msra.mxu0 0.0
    %1226 = vmatprep.subr.mxu0 0.0
    %1227 = vmatpush2.msra.mxu0 0.0
    %1228 = vmatprep.subr.mxu0 0.0
    %1229 = vmatpush2.msra.mxu0 0.0
    %1230 = vmatprep.mubr.f32.mxu0 0.0
    %1231 = vmatmul.mubr.f32.gmra.mxu0 %v1164
    %v1232 = vpop.f32.mrf.mxu0
    %v1233 = vadd.f32 %v270, %v1232
    %v1234 = vpop.f32.mrf.mxu0
    %1235 = vdwg.mxu0
    %v1236 = vadd.f32 %v242, %v1158
    %v1237 = vxor.u32 %v1236, 2147483648
    %v1238 = vmul.f32 %v1237, 1.442695
    %v1239 = vpow.pop %v1238
    %v1240 = vadd.f32 %v1239, 1.0
    %v1241 = vrcp.pop %v1240
    %v1242 = vmul.f32 1.0, %v1241
    %1244 = vrot.lane.b32.xlu0 %v1158, 96
    %v1245 = vpop.permute.xlu0 %1244
    %v1247 = vmul.f32 %v1242, %v1245
    %1249 = vrot.lane.b32.xlu0 %v1247, 32
    %v1250 = vpop.permute.xlu0 %1249
    %v1252 = vadd.f32 %v242, %v1250
    %v1253 = vtanh.pop %v1252
    %v1254 = vsub.f32 1.0, %v1242
    %1256 = vrot.lane.b32.xlu0 %v1253, 112
    %v1257 = vpop.permute.xlu0 %1256
    %v1259 = vmul.f32 %v1254, %v1257
    %v1260 = vmul.f32 %v1242, %v1056
    %v1261 = vadd.f32 %v1259, %v1260
    %1263 = vrot.lane.b32.xlu0 %v1233, 48
    %v1264 = vpop.permute.xlu0 %1263
    %v1266 = vadd.f32 %v237, %v1264
    %v1267 = vxor.u32 %v1266, 2147483648
    %v1268 = vmul.f32 %v1267, 1.442695
    %v1269 = vpow.pop %v1268
    %v1270 = vadd.f32 %v1269, 1.0
    %v1271 = vrcp.pop %v1270
    %v1272 = vmul.f32 1.0, %v1271
    %1273 = vrot.lane.b32.xlu0 %v1233, 16
    %v1274 = vpop.permute.xlu0 %1273
    %v1276 = vmul.f32 %v1272, %v1274
    %1278 = vrot.lane.b32.xlu0 %v1276, 32
    %v1279 = vpop.permute.xlu0 %1278
    %v1281 = vadd.f32 %v237, %v1279
    %v1282 = vtanh.pop %v1281
    %v1283 = vsub.f32 1.0, %v1272
    %1285 = vrot.lane.b32.xlu0 %v1282, 112
    %v1286 = vpop.permute.xlu0 %1285
    %v1288 = vmul.f32 %v1283, %v1286
    %v1289 = vmul.f32 %v1272, %v1085
    %v1290 = vadd.f32 %v1288, %v1289
    %1292 = vrot.lane.b32.xlu0 %v1261, 112
    %v1293 = vpop.permute.xlu0 %1292
    %v1294 = vsel %vm272, %v1293, 0
    %1296 = vmatprep.subr.mxu0 0.0
    %1297 = vmatpush1.msra.mxu0 0.0
    %1298 = vmatprep.subr.mxu0 0.0
    %1299 = vmatpush1.msra.mxu0 0.0
    %1300 = vmatprep.subr.mxu0 0.0
    %1301 = vmatpush1.msra.mxu0 0.0
    %1302 = vmatprep.subr.mxu0 0.0
    %1303 = vmatpush1.msra.mxu0 0.0
    %1304 = vmatprep.subr.mxu0 0.0
    %1305 = vmatpush1.msra.mxu0 0.0
    %1306 = vmatprep.subr.mxu0 0.0
    %1307 = vmatpush1.msra.mxu0 0.0
    %1308 = vmatprep.subr.mxu0 0.0
    %1309 = vmatpush1.msra.mxu0 0.0
    %1310 = vmatprep.subr.mxu0 0.0
    %1311 = vmatpush1.msra.mxu0 0.0
    %1312 = vmatprep.subr.mxu0 0.0
    %1313 = vmatpush1.msra.mxu0 0.0
    %1314 = vmatprep.subr.mxu0 0.0
    %1315 = vmatpush1.msra.mxu0 0.0
    %1316 = vmatprep.subr.mxu0 0.0
    %1317 = vmatpush1.msra.mxu0 0.0
    %1318 = vmatprep.subr.mxu0 0.0
    %1319 = vmatpush1.msra.mxu0 0.0
    %1320 = vmatprep.subr.mxu0 0.0
    %1321 = vmatpush1.msra.mxu0 0.0
    %1322 = vmatprep.subr.mxu0 0.0
    %1323 = vmatpush1.msra.mxu0 0.0
    %1324 = vmatprep.subr.mxu0 0.0
    %1325 = vmatpush1.msra.mxu0 %v90
    %1326 = vmatprep.subr.mxu0 0.0
    %1327 = vmatpush1.msra.mxu0 %v89
    %1328 = vmatprep.subr.mxu0 0.0
    %1329 = vmatpush2.msra.mxu0 0.0
    %1330 = vmatprep.subr.mxu0 0.0
    %1331 = vmatpush2.msra.mxu0 0.0
    %1332 = vmatprep.subr.mxu0 0.0
    %1333 = vmatpush2.msra.mxu0 0.0
    %1334 = vmatprep.subr.mxu0 0.0
    %1335 = vmatpush2.msra.mxu0 0.0
    %1336 = vmatprep.subr.mxu0 0.0
    %1337 = vmatpush2.msra.mxu0 0.0
    %1338 = vmatprep.subr.mxu0 0.0
    %1339 = vmatpush2.msra.mxu0 0.0
    %1340 = vmatprep.subr.mxu0 0.0
    %1341 = vmatpush2.msra.mxu0 0.0
    %1342 = vmatprep.subr.mxu0 0.0
    %1343 = vmatpush2.msra.mxu0 0.0
    %1344 = vmatprep.subr.mxu0 0.0
    %1345 = vmatpush2.msra.mxu0 0.0
    %1346 = vmatprep.subr.mxu0 0.0
    %1347 = vmatpush2.msra.mxu0 0.0
    %1348 = vmatprep.subr.mxu0 0.0
    %1349 = vmatpush2.msra.mxu0 0.0
    %1350 = vmatprep.subr.mxu0 0.0
    %1351 = vmatpush2.msra.mxu0 0.0
    %1352 = vmatprep.subr.mxu0 0.0
    %1353 = vmatpush2.msra.mxu0 0.0
    %1354 = vmatprep.subr.mxu0 0.0
    %1355 = vmatpush2.msra.mxu0 0.0
    %1356 = vmatprep.subr.mxu0 0.0
    %1357 = vmatpush2.msra.mxu0 0.0
    %1358 = vmatprep.subr.mxu0 0.0
    %1359 = vmatpush2.msra.mxu0 0.0
    %1360 = vmatprep.mubr.f32.mxu0 0.0
    %1361 = vmatmul.mubr.f32.gmra.mxu0 %v1294
    %v1362 = vpop.f32.mrf.mxu0
    %v1363 = vadd.f32 %v264, %v1362
    %v1364 = vpop.f32.mrf.mxu0
    %1365 = vdwg.mxu0
    %1367 = vrot.lane.b32.xlu0 %v1290, 64
    %v1368 = vpop.permute.xlu0 %1367
    %v1369 = vsel %vm272, %v1368, 0
    %1371 = vmatprep.subr.mxu0 0.0
    %1372 = vmatpush1.msra.mxu0 0.0
    %1373 = vmatprep.subr.mxu0 0.0
    %1374 = vmatpush1.msra.mxu0 0.0
    %1375 = vmatprep.subr.mxu0 0.0
    %1376 = vmatpush1.msra.mxu0 0.0
    %1377 = vmatprep.subr.mxu0 0.0
    %1378 = vmatpush1.msra.mxu0 0.0
    %1379 = vmatprep.subr.mxu0 0.0
    %1380 = vmatpush1.msra.mxu0 0.0
    %1381 = vmatprep.subr.mxu0 0.0
    %1382 = vmatpush1.msra.mxu0 0.0
    %1383 = vmatprep.subr.mxu0 0.0
    %1384 = vmatpush1.msra.mxu0 0.0
    %1385 = vmatprep.subr.mxu0 0.0
    %1386 = vmatpush1.msra.mxu0 0.0
    %1387 = vmatprep.subr.mxu0 0.0
    %1388 = vmatpush1.msra.mxu0 0.0
    %1389 = vmatprep.subr.mxu0 0.0
    %1390 = vmatpush1.msra.mxu0 0.0
    %1391 = vmatprep.subr.mxu0 0.0
    %1392 = vmatpush1.msra.mxu0 0.0
    %1393 = vmatprep.subr.mxu0 0.0
    %1394 = vmatpush1.msra.mxu0 0.0
    %1395 = vmatprep.subr.mxu0 0.0
    %1396 = vmatpush1.msra.mxu0 0.0
    %1397 = vmatprep.subr.mxu0 0.0
    %1398 = vmatpush1.msra.mxu0 0.0
    %1399 = vmatprep.subr.mxu0 0.0
    %1400 = vmatpush1.msra.mxu0 %v92
    %1401 = vmatprep.subr.mxu0 0.0
    %1402 = vmatpush1.msra.mxu0 %v91
    %1403 = vmatprep.subr.mxu0 0.0
    %1404 = vmatpush2.msra.mxu0 0.0
    %1405 = vmatprep.subr.mxu0 0.0
    %1406 = vmatpush2.msra.mxu0 0.0
    %1407 = vmatprep.subr.mxu0 0.0
    %1408 = vmatpush2.msra.mxu0 0.0
    %1409 = vmatprep.subr.mxu0 0.0
    %1410 = vmatpush2.msra.mxu0 0.0
    %1411 = vmatprep.subr.mxu0 0.0
    %1412 = vmatpush2.msra.mxu0 0.0
    %1413 = vmatprep.subr.mxu0 0.0
    %1414 = vmatpush2.msra.mxu0 0.0
    %1415 = vmatprep.subr.mxu0 0.0
    %1416 = vmatpush2.msra.mxu0 0.0
    %1417 = vmatprep.subr.mxu0 0.0
    %1418 = vmatpush2.msra.mxu0 0.0
    %1419 = vmatprep.subr.mxu0 0.0
    %1420 = vmatpush2.msra.mxu0 0.0
    %1421 = vmatprep.subr.mxu0 0.0
    %1422 = vmatpush2.msra.mxu0 0.0
    %1423 = vmatprep.subr.mxu0 0.0
    %1424 = vmatpush2.msra.mxu0 0.0
    %1425 = vmatprep.subr.mxu0 0.0
    %1426 = vmatpush2.msra.mxu0 0.0
    %1427 = vmatprep.subr.mxu0 0.0
    %1428 = vmatpush2.msra.mxu0 0.0
    %1429 = vmatprep.subr.mxu0 0.0
    %1430 = vmatpush2.msra.mxu0 0.0
    %1431 = vmatprep.subr.mxu0 0.0
    %1432 = vmatpush2.msra.mxu0 0.0
    %1433 = vmatprep.subr.mxu0 0.0
    %1434 = vmatpush2.msra.mxu0 0.0
    %1435 = vmatprep.mubr.f32.mxu0 0.0
    %1436 = vmatmul.mubr.f32.gmra.mxu0 %v1369
    %v1437 = vpop.f32.mrf.mxu0
    %v1438 = vadd.f32 %v270, %v1437
    %v1439 = vpop.f32.mrf.mxu0
    %1440 = vdwg.mxu0
    %v1441 = vadd.f32 %v247, %v1363
    %v1442 = vxor.u32 %v1441, 2147483648
    %v1443 = vmul.f32 %v1442, 1.442695
    %v1444 = vpow.pop %v1443
    %v1445 = vadd.f32 %v1444, 1.0
    %v1446 = vrcp.pop %v1445
    %v1447 = vmul.f32 1.0, %v1446
    %1449 = vrot.lane.b32.xlu0 %v1363, 96
    %v1450 = vpop.permute.xlu0 %1449
    %v1452 = vmul.f32 %v1447, %v1450
    %1454 = vrot.lane.b32.xlu0 %v1452, 32
    %v1455 = vpop.permute.xlu0 %1454
    %v1457 = vadd.f32 %v247, %v1455
    %v1458 = vtanh.pop %v1457
    %v1459 = vsub.f32 1.0, %v1447
    %1461 = vrot.lane.b32.xlu0 %v1458, 112
    %v1462 = vpop.permute.xlu0 %1461
    %v1464 = vmul.f32 %v1459, %v1462
    %v1465 = vmul.f32 %v1447, %v1261
    %v1466 = vadd.f32 %v1464, %v1465
    %1468 = vrot.lane.b32.xlu0 %v1438, 48
    %v1469 = vpop.permute.xlu0 %1468
    %v1471 = vadd.f32 %v232, %v1469
    %v1472 = vxor.u32 %v1471, 2147483648
    %v1473 = vmul.f32 %v1472, 1.442695
    %v1474 = vpow.pop %v1473
    %v1475 = vadd.f32 %v1474, 1.0
    %v1476 = vrcp.pop %v1475
    %v1477 = vmul.f32 1.0, %v1476
    %1478 = vrot.lane.b32.xlu0 %v1438, 16
    %v1479 = vpop.permute.xlu0 %1478
    %v1481 = vmul.f32 %v1477, %v1479
    %1483 = vrot.lane.b32.xlu0 %v1481, 32
    %v1484 = vpop.permute.xlu0 %1483
    %v1486 = vadd.f32 %v232, %v1484
    %v1487 = vtanh.pop %v1486
    %v1488 = vsub.f32 1.0, %v1477
    %1490 = vrot.lane.b32.xlu0 %v1487, 112
    %v1491 = vpop.permute.xlu0 %1490
    %v1493 = vmul.f32 %v1488, %v1491
    %v1494 = vmul.f32 %v1477, %v1290
    %v1495 = vadd.f32 %v1493, %v1494
    %1497 = vrot.lane.b32.xlu0 %v1466, 112
    %v1498 = vpop.permute.xlu0 %1497
    %v1499 = vsel %vm272, %v1498, 0
    %1501 = vmatprep.subr.mxu0 0.0
    %1502 = vmatpush1.msra.mxu0 0.0
    %1503 = vmatprep.subr.mxu0 0.0
    %1504 = vmatpush1.msra.mxu0 0.0
    %1505 = vmatprep.subr.mxu0 0.0
    %1506 = vmatpush1.msra.mxu0 0.0
    %1507 = vmatprep.subr.mxu0 0.0
    %1508 = vmatpush1.msra.mxu0 0.0
    %1509 = vmatprep.subr.mxu0 0.0
    %1510 = vmatpush1.msra.mxu0 0.0
    %1511 = vmatprep.subr.mxu0 0.0
    %1512 = vmatpush1.msra.mxu0 0.0
    %1513 = vmatprep.subr.mxu0 0.0
    %1514 = vmatpush1.msra.mxu0 0.0
    %1515 = vmatprep.subr.mxu0 0.0
    %1516 = vmatpush1.msra.mxu0 0.0
    %1517 = vmatprep.subr.mxu0 0.0
    %1518 = vmatpush1.msra.mxu0 0.0
    %1519 = vmatprep.subr.mxu0 0.0
    %1520 = vmatpush1.msra.mxu0 0.0
    %1521 = vmatprep.subr.mxu0 0.0
    %1522 = vmatpush1.msra.mxu0 0.0
    %1523 = vmatprep.subr.mxu0 0.0
    %1524 = vmatpush1.msra.mxu0 0.0
    %1525 = vmatprep.subr.mxu0 0.0
    %1526 = vmatpush1.msra.mxu0 0.0
    %1527 = vmatprep.subr.mxu0 0.0
    %1528 = vmatpush1.msra.mxu0 0.0
    %1529 = vmatprep.subr.mxu0 0.0
    %1530 = vmatpush1.msra.mxu0 %v90
    %1531 = vmatprep.subr.mxu0 0.0
    %1532 = vmatpush1.msra.mxu0 %v89
    %1533 = vmatprep.subr.mxu0 0.0
    %1534 = vmatpush2.msra.mxu0 0.0
    %1535 = vmatprep.subr.mxu0 0.0
    %1536 = vmatpush2.msra.mxu0 0.0
    %1537 = vmatprep.subr.mxu0 0.0
    %1538 = vmatpush2.msra.mxu0 0.0
    %1539 = vmatprep.subr.mxu0 0.0
    %1540 = vmatpush2.msra.mxu0 0.0
    %1541 = vmatprep.subr.mxu0 0.0
    %1542 = vmatpush2.msra.mxu0 0.0
    %1543 = vmatprep.subr.mxu0 0.0
    %1544 = vmatpush2.msra.mxu0 0.0
    %1545 = vmatprep.subr.mxu0 0.0
    %1546 = vmatpush2.msra.mxu0 0.0
    %1547 = vmatprep.subr.mxu0 0.0
    %1548 = vmatpush2.msra.mxu0 0.0
    %1549 = vmatprep.subr.mxu0 0.0
    %1550 = vmatpush2.msra.mxu0 0.0
    %1551 = vmatprep.subr.mxu0 0.0
    %1552 = vmatpush2.msra.mxu0 0.0
    %1553 = vmatprep.subr.mxu0 0.0
    %1554 = vmatpush2.msra.mxu0 0.0
    %1555 = vmatprep.subr.mxu0 0.0
    %1556 = vmatpush2.msra.mxu0 0.0
    %1557 = vmatprep.subr.mxu0 0.0
    %1558 = vmatpush2.msra.mxu0 0.0
    %1559 = vmatprep.subr.mxu0 0.0
    %1560 = vmatpush2.msra.mxu0 0.0
    %1561 = vmatprep.subr.mxu0 0.0
    %1562 = vmatpush2.msra.mxu0 0.0
    %1563 = vmatprep.subr.mxu0 0.0
    %1564 = vmatpush2.msra.mxu0 0.0
    %1565 = vmatprep.mubr.f32.mxu0 0.0
    %1566 = vmatmul.mubr.f32.gmra.mxu0 %v1499
    %v1567 = vpop.f32.mrf.mxu0
    %v1568 = vadd.f32 %v264, %v1567
    %v1569 = vpop.f32.mrf.mxu0
    %1570 = vdwg.mxu0
    %1572 = vrot.lane.b32.xlu0 %v1495, 64
    %v1573 = vpop.permute.xlu0 %1572
    %v1574 = vsel %vm272, %v1573, 0
    %1576 = vmatprep.subr.mxu0 0.0
    %1577 = vmatpush1.msra.mxu0 0.0
    %1578 = vmatprep.subr.mxu0 0.0
    %1579 = vmatpush1.msra.mxu0 0.0
    %1580 = vmatprep.subr.mxu0 0.0
    %1581 = vmatpush1.msra.mxu0 0.0
    %1582 = vmatprep.subr.mxu0 0.0
    %1583 = vmatpush1.msra.mxu0 0.0
    %1584 = vmatprep.subr.mxu0 0.0
    %1585 = vmatpush1.msra.mxu0 0.0
    %1586 = vmatprep.subr.mxu0 0.0
    %1587 = vmatpush1.msra.mxu0 0.0
    %1588 = vmatprep.subr.mxu0 0.0
    %1589 = vmatpush1.msra.mxu0 0.0
    %1590 = vmatprep.subr.mxu0 0.0
    %1591 = vmatpush1.msra.mxu0 0.0
    %1592 = vmatprep.subr.mxu0 0.0
    %1593 = vmatpush1.msra.mxu0 0.0
    %1594 = vmatprep.subr.mxu0 0.0
    %1595 = vmatpush1.msra.mxu0 0.0
    %1596 = vmatprep.subr.mxu0 0.0
    %1597 = vmatpush1.msra.mxu0 0.0
    %1598 = vmatprep.subr.mxu0 0.0
    %1599 = vmatpush1.msra.mxu0 0.0
    %1600 = vmatprep.subr.mxu0 0.0
    %1601 = vmatpush1.msra.mxu0 0.0
    %1602 = vmatprep.subr.mxu0 0.0
    %1603 = vmatpush1.msra.mxu0 0.0
    %1604 = vmatprep.subr.mxu0 0.0
    %1605 = vmatpush1.msra.mxu0 %v92
    %1606 = vmatprep.subr.mxu0 0.0
    %1607 = vmatpush1.msra.mxu0 %v91
    %1608 = vmatprep.subr.mxu0 0.0
    %1609 = vmatpush2.msra.mxu0 0.0
    %1610 = vmatprep.subr.mxu0 0.0
    %1611 = vmatpush2.msra.mxu0 0.0
    %1612 = vmatprep.subr.mxu0 0.0
    %1613 = vmatpush2.msra.mxu0 0.0
    %1614 = vmatprep.subr.mxu0 0.0
    %1615 = vmatpush2.msra.mxu0 0.0
    %1616 = vmatprep.subr.mxu0 0.0
    %1617 = vmatpush2.msra.mxu0 0.0
    %1618 = vmatprep.subr.mxu0 0.0
    %1619 = vmatpush2.msra.mxu0 0.0
    %1620 = vmatprep.subr.mxu0 0.0
    %1621 = vmatpush2.msra.mxu0 0.0
    %1622 = vmatprep.subr.mxu0 0.0
    %1623 = vmatpush2.msra.mxu0 0.0
    %1624 = vmatprep.subr.mxu0 0.0
    %1625 = vmatpush2.msra.mxu0 0.0
    %1626 = vmatprep.subr.mxu0 0.0
    %1627 = vmatpush2.msra.mxu0 0.0
    %1628 = vmatprep.subr.mxu0 0.0
    %1629 = vmatpush2.msra.mxu0 0.0
    %1630 = vmatprep.subr.mxu0 0.0
    %1631 = vmatpush2.msra.mxu0 0.0
    %1632 = vmatprep.subr.mxu0 0.0
    %1633 = vmatpush2.msra.mxu0 0.0
    %1634 = vmatprep.subr.mxu0 0.0
    %1635 = vmatpush2.msra.mxu0 0.0
    %1636 = vmatprep.subr.mxu0 0.0
    %1637 = vmatpush2.msra.mxu0 0.0
    %1638 = vmatprep.subr.mxu0 0.0
    %1639 = vmatpush2.msra.mxu0 0.0
    %1640 = vmatprep.mubr.f32.mxu0 0.0
    %1641 = vmatmul.mubr.f32.gmra.mxu0 %v1574
    %v1642 = vpop.f32.mrf.mxu0
    %v1643 = vadd.f32 %v270, %v1642
    %v1644 = vpop.f32.mrf.mxu0
    %1645 = vdwg.mxu0
    %v1646 = vadd.f32 %v252, %v1568
    %v1647 = vxor.u32 %v1646, 2147483648
    %v1648 = vmul.f32 %v1647, 1.442695
    %v1649 = vpow.pop %v1648
    %v1650 = vadd.f32 %v1649, 1.0
    %v1651 = vrcp.pop %v1650
    %v1652 = vmul.f32 1.0, %v1651
    %1654 = vrot.lane.b32.xlu0 %v1568, 96
    %v1655 = vpop.permute.xlu0 %1654
    %v1657 = vmul.f32 %v1652, %v1655
    %1659 = vrot.lane.b32.xlu0 %v1657, 32
    %v1660 = vpop.permute.xlu0 %1659
    %v1662 = vadd.f32 %v252, %v1660
    %v1663 = vtanh.pop %v1662
    %v1664 = vsub.f32 1.0, %v1652
    %1666 = vrot.lane.b32.xlu0 %v1663, 112
    %v1667 = vpop.permute.xlu0 %1666
    %v1669 = vmul.f32 %v1664, %v1667
    %v1670 = vmul.f32 %v1652, %v1466
    %v1671 = vadd.f32 %v1669, %v1670
    %1673 = vrot.lane.b32.xlu0 %v1643, 48
    %v1674 = vpop.permute.xlu0 %1673
    %v1676 = vadd.f32 %v227, %v1674
    %v1677 = vxor.u32 %v1676, 2147483648
    %v1678 = vmul.f32 %v1677, 1.442695
    %v1679 = vpow.pop %v1678
    %v1680 = vadd.f32 %v1679, 1.0
    %v1681 = vrcp.pop %v1680
    %v1682 = vmul.f32 1.0, %v1681
    %1683 = vrot.lane.b32.xlu0 %v1643, 16
    %v1684 = vpop.permute.xlu0 %1683
    %v1686 = vmul.f32 %v1682, %v1684
    %1688 = vrot.lane.b32.xlu0 %v1686, 32
    %v1689 = vpop.permute.xlu0 %1688
    %v1691 = vadd.f32 %v227, %v1689
    %v1692 = vtanh.pop %v1691
    %v1693 = vsub.f32 1.0, %v1682
    %1695 = vrot.lane.b32.xlu0 %v1692, 112
    %v1696 = vpop.permute.xlu0 %1695
    %v1698 = vmul.f32 %v1693, %v1696
    %v1699 = vmul.f32 %v1682, %v1495
    %v1700 = vadd.f32 %v1698, %v1699
    %1702 = vrot.lane.b32.xlu0 %v1671, 112
    %v1703 = vpop.permute.xlu0 %1702
    %v1704 = vsel %vm272, %v1703, 0
    %1706 = vmatprep.subr.mxu0 0.0
    %1707 = vmatpush1.msra.mxu0 0.0
    %1708 = vmatprep.subr.mxu0 0.0
    %1709 = vmatpush1.msra.mxu0 0.0
    %1710 = vmatprep.subr.mxu0 0.0
    %1711 = vmatpush1.msra.mxu0 0.0
    %1712 = vmatprep.subr.mxu0 0.0
    %1713 = vmatpush1.msra.mxu0 0.0
    %1714 = vmatprep.subr.mxu0 0.0
    %1715 = vmatpush1.msra.mxu0 0.0
    %1716 = vmatprep.subr.mxu0 0.0
    %1717 = vmatpush1.msra.mxu0 0.0
    %1718 = vmatprep.subr.mxu0 0.0
    %1719 = vmatpush1.msra.mxu0 0.0
    %1720 = vmatprep.subr.mxu0 0.0
    %1721 = vmatpush1.msra.mxu0 0.0
    %1722 = vmatprep.subr.mxu0 0.0
    %1723 = vmatpush1.msra.mxu0 0.0
    %1724 = vmatprep.subr.mxu0 0.0
    %1725 = vmatpush1.msra.mxu0 0.0
    %1726 = vmatprep.subr.mxu0 0.0
    %1727 = vmatpush1.msra.mxu0 0.0
    %1728 = vmatprep.subr.mxu0 0.0
    %1729 = vmatpush1.msra.mxu0 0.0
    %1730 = vmatprep.subr.mxu0 0.0
    %1731 = vmatpush1.msra.mxu0 0.0
    %1732 = vmatprep.subr.mxu0 0.0
    %1733 = vmatpush1.msra.mxu0 0.0
    %1734 = vmatprep.subr.mxu0 0.0
    %1735 = vmatpush1.msra.mxu0 %v90
    %1736 = vmatprep.subr.mxu0 0.0
    %1737 = vmatpush1.msra.mxu0 %v89
    %1738 = vmatprep.subr.mxu0 0.0
    %1739 = vmatpush2.msra.mxu0 0.0
    %1740 = vmatprep.subr.mxu0 0.0
    %1741 = vmatpush2.msra.mxu0 0.0
    %1742 = vmatprep.subr.mxu0 0.0
    %1743 = vmatpush2.msra.mxu0 0.0
    %1744 = vmatprep.subr.mxu0 0.0
    %1745 = vmatpush2.msra.mxu0 0.0
    %1746 = vmatprep.subr.mxu0 0.0
    %1747 = vmatpush2.msra.mxu0 0.0
    %1748 = vmatprep.subr.mxu0 0.0
    %1749 = vmatpush2.msra.mxu0 0.0
    %1750 = vmatprep.subr.mxu0 0.0
    %1751 = vmatpush2.msra.mxu0 0.0
    %1752 = vmatprep.subr.mxu0 0.0
    %1753 = vmatpush2.msra.mxu0 0.0
    %1754 = vmatprep.subr.mxu0 0.0
    %1755 = vmatpush2.msra.mxu0 0.0
    %1756 = vmatprep.subr.mxu0 0.0
    %1757 = vmatpush2.msra.mxu0 0.0
    %1758 = vmatprep.subr.mxu0 0.0
    %1759 = vmatpush2.msra.mxu0 0.0
    %1760 = vmatprep.subr.mxu0 0.0
    %1761 = vmatpush2.msra.mxu0 0.0
    %1762 = vmatprep.subr.mxu0 0.0
    %1763 = vmatpush2.msra.mxu0 0.0
    %1764 = vmatprep.subr.mxu0 0.0
    %1765 = vmatpush2.msra.mxu0 0.0
    %1766 = vmatprep.subr.mxu0 0.0
    %1767 = vmatpush2.msra.mxu0 0.0
    %1768 = vmatprep.subr.mxu0 0.0
    %1769 = vmatpush2.msra.mxu0 0.0
    %1770 = vmatprep.mubr.f32.mxu0 0.0
    %1771 = vmatmul.mubr.f32.gmra.mxu0 %v1704
    %v1772 = vpop.f32.mrf.mxu0
    %v1773 = vadd.f32 %v264, %v1772
    %v1774 = vpop.f32.mrf.mxu0
    %1775 = vdwg.mxu0
    %1777 = vrot.lane.b32.xlu0 %v1700, 64
    %v1778 = vpop.permute.xlu0 %1777
    %v1779 = vsel %vm272, %v1778, 0
    %1781 = vmatprep.subr.mxu0 0.0
    %1782 = vmatpush1.msra.mxu0 0.0
    %1783 = vmatprep.subr.mxu0 0.0
    %1784 = vmatpush1.msra.mxu0 0.0
    %1785 = vmatprep.subr.mxu0 0.0
    %1786 = vmatpush1.msra.mxu0 0.0
    %1787 = vmatprep.subr.mxu0 0.0
    %1788 = vmatpush1.msra.mxu0 0.0
    %1789 = vmatprep.subr.mxu0 0.0
    %1790 = vmatpush1.msra.mxu0 0.0
    %1791 = vmatprep.subr.mxu0 0.0
    %1792 = vmatpush1.msra.mxu0 0.0
    %1793 = vmatprep.subr.mxu0 0.0
    %1794 = vmatpush1.msra.mxu0 0.0
    %1795 = vmatprep.subr.mxu0 0.0
    %1796 = vmatpush1.msra.mxu0 0.0
    %1797 = vmatprep.subr.mxu0 0.0
    %1798 = vmatpush1.msra.mxu0 0.0
    %1799 = vmatprep.subr.mxu0 0.0
    %1800 = vmatpush1.msra.mxu0 0.0
    %1801 = vmatprep.subr.mxu0 0.0
    %1802 = vmatpush1.msra.mxu0 0.0
    %1803 = vmatprep.subr.mxu0 0.0
    %1804 = vmatpush1.msra.mxu0 0.0
    %1805 = vmatprep.subr.mxu0 0.0
    %1806 = vmatpush1.msra.mxu0 0.0
    %1807 = vmatprep.subr.mxu0 0.0
    %1808 = vmatpush1.msra.mxu0 0.0
    %1809 = vmatprep.subr.mxu0 0.0
    %1810 = vmatpush1.msra.mxu0 %v92
    %1811 = vmatprep.subr.mxu0 0.0
    %1812 = vmatpush1.msra.mxu0 %v91
    %1813 = vmatprep.subr.mxu0 0.0
    %1814 = vmatpush2.msra.mxu0 0.0
    %1815 = vmatprep.subr.mxu0 0.0
    %1816 = vmatpush2.msra.mxu0 0.0
    %1817 = vmatprep.subr.mxu0 0.0
    %1818 = vmatpush2.msra.mxu0 0.0
    %1819 = vmatprep.subr.mxu0 0.0
    %1820 = vmatpush2.msra.mxu0 0.0
    %1821 = vmatprep.subr.mxu0 0.0
    %1822 = vmatpush2.msra.mxu0 0.0
    %1823 = vmatprep.subr.mxu0 0.0
    %1824 = vmatpush2.msra.mxu0 0.0
    %1825 = vmatprep.subr.mxu0 0.0
    %1826 = vmatpush2.msra.mxu0 0.0
    %1827 = vmatprep.subr.mxu0 0.0
    %1828 = vmatpush2.msra.mxu0 0.0
    %1829 = vmatprep.subr.mxu0 0.0
    %1830 = vmatpush2.msra.mxu0 0.0
    %1831 = vmatprep.subr.mxu0 0.0
    %1832 = vmatpush2.msra.mxu0 0.0
    %1833 = vmatprep.subr.mxu0 0.0
    %1834 = vmatpush2.msra.mxu0 0.0
    %1835 = vmatprep.subr.mxu0 0.0
    %1836 = vmatpush2.msra.mxu0 0.0
    %1837 = vmatprep.subr.mxu0 0.0
    %1838 = vmatpush2.msra.mxu0 0.0
    %1839 = vmatprep.subr.mxu0 0.0
    %1840 = vmatpush2.msra.mxu0 0.0
    %1841 = vmatprep.subr.mxu0 0.0
    %1842 = vmatpush2.msra.mxu0 0.0
    %1843 = vmatprep.subr.mxu0 0.0
    %1844 = vmatpush2.msra.mxu0 0.0
    %1845 = vmatprep.mubr.f32.mxu0 0.0
    %1846 = vmatmul.mubr.f32.gmra.mxu0 %v1779
    %v1847 = vpop.f32.mrf.mxu0
    %v1848 = vadd.f32 %v270, %v1847
    %v1849 = vpop.f32.mrf.mxu0
    %1850 = vdwg.mxu0
    %v1851 = vadd.f32 %v257, %v1773
    %v1852 = vxor.u32 %v1851, 2147483648
    %v1853 = vmul.f32 %v1852, 1.442695
    %v1854 = vpow.pop %v1853
    %v1855 = vadd.f32 %v1854, 1.0
    %v1856 = vrcp.pop %v1855
    %v1857 = vmul.f32 1.0, %v1856
    %1859 = vrot.lane.b32.xlu0 %v1773, 96
    %v1860 = vpop.permute.xlu0 %1859
    %v1862 = vmul.f32 %v1857, %v1860
    %1864 = vrot.lane.b32.xlu0 %v1862, 32
    %v1865 = vpop.permute.xlu0 %1864
    %v1867 = vadd.f32 %v257, %v1865
    %v1868 = vtanh.pop %v1867
    %v1869 = vsub.f32 1.0, %v1857
    %1871 = vrot.lane.b32.xlu0 %v1868, 112
    %v1872 = vpop.permute.xlu0 %1871
    %v1874 = vmul.f32 %v1869, %v1872
    %v1875 = vmul.f32 %v1857, %v1671
    %v1876 = vadd.f32 %v1874, %v1875
    %1878 = vrot.lane.b32.xlu0 %v1848, 48
    %v1879 = vpop.permute.xlu0 %1878
    %v1881 = vadd.f32 %v222, %v1879
    %v1882 = vxor.u32 %v1881, 2147483648
    %v1883 = vmul.f32 %v1882, 1.442695
    %v1884 = vpow.pop %v1883
    %v1885 = vadd.f32 %v1884, 1.0
    %v1886 = vrcp.pop %v1885
    %v1887 = vmul.f32 1.0, %v1886
    %1888 = vrot.lane.b32.xlu0 %v1848, 16
    %v1889 = vpop.permute.xlu0 %1888
    %v1891 = vmul.f32 %v1887, %v1889
    %1893 = vrot.lane.b32.xlu0 %v1891, 32
    %v1894 = vpop.permute.xlu0 %1893
    %v1896 = vadd.f32 %v222, %v1894
    %v1897 = vtanh.pop %v1896
    %v1898 = vsub.f32 1.0, %v1887
    %1900 = vrot.lane.b32.xlu0 %v1897, 112
    %v1901 = vpop.permute.xlu0 %1900
    %v1903 = vmul.f32 %v1898, %v1901
    %v1904 = vmul.f32 %v1887, %v1700
    %v1905 = vadd.f32 %v1903, %v1904
    %1908 = vrot.lane.b32.xlu0 %v1905, 80
    %v1909 = vpop.permute.xlu0 %1908
    %v1911 = vsel %vm272, %v473, %v1909
    %1913 = vrot.lane.b32.xlu0 %v1700, 80
    %v1914 = vpop.permute.xlu0 %1913
    %v1916 = vsel %vm272, %v678, %v1914
    %1918 = vrot.lane.b32.xlu0 %v1495, 80
    %v1919 = vpop.permute.xlu0 %1918
    %v1921 = vsel %vm272, %v883, %v1919
    %1923 = vrot.lane.b32.xlu0 %v1290, 80
    %v1924 = vpop.permute.xlu0 %1923
    %v1926 = vsel %vm272, %v1088, %v1924
    %1928 = vrot.lane.b32.xlu0 %v1085, 80
    %v1929 = vpop.permute.xlu0 %1928
    %v1931 = vsel %vm272, %v1293, %v1929
    %1933 = vrot.lane.b32.xlu0 %v880, 80
    %v1934 = vpop.permute.xlu0 %1933
    %v1936 = vsel %vm272, %v1498, %v1934
    %1938 = vrot.lane.b32.xlu0 %v675, 80
    %v1939 = vpop.permute.xlu0 %1938
    %v1941 = vsel %vm272, %v1703, %v1939
    %1943 = vrot.lane.b32.xlu0 %v1876, 112
    %v1944 = vpop.permute.xlu0 %1943
    %1946 = vrot.lane.b32.xlu0 %v470, 80
    %v1947 = vpop.permute.xlu0 %1946
    %v1949 = vsel %vm272, %v1944, %v1947
    %v1951 = vlaneseq
    %v1952 = vshrl.u32 %v1951, 7
    %v1953 = vsub.s32 0, %v1952
    %v1954 = vrot.slane %v100, %v1953
    %v1957 = vsel %vm130, %v1911, 0
    %v1960 = vsel %vm130, %v1916, 0
    %v1963 = vsel %vm130, %v1921, 0
    %v1966 = vsel %vm130, %v1926, 0
    %v1969 = vsel %vm130, %v1931, 0
    %v1972 = vsel %vm130, %v1936, 0
    %v1975 = vsel %vm130, %v1941, 0
    %v1978 = vsel %vm130, %v1949, 0
    %1980 = vmatprep.subr.mxu0 0.0
    %1981 = vmatpush1.msra.mxu0 0.0
    %1982 = vmatprep.subr.mxu0 0.0
    %1983 = vmatpush1.msra.mxu0 0.0
    %1984 = vmatprep.subr.mxu0 0.0
    %1985 = vmatpush1.msra.mxu0 0.0
    %1986 = vmatprep.subr.mxu0 0.0
    %1987 = vmatpush1.msra.mxu0 0.0
    %1988 = vmatprep.subr.mxu0 0.0
    %1989 = vmatpush1.msra.mxu0 0.0
    %1990 = vmatprep.subr.mxu0 0.0
    %1991 = vmatpush1.msra.mxu0 0.0
    %1992 = vmatprep.subr.mxu0 0.0
    %1993 = vmatpush1.msra.mxu0 0.0
    %1994 = vmatprep.subr.mxu0 0.0
    %1995 = vmatpush1.msra.mxu0 0.0
    %1996 = vmatprep.subr.mxu0 0.0
    %1997 = vmatpush1.msra.mxu0 0.0
    %1998 = vmatprep.subr.mxu0 0.0
    %1999 = vmatpush1.msra.mxu0 0.0
    %2000 = vmatprep.subr.mxu0 0.0
    %2001 = vmatpush1.msra.mxu0 0.0
    %2002 = vmatprep.subr.mxu0 0.0
    %2003 = vmatpush1.msra.mxu0 0.0
    %2004 = vmatprep.subr.mxu0 0.0
    %2005 = vmatpush1.msra.mxu0 %v99
    %2006 = vmatprep.subr.mxu0 0.0
    %2007 = vmatpush1.msra.mxu0 %v98
    %2008 = vmatprep.subr.mxu0 0.0
    %2009 = vmatpush1.msra.mxu0 %v97
    %2010 = vmatprep.subr.mxu0 0.0
    %2011 = vmatpush1.msra.mxu0 %v96
    %2012 = vmatprep.subr.mxu0 0.0
    %2013 = vmatpush2.msra.mxu0 0.0
    %2014 = vmatprep.subr.mxu0 0.0
    %2015 = vmatpush2.msra.mxu0 0.0
    %2016 = vmatprep.subr.mxu0 0.0
    %2017 = vmatpush2.msra.mxu0 0.0
    %2018 = vmatprep.subr.mxu0 0.0
    %2019 = vmatpush2.msra.mxu0 0.0
    %2020 = vmatprep.subr.mxu0 0.0
    %2021 = vmatpush2.msra.mxu0 0.0
    %2022 = vmatprep.subr.mxu0 0.0
    %2023 = vmatpush2.msra.mxu0 0.0
    %2024 = vmatprep.subr.mxu0 0.0
    %2025 = vmatpush2.msra.mxu0 0.0
    %2026 = vmatprep.subr.mxu0 0.0
    %2027 = vmatpush2.msra.mxu0 0.0
    %2028 = vmatprep.subr.mxu0 0.0
    %2029 = vmatpush2.msra.mxu0 0.0
    %2030 = vmatprep.subr.mxu0 0.0
    %2031 = vmatpush2.msra.mxu0 0.0
    %2032 = vmatprep.subr.mxu0 0.0
    %2033 = vmatpush2.msra.mxu0 0.0
    %2034 = vmatprep.subr.mxu0 0.0
    %2035 = vmatpush2.msra.mxu0 0.0
    %2036 = vmatprep.subr.mxu0 0.0
    %2037 = vmatpush2.msra.mxu0 0.0
    %2038 = vmatprep.subr.mxu0 0.0
    %2039 = vmatpush2.msra.mxu0 0.0
    %2040 = vmatprep.subr.mxu0 0.0
    %2041 = vmatpush2.msra.mxu0 0.0
    %2042 = vmatprep.subr.mxu0 0.0
    %2043 = vmatpush2.msra.mxu0 0.0
    %2044 = vmatprep.mubr.f32.mxu0 0.0
    %2045 = vmatmul.mubr.f32.gmra.mxu0 %v1957
    %v2046 = vpop.f32.mrf.mxu0
    %v2047 = vadd.f32 %v1954, %v2046
    %v2048 = vpop.f32.mrf.mxu0
    %2049 = vmatprep.mubr.f32.mxu0 0.0
    %2050 = vmatmul.mubr.f32.gmra.mxu0 %v1960
    %v2051 = vpop.f32.mrf.mxu0
    %v2052 = vadd.f32 %v1954, %v2051
    %v2053 = vpop.f32.mrf.mxu0
    %2054 = vmatprep.mubr.f32.mxu0 0.0
    %2055 = vmatmul.mubr.f32.gmra.mxu0 %v1963
    %v2056 = vpop.f32.mrf.mxu0
    %v2057 = vadd.f32 %v1954, %v2056
    %v2058 = vpop.f32.mrf.mxu0
    %2059 = vmatprep.mubr.f32.mxu0 0.0
    %2060 = vmatmul.mubr.f32.gmra.mxu0 %v1966
    %v2061 = vpop.f32.mrf.mxu0
    %v2062 = vadd.f32 %v1954, %v2061
    %v2063 = vpop.f32.mrf.mxu0
    %2064 = vmatprep.mubr.f32.mxu0 0.0
    %2065 = vmatmul.mubr.f32.gmra.mxu0 %v1969
    %v2066 = vpop.f32.mrf.mxu0
    %v2067 = vadd.f32 %v1954, %v2066
    %v2068 = vpop.f32.mrf.mxu0
    %2069 = vmatprep.mubr.f32.mxu0 0.0
    %2070 = vmatmul.mubr.f32.gmra.mxu0 %v1972
    %v2071 = vpop.f32.mrf.mxu0
    %v2072 = vadd.f32 %v1954, %v2071
    %v2073 = vpop.f32.mrf.mxu0
    %2074 = vmatprep.mubr.f32.mxu0 0.0
    %2075 = vmatmul.mubr.f32.gmra.mxu0 %v1975
    %v2076 = vpop.f32.mrf.mxu0
    %v2077 = vadd.f32 %v1954, %v2076
    %v2078 = vpop.f32.mrf.mxu0
    %2079 = vmatprep.mubr.f32.mxu0 0.0
    %2080 = vmatmul.mubr.f32.gmra.mxu0 %v1978
    %v2081 = vpop.f32.mrf.mxu0
    %v2082 = vadd.f32 %v1954, %v2081
    %v2083 = vpop.f32.mrf.mxu0
    %2084 = vdwg.mxu0
    %v2085 = vtanh.pop %v2047
    %v2086 = vtanh.pop %v2052
    %v2087 = vtanh.pop %v2057
    %v2088 = vtanh.pop %v2062
    %v2089 = vtanh.pop %v2067
    %v2090 = vtanh.pop %v2072
    %v2091 = vtanh.pop %v2077
    %v2092 = vtanh.pop %v2082
    %v2094 = vlaneseq
    %v2095 = vshrl.u32 %v2094, 7
    %v2096 = vsub.s32 0, %v2095
    %v2097 = vrot.slane %v101, %v2096
    %v2099 = vmul.f32 %v2085, %v2097
    %v2100 = vsel %vm130, %v2099, 0.0
    %2101 = vadd.xlane.f32.xlu0 %v2100
    %v2102 = vpop.xlane.xlu0 %2101
    %v2103 = vmul.f32 %v2086, %v2097
    %v2104 = vsel %vm130, %v2103, 0.0
    %2105 = vadd.xlane.f32.xlu0 %v2104
    %v2106 = vpop.xlane.xlu0 %2105
    %v2107 = vmul.f32 %v2087, %v2097
    %v2108 = vsel %vm130, %v2107, 0.0
    %2109 = vadd.xlane.f32.xlu0 %v2108
    %v2110 = vpop.xlane.xlu0 %2109
    %v2111 = vmul.f32 %v2088, %v2097
    %v2112 = vsel %vm130, %v2111, 0.0
    %2113 = vadd.xlane.f32.xlu0 %v2112
    %v2114 = vpop.xlane.xlu0 %2113
    %v2115 = vmul.f32 %v2089, %v2097
    %v2116 = vsel %vm130, %v2115, 0.0
    %2117 = vadd.xlane.f32.xlu0 %v2116
    %v2118 = vpop.xlane.xlu0 %2117
    %v2119 = vmul.f32 %v2090, %v2097
    %v2120 = vsel %vm130, %v2119, 0.0
    %2121 = vadd.xlane.f32.xlu0 %v2120
    %v2122 = vpop.xlane.xlu0 %2121
    %v2123 = vmul.f32 %v2091, %v2097
    %v2124 = vsel %vm130, %v2123, 0.0
    %2125 = vadd.xlane.f32.xlu0 %v2124
    %v2126 = vpop.xlane.xlu0 %2125
    %v2127 = vmul.f32 %v2092, %v2097
    %v2128 = vsel %vm130, %v2127, 0.0
    %2129 = vadd.xlane.f32.xlu0 %v2128
    %v2130 = vpop.xlane.xlu0 %2129
    %vm2131 = vcmask 7168
    %v2132 = vsel %vm2131, %v2102, %v2106
    %vm2133 = vcmask 15360
    %v2134 = vsel %vm2133, %v2132, %v2110
    %vm2135 = vcmask 23552
    %v2136 = vsel %vm2135, %v2134, %v2114
    %vm2137 = vcmask 31744
    %v2138 = vsel %vm2137, %v2136, %v2118
    %vm2139 = vcmask 39936
    %v2140 = vsel %vm2139, %v2138, %v2122
    %vm2141 = vcmask 48128
    %v2142 = vsel %vm2141, %v2140, %v2126
    %vm2143 = vcmask 56320
    %v2144 = vsel %vm2143, %v2142, %v2130
    %vm2145 = vcmask 64512
    %v2146 = vsel %vm2145, %v2144, -inf
    %2147 = vmax.xlane.f32.xlu0 %v2146
    %v2148 = vpop.xlane.xlu0 %2147
    %v2149 = vsub.f32 %v2144, %v2148
    %v2150 = vmul.f32 %v2149, 1.442695
    %v2151 = vpow.pop %v2150
    %v2152 = vsel %vm2145, %v2151, 0.0
    %2153 = vadd.xlane.f32.xlu0 %v2152
    %v2154 = vpop.xlane.xlu0 %2153
    %v2155 = vrcp.pop %v2154
    %v2156 = vmul.f32 %v2151, %v2155
    %v2157 = vmul.f32 %v2156, %v83
    %v2158 = vsel %vm2145, %v2157, 0.0
    %2159 = vadd.xlane.f32.xlu0 %v2158
    %v2160 = vpop.xlane.xlu0 %2159
    %v2161 = vadd.f32 %v2160, 0.0001
    %v2162 = vrcp.pop %v2161
    %v2163 = vmul.f32 %v2157, %v2162
    %2165 = vset.pattern.permute.xlu0 0
    %2166 = vperm.xlu0 %2165, %v2163
    %v2167 = vpop.permute.xlu0 %2166
    %v2169 = vmul.f32 %v2167, %v441
    %v2170 = vmul.f32 %v2167, %v1905
    %2171 = vset.pattern.permute.xlu0 1
    %2172 = vperm.xlu0 %2171, %v2163
    %v2173 = vpop.permute.xlu0 %2172
    %v2175 = vmul.f32 %v2173, %v646
    %v2176 = vadd.f32 %v2169, %v2175
    %v2177 = vmul.f32 %v2173, %v1700
    %v2178 = vadd.f32 %v2170, %v2177
    %2179 = vset.pattern.permute.xlu0 2
    %2180 = vperm.xlu0 %2179, %v2163
    %v2181 = vpop.permute.xlu0 %2180
    %v2183 = vmul.f32 %v2181, %v851
    %v2184 = vadd.f32 %v2176, %v2183
    %v2185 = vmul.f32 %v2181, %v1495
    %v2186 = vadd.f32 %v2178, %v2185
    %2187 = vset.pattern.permute.xlu0 3
    %2188 = vperm.xlu0 %2187, %v2163
    %v2189 = vpop.permute.xlu0 %2188
    %v2191 = vmul.f32 %v2189, %v1056
    %v2192 = vadd.f32 %v2184, %v2191
    %v2193 = vmul.f32 %v2189, %v1290
    %v2194 = vadd.f32 %v2186, %v2193
    %2195 = vset.pattern.permute.xlu0 4
    %2196 = vperm.xlu0 %2195, %v2163
    %v2197 = vpop.permute.xlu0 %2196
    %v2199 = vmul.f32 %v2197, %v1261
    %v2200 = vadd.f32 %v2192, %v2199
    %v2201 = vmul.f32 %v2197, %v1085
    %v2202 = vadd.f32 %v2194, %v2201
    %2203 = vset.pattern.permute.xlu0 5
    %2204 = vperm.xlu0 %2203, %v2163
    %v2205 = vpop.permute.xlu0 %2204
    %v2207 = vmul.f32 %v2205, %v1466
    %v2208 = vadd.f32 %v2200, %v2207
    %v2209 = vmul.f32 %v2205, %v880
    %v2210 = vadd.f32 %v2202, %v2209
    %2211 = vset.pattern.permute.xlu0 6
    %2212 = vperm.xlu0 %2211, %v2163
    %v2213 = vpop.permute.xlu0 %2212
    %v2215 = vmul.f32 %v2213, %v1671
    %v2216 = vadd.f32 %v2208, %v2215
    %v2217 = vmul.f32 %v2213, %v675
    %v2218 = vadd.f32 %v2210, %v2217
    %2219 = vset.pattern.permute.xlu0 7
    %2220 = vperm.xlu0 %2219, %v2163
    %v2221 = vpop.permute.xlu0 %2220
    %v2223 = vmul.f32 %v2221, %v1876
    %v2224 = vadd.f32 %v2216, %v2223
    %v2225 = vmul.f32 %v2221, %v470
    %v2226 = vadd.f32 %v2218, %v2225
    %2228 = vrot.lane.b32.xlu0 %v2224, 112
    %v2229 = vpop.permute.xlu0 %2228
    %2232 = vrot.lane.b32.xlu0 %v2226, 80
    %v2233 = vpop.permute.xlu0 %2232
    %v2235 = vsel %vm272, %v2229, %v2233
    %v2237 = vlaneseq
    %v2238 = vshrl.u32 %v2237, 7
    %v2239 = vsub.s32 0, %v2238
    %v2240 = vrot.slane %v110, %v2239
    %v2243 = vsel %vm130, %v2235, 0
    %2245 = vmatprep.subr.mxu0 0.0
    %2246 = vmatpush1.msra.mxu0 0.0
    %2247 = vmatprep.subr.mxu0 0.0
    %2248 = vmatpush1.msra.mxu0 0.0
    %2249 = vmatprep.subr.mxu0 0.0
    %2250 = vmatpush1.msra.mxu0 0.0
    %2251 = vmatprep.subr.mxu0 0.0
    %2252 = vmatpush1.msra.mxu0 0.0
    %2253 = vmatprep.subr.mxu0 0.0
    %2254 = vmatpush1.msra.mxu0 0.0
    %2255 = vmatprep.subr.mxu0 0.0
    %2256 = vmatpush1.msra.mxu0 0.0
    %2257 = vmatprep.subr.mxu0 0.0
    %2258 = vmatpush1.msra.mxu0 0.0
    %2259 = vmatprep.subr.mxu0 0.0
    %2260 = vmatpush1.msra.mxu0 0.0
    %2261 = vmatprep.subr.mxu0 0.0
    %2262 = vmatpush1.msra.mxu0 0.0
    %2263 = vmatprep.subr.mxu0 0.0
    %2264 = vmatpush1.msra.mxu0 0.0
    %2265 = vmatprep.subr.mxu0 0.0
    %2266 = vmatpush1.msra.mxu0 0.0
    %2267 = vmatprep.subr.mxu0 0.0
    %2268 = vmatpush1.msra.mxu0 0.0
    %2269 = vmatprep.subr.mxu0 0.0
    %2270 = vmatpush1.msra.mxu0 %v105
    %2271 = vmatprep.subr.mxu0 0.0
    %2272 = vmatpush1.msra.mxu0 %v104
    %2273 = vmatprep.subr.mxu0 0.0
    %2274 = vmatpush1.msra.mxu0 %v103
    %2275 = vmatprep.subr.mxu0 0.0
    %2276 = vmatpush1.msra.mxu0 %v102
    %2277 = vmatprep.subr.mxu0 0.0
    %2278 = vmatpush2.msra.mxu0 0.0
    %2279 = vmatprep.subr.mxu0 0.0
    %2280 = vmatpush2.msra.mxu0 0.0
    %2281 = vmatprep.subr.mxu0 0.0
    %2282 = vmatpush2.msra.mxu0 0.0
    %2283 = vmatprep.subr.mxu0 0.0
    %2284 = vmatpush2.msra.mxu0 0.0
    %2285 = vmatprep.subr.mxu0 0.0
    %2286 = vmatpush2.msra.mxu0 0.0
    %2287 = vmatprep.subr.mxu0 0.0
    %2288 = vmatpush2.msra.mxu0 0.0
    %2289 = vmatprep.subr.mxu0 0.0
    %2290 = vmatpush2.msra.mxu0 0.0
    %2291 = vmatprep.subr.mxu0 0.0
    %2292 = vmatpush2.msra.mxu0 0.0
    %2293 = vmatprep.subr.mxu0 0.0
    %2294 = vmatpush2.msra.mxu0 0.0
    %2295 = vmatprep.subr.mxu0 0.0
    %2296 = vmatpush2.msra.mxu0 0.0
    %2297 = vmatprep.subr.mxu0 0.0
    %2298 = vmatpush2.msra.mxu0 0.0
    %2299 = vmatprep.subr.mxu0 0.0
    %2300 = vmatpush2.msra.mxu0 0.0
    %2301 = vmatprep.subr.mxu0 0.0
    %2302 = vmatpush2.msra.mxu0 0.0
    %2303 = vmatprep.subr.mxu0 0.0
    %2304 = vmatpush2.msra.mxu0 0.0
    %2305 = vmatprep.subr.mxu0 0.0
    %2306 = vmatpush2.msra.mxu0 0.0
    %2307 = vmatprep.subr.mxu0 0.0
    %2308 = vmatpush2.msra.mxu0 0.0
    %2309 = vmatprep.mubr.f32.mxu0 0.0
    %2310 = vmatmul.mubr.f32.gmra.mxu0 %v2243
    %v2311 = vpop.f32.mrf.mxu0
    %v2312 = vadd.f32 %v2240, %v2311
    %v2313 = vpop.f32.mrf.mxu0
    %2314 = vdwg.mxu0
    %v2316 = vlaneseq
    %v2317 = vshrl.u32 %v2316, 7
    %v2318 = vsub.s32 0, %v2317
    %v2319 = vrot.slane %v111, %v2318
    %v2322 = vlaneseq
    %v2323 = vshrl.u32 %v2322, 7
    %v2324 = vsub.s32 0, %v2323
    %v2325 = vrot.slane %v112, %v2324
    %2327 = vmatprep.subr.mxu0 0.0
    %2328 = vmatpush1.msra.mxu0 0.0
    %2329 = vmatprep.subr.mxu0 0.0
    %2330 = vmatpush1.msra.mxu0 0.0
    %2331 = vmatprep.subr.mxu0 0.0
    %2332 = vmatpush1.msra.mxu0 0.0
    %2333 = vmatprep.subr.mxu0 0.0
    %2334 = vmatpush1.msra.mxu0 0.0
    %2335 = vmatprep.subr.mxu0 0.0
    %2336 = vmatpush1.msra.mxu0 0.0
    %2337 = vmatprep.subr.mxu0 0.0
    %2338 = vmatpush1.msra.mxu0 0.0
    %2339 = vmatprep.subr.mxu0 0.0
    %2340 = vmatpush1.msra.mxu0 0.0
    %2341 = vmatprep.subr.mxu0 0.0
    %2342 = vmatpush1.msra.mxu0 0.0
    %2343 = vmatprep.subr.mxu0 0.0
    %2344 = vmatpush1.msra.mxu0 0.0
    %2345 = vmatprep.subr.mxu0 0.0
    %2346 = vmatpush1.msra.mxu0 0.0
    %2347 = vmatprep.subr.mxu0 0.0
    %2348 = vmatpush1.msra.mxu0 0.0
    %2349 = vmatprep.subr.mxu0 0.0
    %2350 = vmatpush1.msra.mxu0 0.0
    %2351 = vmatprep.subr.mxu0 0.0
    %2352 = vmatpush1.msra.mxu0 0.0
    %2353 = vmatprep.subr.mxu0 0.0
    %2354 = vmatpush1.msra.mxu0 0.0
    %2355 = vmatprep.subr.mxu0 0.0
    %2356 = vmatpush1.msra.mxu0 %v107
    %2357 = vmatprep.subr.mxu0 0.0
    %2358 = vmatpush1.msra.mxu0 %v106
    %2359 = vmatprep.subr.mxu0 0.0
    %2360 = vmatpush2.msra.mxu0 0.0
    %2361 = vmatprep.subr.mxu0 0.0
    %2362 = vmatpush2.msra.mxu0 0.0
    %2363 = vmatprep.subr.mxu0 0.0
    %2364 = vmatpush2.msra.mxu0 0.0
    %2365 = vmatprep.subr.mxu0 0.0
    %2366 = vmatpush2.msra.mxu0 0.0
    %2367 = vmatprep.subr.mxu0 0.0
    %2368 = vmatpush2.msra.mxu0 0.0
    %2369 = vmatprep.subr.mxu0 0.0
    %2370 = vmatpush2.msra.mxu0 0.0
    %2371 = vmatprep.subr.mxu0 0.0
    %2372 = vmatpush2.msra.mxu0 0.0
    %2373 = vmatprep.subr.mxu0 0.0
    %2374 = vmatpush2.msra.mxu0 0.0
    %2375 = vmatprep.subr.mxu0 0.0
    %2376 = vmatpush2.msra.mxu0 0.0
    %2377 = vmatprep.subr.mxu0 0.0
    %2378 = vmatpush2.msra.mxu0 0.0
    %2379 = vmatprep.subr.mxu0 0.0
    %2380 = vmatpush2.msra.mxu0 0.0
    %2381 = vmatprep.subr.mxu0 0.0
    %2382 = vmatpush2.msra.mxu0 0.0
    %2383 = vmatprep.subr.mxu0 0.0
    %2384 = vmatpush2.msra.mxu0 0.0
    %2385 = vmatprep.subr.mxu0 0.0
    %2386 = vmatpush2.msra.mxu0 0.0
    %2387 = vmatprep.subr.mxu0 0.0
    %2388 = vmatpush2.msra.mxu0 0.0
    %2389 = vmatprep.subr.mxu0 0.0
    %2390 = vmatpush2.msra.mxu0 0.0
    %2391 = vmatprep.mubr.f32.mxu0 0.0
    %2392 = vmatmul.mubr.f32.gmra.mxu0 %v274
    %v2393 = vpop.f32.mrf.mxu0
    %v2394 = vadd.f32 %v2319, %v2393
    %v2395 = vpop.f32.mrf.mxu0
    %2396 = vdwg.mxu0
    %2397 = vmatprep.subr.mxu0 0.0
    %2398 = vmatpush1.msra.mxu0 0.0
    %2399 = vmatprep.subr.mxu0 0.0
    %2400 = vmatpush1.msra.mxu0 0.0
    %2401 = vmatprep.subr.mxu0 0.0
    %2402 = vmatpush1.msra.mxu0 0.0
    %2403 = vmatprep.subr.mxu0 0.0
    %2404 = vmatpush1.msra.mxu0 0.0
    %2405 = vmatprep.subr.mxu0 0.0
    %2406 = vmatpush1.msra.mxu0 0.0
    %2407 = vmatprep.subr.mxu0 0.0
    %2408 = vmatpush1.msra.mxu0 0.0
    %2409 = vmatprep.subr.mxu0 0.0
    %2410 = vmatpush1.msra.mxu0 0.0
    %2411 = vmatprep.subr.mxu0 0.0
    %2412 = vmatpush1.msra.mxu0 0.0
    %2413 = vmatprep.subr.mxu0 0.0
    %2414 = vmatpush1.msra.mxu0 0.0
    %2415 = vmatprep.subr.mxu0 0.0
    %2416 = vmatpush1.msra.mxu0 0.0
    %2417 = vmatprep.subr.mxu0 0.0
    %2418 = vmatpush1.msra.mxu0 0.0
    %2419 = vmatprep.subr.mxu0 0.0
    %2420 = vmatpush1.msra.mxu0 0.0
    %2421 = vmatprep.subr.mxu0 0.0
    %2422 = vmatpush1.msra.mxu0 0.0
    %2423 = vmatprep.subr.mxu0 0.0
    %2424 = vmatpush1.msra.mxu0 0.0
    %2425 = vmatprep.subr.mxu0 0.0
    %2426 = vmatpush1.msra.mxu0 %v109
    %2427 = vmatprep.subr.mxu0 0.0
    %2428 = vmatpush1.msra.mxu0 %v108
    %2429 = vmatprep.subr.mxu0 0.0
    %2430 = vmatpush2.msra.mxu0 0.0
    %2431 = vmatprep.subr.mxu0 0.0
    %2432 = vmatpush2.msra.mxu0 0.0
    %2433 = vmatprep.subr.mxu0 0.0
    %2434 = vmatpush2.msra.mxu0 0.0
    %2435 = vmatprep.subr.mxu0 0.0
    %2436 = vmatpush2.msra.mxu0 0.0
    %2437 = vmatprep.subr.mxu0 0.0
    %2438 = vmatpush2.msra.mxu0 0.0
    %2439 = vmatprep.subr.mxu0 0.0
    %2440 = vmatpush2.msra.mxu0 0.0
    %2441 = vmatprep.subr.mxu0 0.0
    %2442 = vmatpush2.msra.mxu0 0.0
    %2443 = vmatprep.subr.mxu0 0.0
    %2444 = vmatpush2.msra.mxu0 0.0
    %2445 = vmatprep.subr.mxu0 0.0
    %2446 = vmatpush2.msra.mxu0 0.0
    %2447 = vmatprep.subr.mxu0 0.0
    %2448 = vmatpush2.msra.mxu0 0.0
    %2449 = vmatprep.subr.mxu0 0.0
    %2450 = vmatpush2.msra.mxu0 0.0
    %2451 = vmatprep.subr.mxu0 0.0
    %2452 = vmatpush2.msra.mxu0 0.0
    %2453 = vmatprep.subr.mxu0 0.0
    %2454 = vmatpush2.msra.mxu0 0.0
    %2455 = vmatprep.subr.mxu0 0.0
    %2456 = vmatpush2.msra.mxu0 0.0
    %2457 = vmatprep.subr.mxu0 0.0
    %2458 = vmatpush2.msra.mxu0 0.0
    %2459 = vmatprep.subr.mxu0 0.0
    %2460 = vmatpush2.msra.mxu0 0.0
    %2461 = vmatprep.mubr.f32.mxu0 0.0
    %2462 = vmatmul.mubr.f32.gmra.mxu0 %v274
    %v2463 = vpop.f32.mrf.mxu0
    %v2464 = vadd.f32 %v2325, %v2463
    %v2465 = vpop.f32.mrf.mxu0
    %2466 = vdwg.mxu0
    %v2467 = vadd.f32 %v2312, %v2394
    %v2468 = vxor.u32 %v2467, 2147483648
    %v2469 = vmul.f32 %v2468, 1.442695
    %v2470 = vpow.pop %v2469
    %v2471 = vadd.f32 %v2470, 1.0
    %v2472 = vrcp.pop %v2471
    %v2473 = vmul.f32 1.0, %v2472
    %2475 = vrot.lane.b32.xlu0 %v2394, 96
    %v2476 = vpop.permute.xlu0 %2475
    %v2478 = vmul.f32 %v2473, %v2476
    %2480 = vrot.lane.b32.xlu0 %v2478, 32
    %v2481 = vpop.permute.xlu0 %2480
    %v2483 = vadd.f32 %v2312, %v2481
    %v2484 = vtanh.pop %v2483
    %v2485 = vsub.f32 1.0, %v2473
    %2487 = vrot.lane.b32.xlu0 %v2484, 112
    %v2488 = vpop.permute.xlu0 %2487
    %v2490 = vmul.f32 %v2485, %v2488
    %v2491 = vmul.f32 %v2473, 0.0
    %v2492 = vadd.f32 %v2490, %v2491
    %v2494 = vrot.slane %v2464, 2
    %2495 = vrot.lane.b32.xlu0 %v2494, 48
    %v2496 = vpop.permute.xlu0 %2495
    %v2498 = vadd.f32 %v2312, %v2496
    %v2499 = vxor.u32 %v2498, 2147483648
    %v2500 = vmul.f32 %v2499, 1.442695
    %v2501 = vpow.pop %v2500
    %v2502 = vadd.f32 %v2501, 1.0
    %v2503 = vrcp.pop %v2502
    %v2504 = vmul.f32 1.0, %v2503
    %2505 = vrot.lane.b32.xlu0 %v2494, 16
    %v2506 = vpop.permute.xlu0 %2505
    %v2508 = vmul.f32 %v2504, %v2506
    %2510 = vrot.lane.b32.xlu0 %v2508, 32
    %v2511 = vpop.permute.xlu0 %2510
    %v2513 = vadd.f32 %v2312, %v2511
    %v2514 = vtanh.pop %v2513
    %v2515 = vsub.f32 1.0, %v2504
    %2517 = vrot.lane.b32.xlu0 %v2514, 112
    %v2518 = vpop.permute.xlu0 %2517
    %v2520 = vmul.f32 %v2515, %v2518
    %v2521 = vmul.f32 %v2504, 0.0
    %v2522 = vadd.f32 %v2520, %v2521
    %2524 = vrot.lane.b32.xlu0 %v2492, 112
    %v2525 = vpop.permute.xlu0 %2524
    %v2526 = vsel %vm272, %v2525, 0
    %2528 = vmatprep.subr.mxu0 0.0
    %2529 = vmatpush1.msra.mxu0 0.0
    %2530 = vmatprep.subr.mxu0 0.0
    %2531 = vmatpush1.msra.mxu0 0.0
    %2532 = vmatprep.subr.mxu0 0.0
    %2533 = vmatpush1.msra.mxu0 0.0
    %2534 = vmatprep.subr.mxu0 0.0
    %2535 = vmatpush1.msra.mxu0 0.0
    %2536 = vmatprep.subr.mxu0 0.0
    %2537 = vmatpush1.msra.mxu0 0.0
    %2538 = vmatprep.subr.mxu0 0.0
    %2539 = vmatpush1.msra.mxu0 0.0
    %2540 = vmatprep.subr.mxu0 0.0
    %2541 = vmatpush1.msra.mxu0 0.0
    %2542 = vmatprep.subr.mxu0 0.0
    %2543 = vmatpush1.msra.mxu0 0.0
    %2544 = vmatprep.subr.mxu0 0.0
    %2545 = vmatpush1.msra.mxu0 0.0
    %2546 = vmatprep.subr.mxu0 0.0
    %2547 = vmatpush1.msra.mxu0 0.0
    %2548 = vmatprep.subr.mxu0 0.0
    %2549 = vmatpush1.msra.mxu0 0.0
    %2550 = vmatprep.subr.mxu0 0.0
    %2551 = vmatpush1.msra.mxu0 0.0
    %2552 = vmatprep.subr.mxu0 0.0
    %2553 = vmatpush1.msra.mxu0 0.0
    %2554 = vmatprep.subr.mxu0 0.0
    %2555 = vmatpush1.msra.mxu0 0.0
    %2556 = vmatprep.subr.mxu0 0.0
    %2557 = vmatpush1.msra.mxu0 %v107
    %2558 = vmatprep.subr.mxu0 0.0
    %2559 = vmatpush1.msra.mxu0 %v106
    %2560 = vmatprep.subr.mxu0 0.0
    %2561 = vmatpush2.msra.mxu0 0.0
    %2562 = vmatprep.subr.mxu0 0.0
    %2563 = vmatpush2.msra.mxu0 0.0
    %2564 = vmatprep.subr.mxu0 0.0
    %2565 = vmatpush2.msra.mxu0 0.0
    %2566 = vmatprep.subr.mxu0 0.0
    %2567 = vmatpush2.msra.mxu0 0.0
    %2568 = vmatprep.subr.mxu0 0.0
    %2569 = vmatpush2.msra.mxu0 0.0
    %2570 = vmatprep.subr.mxu0 0.0
    %2571 = vmatpush2.msra.mxu0 0.0
    %2572 = vmatprep.subr.mxu0 0.0
    %2573 = vmatpush2.msra.mxu0 0.0
    %2574 = vmatprep.subr.mxu0 0.0
    %2575 = vmatpush2.msra.mxu0 0.0
    %2576 = vmatprep.subr.mxu0 0.0
    %2577 = vmatpush2.msra.mxu0 0.0
    %2578 = vmatprep.subr.mxu0 0.0
    %2579 = vmatpush2.msra.mxu0 0.0
    %2580 = vmatprep.subr.mxu0 0.0
    %2581 = vmatpush2.msra.mxu0 0.0
    %2582 = vmatprep.subr.mxu0 0.0
    %2583 = vmatpush2.msra.mxu0 0.0
    %2584 = vmatprep.subr.mxu0 0.0
    %2585 = vmatpush2.msra.mxu0 0.0
    %2586 = vmatprep.subr.mxu0 0.0
    %2587 = vmatpush2.msra.mxu0 0.0
    %2588 = vmatprep.subr.mxu0 0.0
    %2589 = vmatpush2.msra.mxu0 0.0
    %2590 = vmatprep.subr.mxu0 0.0
    %2591 = vmatpush2.msra.mxu0 0.0
    %2592 = vmatprep.mubr.f32.mxu0 0.0
    %2593 = vmatmul.mubr.f32.gmra.mxu0 %v2526
    %v2594 = vpop.f32.mrf.mxu0
    %v2595 = vadd.f32 %v2319, %v2594
    %v2596 = vpop.f32.mrf.mxu0
    %2597 = vdwg.mxu0
    %v2599 = vrot.slane %v2522, 6
    %2600 = vrot.lane.b32.xlu0 %v2599, 64
    %v2601 = vpop.permute.xlu0 %2600
    %v2602 = vsel %vm272, %v2601, 0
    %2604 = vmatprep.subr.mxu0 0.0
    %2605 = vmatpush1.msra.mxu0 0.0
    %2606 = vmatprep.subr.mxu0 0.0
    %2607 = vmatpush1.msra.mxu0 0.0
    %2608 = vmatprep.subr.mxu0 0.0
    %2609 = vmatpush1.msra.mxu0 0.0
    %2610 = vmatprep.subr.mxu0 0.0
    %2611 = vmatpush1.msra.mxu0 0.0
    %2612 = vmatprep.subr.mxu0 0.0
    %2613 = vmatpush1.msra.mxu0 0.0
    %2614 = vmatprep.subr.mxu0 0.0
    %2615 = vmatpush1.msra.mxu0 0.0
    %2616 = vmatprep.subr.mxu0 0.0
    %2617 = vmatpush1.msra.mxu0 0.0
    %2618 = vmatprep.subr.mxu0 0.0
    %2619 = vmatpush1.msra.mxu0 0.0
    %2620 = vmatprep.subr.mxu0 0.0
    %2621 = vmatpush1.msra.mxu0 0.0
    %2622 = vmatprep.subr.mxu0 0.0
    %2623 = vmatpush1.msra.mxu0 0.0
    %2624 = vmatprep.subr.mxu0 0.0
    %2625 = vmatpush1.msra.mxu0 0.0
    %2626 = vmatprep.subr.mxu0 0.0
    %2627 = vmatpush1.msra.mxu0 0.0
    %2628 = vmatprep.subr.mxu0 0.0
    %2629 = vmatpush1.msra.mxu0 0.0
    %2630 = vmatprep.subr.mxu0 0.0
    %2631 = vmatpush1.msra.mxu0 0.0
    %2632 = vmatprep.subr.mxu0 0.0
    %2633 = vmatpush1.msra.mxu0 %v109
    %2634 = vmatprep.subr.mxu0 0.0
    %2635 = vmatpush1.msra.mxu0 %v108
    %2636 = vmatprep.subr.mxu0 0.0
    %2637 = vmatpush2.msra.mxu0 0.0
    %2638 = vmatprep.subr.mxu0 0.0
    %2639 = vmatpush2.msra.mxu0 0.0
    %2640 = vmatprep.subr.mxu0 0.0
    %2641 = vmatpush2.msra.mxu0 0.0
    %2642 = vmatprep.subr.mxu0 0.0
    %2643 = vmatpush2.msra.mxu0 0.0
    %2644 = vmatprep.subr.mxu0 0.0
    %2645 = vmatpush2.msra.mxu0 0.0
    %2646 = vmatprep.subr.mxu0 0.0
    %2647 = vmatpush2.msra.mxu0 0.0
    %2648 = vmatprep.subr.mxu0 0.0
    %2649 = vmatpush2.msra.mxu0 0.0
    %2650 = vmatprep.subr.mxu0 0.0
    %2651 = vmatpush2.msra.mxu0 0.0
    %2652 = vmatprep.subr.mxu0 0.0
    %2653 = vmatpush2.msra.mxu0 0.0
    %2654 = vmatprep.subr.mxu0 0.0
    %2655 = vmatpush2.msra.mxu0 0.0
    %2656 = vmatprep.subr.mxu0 0.0
    %2657 = vmatpush2.msra.mxu0 0.0
    %2658 = vmatprep.subr.mxu0 0.0
    %2659 = vmatpush2.msra.mxu0 0.0
    %2660 = vmatprep.subr.mxu0 0.0
    %2661 = vmatpush2.msra.mxu0 0.0
    %2662 = vmatprep.subr.mxu0 0.0
    %2663 = vmatpush2.msra.mxu0 0.0
    %2664 = vmatprep.subr.mxu0 0.0
    %2665 = vmatpush2.msra.mxu0 0.0
    %2666 = vmatprep.subr.mxu0 0.0
    %2667 = vmatpush2.msra.mxu0 0.0
    %2668 = vmatprep.mubr.f32.mxu0 0.0
    %2669 = vmatmul.mubr.f32.gmra.mxu0 %v2602
    %v2670 = vpop.f32.mrf.mxu0
    %v2671 = vadd.f32 %v2325, %v2670
    %v2672 = vpop.f32.mrf.mxu0
    %2673 = vdwg.mxu0
    %v2675 = vrot.slane %v2595, 6
    %v2677 = vadd.f32 %v2312, %v2675
    %v2678 = vxor.u32 %v2677, 2147483648
    %v2679 = vmul.f32 %v2678, 1.442695
    %v2680 = vpow.pop %v2679
    %v2681 = vadd.f32 %v2680, 1.0
    %v2682 = vrcp.pop %v2681
    %v2683 = vmul.f32 1.0, %v2682
    %2684 = vrot.lane.b32.xlu0 %v2675, 96
    %v2685 = vpop.permute.xlu0 %2684
    %v2687 = vmul.f32 %v2683, %v2685
    %2689 = vrot.lane.b32.xlu0 %v2687, 32
    %v2690 = vpop.permute.xlu0 %2689
    %v2692 = vadd.f32 %v2312, %v2690
    %v2693 = vtanh.pop %v2692
    %v2694 = vsub.f32 1.0, %v2683
    %2696 = vrot.lane.b32.xlu0 %v2693, 112
    %v2697 = vpop.permute.xlu0 %2696
    %v2699 = vmul.f32 %v2694, %v2697
    %v2700 = vrot.slane %v2492, 6
    %v2702 = vmul.f32 %v2683, %v2700
    %v2703 = vadd.f32 %v2699, %v2702
    %v2705 = vrot.slane %v2671, 4
    %2706 = vrot.lane.b32.xlu0 %v2705, 48
    %v2707 = vpop.permute.xlu0 %2706
    %v2709 = vadd.f32 %v2312, %v2707
    %v2710 = vxor.u32 %v2709, 2147483648
    %v2711 = vmul.f32 %v2710, 1.442695
    %v2712 = vpow.pop %v2711
    %v2713 = vadd.f32 %v2712, 1.0
    %v2714 = vrcp.pop %v2713
    %v2715 = vmul.f32 1.0, %v2714
    %2716 = vrot.lane.b32.xlu0 %v2705, 16
    %v2717 = vpop.permute.xlu0 %2716
    %v2719 = vmul.f32 %v2715, %v2717
    %2721 = vrot.lane.b32.xlu0 %v2719, 32
    %v2722 = vpop.permute.xlu0 %2721
    %v2724 = vadd.f32 %v2312, %v2722
    %v2725 = vtanh.pop %v2724
    %v2726 = vsub.f32 1.0, %v2715
    %2728 = vrot.lane.b32.xlu0 %v2725, 112
    %v2729 = vpop.permute.xlu0 %2728
    %v2731 = vmul.f32 %v2726, %v2729
    %v2732 = vrot.slane %v2522, 2
    %v2734 = vmul.f32 %v2715, %v2732
    %v2735 = vadd.f32 %v2731, %v2734
    %v2737 = vrot.slane %v2703, 2
    %2738 = vrot.lane.b32.xlu0 %v2737, 112
    %v2739 = vpop.permute.xlu0 %2738
    %v2740 = vsel %vm272, %v2739, 0
    %2742 = vmatprep.subr.mxu0 0.0
    %2743 = vmatpush1.msra.mxu0 0.0
    %2744 = vmatprep.subr.mxu0 0.0
    %2745 = vmatpush1.msra.mxu0 0.0
    %2746 = vmatprep.subr.mxu0 0.0
    %2747 = vmatpush1.msra.mxu0 0.0
    %2748 = vmatprep.subr.mxu0 0.0
    %2749 = vmatpush1.msra.mxu0 0.0
    %2750 = vmatprep.subr.mxu0 0.0
    %2751 = vmatpush1.msra.mxu0 0.0
    %2752 = vmatprep.subr.mxu0 0.0
    %2753 = vmatpush1.msra.mxu0 0.0
    %2754 = vmatprep.subr.mxu0 0.0
    %2755 = vmatpush1.msra.mxu0 0.0
    %2756 = vmatprep.subr.mxu0 0.0
    %2757 = vmatpush1.msra.mxu0 0.0
    %2758 = vmatprep.subr.mxu0 0.0
    %2759 = vmatpush1.msra.mxu0 0.0
    %2760 = vmatprep.subr.mxu0 0.0
    %2761 = vmatpush1.msra.mxu0 0.0
    %2762 = vmatprep.subr.mxu0 0.0
    %2763 = vmatpush1.msra.mxu0 0.0
    %2764 = vmatprep.subr.mxu0 0.0
    %2765 = vmatpush1.msra.mxu0 0.0
    %2766 = vmatprep.subr.mxu0 0.0
    %2767 = vmatpush1.msra.mxu0 0.0
    %2768 = vmatprep.subr.mxu0 0.0
    %2769 = vmatpush1.msra.mxu0 0.0
    %2770 = vmatprep.subr.mxu0 0.0
    %2771 = vmatpush1.msra.mxu0 %v107
    %2772 = vmatprep.subr.mxu0 0.0
    %2773 = vmatpush1.msra.mxu0 %v106
    %2774 = vmatprep.subr.mxu0 0.0
    %2775 = vmatpush2.msra.mxu0 0.0
    %2776 = vmatprep.subr.mxu0 0.0
    %2777 = vmatpush2.msra.mxu0 0.0
    %2778 = vmatprep.subr.mxu0 0.0
    %2779 = vmatpush2.msra.mxu0 0.0
    %2780 = vmatprep.subr.mxu0 0.0
    %2781 = vmatpush2.msra.mxu0 0.0
    %2782 = vmatprep.subr.mxu0 0.0
    %2783 = vmatpush2.msra.mxu0 0.0
    %2784 = vmatprep.subr.mxu0 0.0
    %2785 = vmatpush2.msra.mxu0 0.0
    %2786 = vmatprep.subr.mxu0 0.0
    %2787 = vmatpush2.msra.mxu0 0.0
    %2788 = vmatprep.subr.mxu0 0.0
    %2789 = vmatpush2.msra.mxu0 0.0
    %2790 = vmatprep.subr.mxu0 0.0
    %2791 = vmatpush2.msra.mxu0 0.0
    %2792 = vmatprep.subr.mxu0 0.0
    %2793 = vmatpush2.msra.mxu0 0.0
    %2794 = vmatprep.subr.mxu0 0.0
    %2795 = vmatpush2.msra.mxu0 0.0
    %2796 = vmatprep.subr.mxu0 0.0
    %2797 = vmatpush2.msra.mxu0 0.0
    %2798 = vmatprep.subr.mxu0 0.0
    %2799 = vmatpush2.msra.mxu0 0.0
    %2800 = vmatprep.subr.mxu0 0.0
    %2801 = vmatpush2.msra.mxu0 0.0
    %2802 = vmatprep.subr.mxu0 0.0
    %2803 = vmatpush2.msra.mxu0 0.0
    %2804 = vmatprep.subr.mxu0 0.0
    %2805 = vmatpush2.msra.mxu0 0.0
    %2806 = vmatprep.mubr.f32.mxu0 0.0
    %2807 = vmatmul.mubr.f32.gmra.mxu0 %v2740
    %v2808 = vpop.f32.mrf.mxu0
    %v2809 = vadd.f32 %v2319, %v2808
    %v2810 = vpop.f32.mrf.mxu0
    %2811 = vdwg.mxu0
    %v2813 = vrot.slane %v2735, 4
    %2814 = vrot.lane.b32.xlu0 %v2813, 64
    %v2815 = vpop.permute.xlu0 %2814
    %v2816 = vsel %vm272, %v2815, 0
    %2818 = vmatprep.subr.mxu0 0.0
    %2819 = vmatpush1.msra.mxu0 0.0
    %2820 = vmatprep.subr.mxu0 0.0
    %2821 = vmatpush1.msra.mxu0 0.0
    %2822 = vmatprep.subr.mxu0 0.0
    %2823 = vmatpush1.msra.mxu0 0.0
    %2824 = vmatprep.subr.mxu0 0.0
    %2825 = vmatpush1.msra.mxu0 0.0
    %2826 = vmatprep.subr.mxu0 0.0
    %2827 = vmatpush1.msra.mxu0 0.0
    %2828 = vmatprep.subr.mxu0 0.0
    %2829 = vmatpush1.msra.mxu0 0.0
    %2830 = vmatprep.subr.mxu0 0.0
    %2831 = vmatpush1.msra.mxu0 0.0
    %2832 = vmatprep.subr.mxu0 0.0
    %2833 = vmatpush1.msra.mxu0 0.0
    %2834 = vmatprep.subr.mxu0 0.0
    %2835 = vmatpush1.msra.mxu0 0.0
    %2836 = vmatprep.subr.mxu0 0.0
    %2837 = vmatpush1.msra.mxu0 0.0
    %2838 = vmatprep.subr.mxu0 0.0
    %2839 = vmatpush1.msra.mxu0 0.0
    %2840 = vmatprep.subr.mxu0 0.0
    %2841 = vmatpush1.msra.mxu0 0.0
    %2842 = vmatprep.subr.mxu0 0.0
    %2843 = vmatpush1.msra.mxu0 0.0
    %2844 = vmatprep.subr.mxu0 0.0
    %2845 = vmatpush1.msra.mxu0 0.0
    %2846 = vmatprep.subr.mxu0 0.0
    %2847 = vmatpush1.msra.mxu0 %v109
    %2848 = vmatprep.subr.mxu0 0.0
    %2849 = vmatpush1.msra.mxu0 %v108
    %2850 = vmatprep.subr.mxu0 0.0
    %2851 = vmatpush2.msra.mxu0 0.0
    %2852 = vmatprep.subr.mxu0 0.0
    %2853 = vmatpush2.msra.mxu0 0.0
    %2854 = vmatprep.subr.mxu0 0.0
    %2855 = vmatpush2.msra.mxu0 0.0
    %2856 = vmatprep.subr.mxu0 0.0
    %2857 = vmatpush2.msra.mxu0 0.0
    %2858 = vmatprep.subr.mxu0 0.0
    %2859 = vmatpush2.msra.mxu0 0.0
    %2860 = vmatprep.subr.mxu0 0.0
    %2861 = vmatpush2.msra.mxu0 0.0
    %2862 = vmatprep.subr.mxu0 0.0
    %2863 = vmatpush2.msra.mxu0 0.0
    %2864 = vmatprep.subr.mxu0 0.0
    %2865 = vmatpush2.msra.mxu0 0.0
    %2866 = vmatprep.subr.mxu0 0.0
    %2867 = vmatpush2.msra.mxu0 0.0
    %2868 = vmatprep.subr.mxu0 0.0
    %2869 = vmatpush2.msra.mxu0 0.0
    %2870 = vmatprep.subr.mxu0 0.0
    %2871 = vmatpush2.msra.mxu0 0.0
    %2872 = vmatprep.subr.mxu0 0.0
    %2873 = vmatpush2.msra.mxu0 0.0
    %2874 = vmatprep.subr.mxu0 0.0
    %2875 = vmatpush2.msra.mxu0 0.0
    %2876 = vmatprep.subr.mxu0 0.0
    %2877 = vmatpush2.msra.mxu0 0.0
    %2878 = vmatprep.subr.mxu0 0.0
    %2879 = vmatpush2.msra.mxu0 0.0
    %2880 = vmatprep.subr.mxu0 0.0
    %2881 = vmatpush2.msra.mxu0 0.0
    %2882 = vmatprep.mubr.f32.mxu0 0.0
    %2883 = vmatmul.mubr.f32.gmra.mxu0 %v2816
    %v2884 = vpop.f32.mrf.mxu0
    %v2885 = vadd.f32 %v2325, %v2884
    %v2886 = vpop.f32.mrf.mxu0
    %2887 = vdwg.mxu0
    %v2889 = vrot.slane %v2809, 4
    %v2891 = vadd.f32 %v2312, %v2889
    %v2892 = vxor.u32 %v2891, 2147483648
    %v2893 = vmul.f32 %v2892, 1.442695
    %v2894 = vpow.pop %v2893
    %v2895 = vadd.f32 %v2894, 1.0
    %v2896 = vrcp.pop %v2895
    %v2897 = vmul.f32 1.0, %v2896
    %2898 = vrot.lane.b32.xlu0 %v2889, 96
    %v2899 = vpop.permute.xlu0 %2898
    %v2901 = vmul.f32 %v2897, %v2899
    %2903 = vrot.lane.b32.xlu0 %v2901, 32
    %v2904 = vpop.permute.xlu0 %2903
    %v2906 = vadd.f32 %v2312, %v2904
    %v2907 = vtanh.pop %v2906
    %v2908 = vsub.f32 1.0, %v2897
    %2910 = vrot.lane.b32.xlu0 %v2907, 112
    %v2911 = vpop.permute.xlu0 %2910
    %v2913 = vmul.f32 %v2908, %v2911
    %v2914 = vrot.slane %v2703, 6
    %v2916 = vmul.f32 %v2897, %v2914
    %v2917 = vadd.f32 %v2913, %v2916
    %v2919 = vrot.slane %v2885, 6
    %2920 = vrot.lane.b32.xlu0 %v2919, 48
    %v2921 = vpop.permute.xlu0 %2920
    %v2923 = vadd.f32 %v2312, %v2921
    %v2924 = vxor.u32 %v2923, 2147483648
    %v2925 = vmul.f32 %v2924, 1.442695
    %v2926 = vpow.pop %v2925
    %v2927 = vadd.f32 %v2926, 1.0
    %v2928 = vrcp.pop %v2927
    %v2929 = vmul.f32 1.0, %v2928
    %2930 = vrot.lane.b32.xlu0 %v2919, 16
    %v2931 = vpop.permute.xlu0 %2930
    %v2933 = vmul.f32 %v2929, %v2931
    %2935 = vrot.lane.b32.xlu0 %v2933, 32
    %v2936 = vpop.permute.xlu0 %2935
    %v2938 = vadd.f32 %v2312, %v2936
    %v2939 = vtanh.pop %v2938
    %v2940 = vsub.f32 1.0, %v2929
    %2942 = vrot.lane.b32.xlu0 %v2939, 112
    %v2943 = vpop.permute.xlu0 %2942
    %v2945 = vmul.f32 %v2940, %v2943
    %v2946 = vrot.slane %v2735, 2
    %v2948 = vmul.f32 %v2929, %v2946
    %v2949 = vadd.f32 %v2945, %v2948
    %v2951 = vrot.slane %v2917, 4
    %2952 = vrot.lane.b32.xlu0 %v2951, 112
    %v2953 = vpop.permute.xlu0 %2952
    %v2954 = vsel %vm272, %v2953, 0
    %2956 = vmatprep.subr.mxu0 0.0
    %2957 = vmatpush1.msra.mxu0 0.0
    %2958 = vmatprep.subr.mxu0 0.0
    %2959 = vmatpush1.msra.mxu0 0.0
    %2960 = vmatprep.subr.mxu0 0.0
    %2961 = vmatpush1.msra.mxu0 0.0
    %2962 = vmatprep.subr.mxu0 0.0
    %2963 = vmatpush1.msra.mxu0 0.0
    %2964 = vmatprep.subr.mxu0 0.0
    %2965 = vmatpush1.msra.mxu0 0.0
    %2966 = vmatprep.subr.mxu0 0.0
    %2967 = vmatpush1.msra.mxu0 0.0
    %2968 = vmatprep.subr.mxu0 0.0
    %2969 = vmatpush1.msra.mxu0 0.0
    %2970 = vmatprep.subr.mxu0 0.0
    %2971 = vmatpush1.msra.mxu0 0.0
    %2972 = vmatprep.subr.mxu0 0.0
    %2973 = vmatpush1.msra.mxu0 0.0
    %2974 = vmatprep.subr.mxu0 0.0
    %2975 = vmatpush1.msra.mxu0 0.0
    %2976 = vmatprep.subr.mxu0 0.0
    %2977 = vmatpush1.msra.mxu0 0.0
    %2978 = vmatprep.subr.mxu0 0.0
    %2979 = vmatpush1.msra.mxu0 0.0
    %2980 = vmatprep.subr.mxu0 0.0
    %2981 = vmatpush1.msra.mxu0 0.0
    %2982 = vmatprep.subr.mxu0 0.0
    %2983 = vmatpush1.msra.mxu0 0.0
    %2984 = vmatprep.subr.mxu0 0.0
    %2985 = vmatpush1.msra.mxu0 %v107
    %2986 = vmatprep.subr.mxu0 0.0
    %2987 = vmatpush1.msra.mxu0 %v106
    %2988 = vmatprep.subr.mxu0 0.0
    %2989 = vmatpush2.msra.mxu0 0.0
    %2990 = vmatprep.subr.mxu0 0.0
    %2991 = vmatpush2.msra.mxu0 0.0
    %2992 = vmatprep.subr.mxu0 0.0
    %2993 = vmatpush2.msra.mxu0 0.0
    %2994 = vmatprep.subr.mxu0 0.0
    %2995 = vmatpush2.msra.mxu0 0.0
    %2996 = vmatprep.subr.mxu0 0.0
    %2997 = vmatpush2.msra.mxu0 0.0
    %2998 = vmatprep.subr.mxu0 0.0
    %2999 = vmatpush2.msra.mxu0 0.0
    %3000 = vmatprep.subr.mxu0 0.0
    %3001 = vmatpush2.msra.mxu0 0.0
    %3002 = vmatprep.subr.mxu0 0.0
    %3003 = vmatpush2.msra.mxu0 0.0
    %3004 = vmatprep.subr.mxu0 0.0
    %3005 = vmatpush2.msra.mxu0 0.0
    %3006 = vmatprep.subr.mxu0 0.0
    %3007 = vmatpush2.msra.mxu0 0.0
    %3008 = vmatprep.subr.mxu0 0.0
    %3009 = vmatpush2.msra.mxu0 0.0
    %3010 = vmatprep.subr.mxu0 0.0
    %3011 = vmatpush2.msra.mxu0 0.0
    %3012 = vmatprep.subr.mxu0 0.0
    %3013 = vmatpush2.msra.mxu0 0.0
    %3014 = vmatprep.subr.mxu0 0.0
    %3015 = vmatpush2.msra.mxu0 0.0
    %3016 = vmatprep.subr.mxu0 0.0
    %3017 = vmatpush2.msra.mxu0 0.0
    %3018 = vmatprep.subr.mxu0 0.0
    %3019 = vmatpush2.msra.mxu0 0.0
    %3020 = vmatprep.mubr.f32.mxu0 0.0
    %3021 = vmatmul.mubr.f32.gmra.mxu0 %v2954
    %v3022 = vpop.f32.mrf.mxu0
    %v3023 = vadd.f32 %v2319, %v3022
    %v3024 = vpop.f32.mrf.mxu0
    %3025 = vdwg.mxu0
    %v3027 = vrot.slane %v2949, 2
    %3028 = vrot.lane.b32.xlu0 %v3027, 64
    %v3029 = vpop.permute.xlu0 %3028
    %v3030 = vsel %vm272, %v3029, 0
    %3032 = vmatprep.subr.mxu0 0.0
    %3033 = vmatpush1.msra.mxu0 0.0
    %3034 = vmatprep.subr.mxu0 0.0
    %3035 = vmatpush1.msra.mxu0 0.0
    %3036 = vmatprep.subr.mxu0 0.0
    %3037 = vmatpush1.msra.mxu0 0.0
    %3038 = vmatprep.subr.mxu0 0.0
    %3039 = vmatpush1.msra.mxu0 0.0
    %3040 = vmatprep.subr.mxu0 0.0
    %3041 = vmatpush1.msra.mxu0 0.0
    %3042 = vmatprep.subr.mxu0 0.0
    %3043 = vmatpush1.msra.mxu0 0.0
    %3044 = vmatprep.subr.mxu0 0.0
    %3045 = vmatpush1.msra.mxu0 0.0
    %3046 = vmatprep.subr.mxu0 0.0
    %3047 = vmatpush1.msra.mxu0 0.0
    %3048 = vmatprep.subr.mxu0 0.0
    %3049 = vmatpush1.msra.mxu0 0.0
    %3050 = vmatprep.subr.mxu0 0.0
    %3051 = vmatpush1.msra.mxu0 0.0
    %3052 = vmatprep.subr.mxu0 0.0
    %3053 = vmatpush1.msra.mxu0 0.0
    %3054 = vmatprep.subr.mxu0 0.0
    %3055 = vmatpush1.msra.mxu0 0.0
    %3056 = vmatprep.subr.mxu0 0.0
    %3057 = vmatpush1.msra.mxu0 0.0
    %3058 = vmatprep.subr.mxu0 0.0
    %3059 = vmatpush1.msra.mxu0 0.0
    %3060 = vmatprep.subr.mxu0 0.0
    %3061 = vmatpush1.msra.mxu0 %v109
    %3062 = vmatprep.subr.mxu0 0.0
    %3063 = vmatpush1.msra.mxu0 %v108
    %3064 = vmatprep.subr.mxu0 0.0
    %3065 = vmatpush2.msra.mxu0 0.0
    %3066 = vmatprep.subr.mxu0 0.0
    %3067 = vmatpush2.msra.mxu0 0.0
    %3068 = vmatprep.subr.mxu0 0.0
    %3069 = vmatpush2.msra.mxu0 0.0
    %3070 = vmatprep.subr.mxu0 0.0
    %3071 = vmatpush2.msra.mxu0 0.0
    %3072 = vmatprep.subr.mxu0 0.0
    %3073 = vmatpush2.msra.mxu0 0.0
    %3074 = vmatprep.subr.mxu0 0.0
    %3075 = vmatpush2.msra.mxu0 0.0
    %3076 = vmatprep.subr.mxu0 0.0
    %3077 = vmatpush2.msra.mxu0 0.0
    %3078 = vmatprep.subr.mxu0 0.0
    %3079 = vmatpush2.msra.mxu0 0.0
    %3080 = vmatprep.subr.mxu0 0.0
    %3081 = vmatpush2.msra.mxu0 0.0
    %3082 = vmatprep.subr.mxu0 0.0
    %3083 = vmatpush2.msra.mxu0 0.0
    %3084 = vmatprep.subr.mxu0 0.0
    %3085 = vmatpush2.msra.mxu0 0.0
    %3086 = vmatprep.subr.mxu0 0.0
    %3087 = vmatpush2.msra.mxu0 0.0
    %3088 = vmatprep.subr.mxu0 0.0
    %3089 = vmatpush2.msra.mxu0 0.0
    %3090 = vmatprep.subr.mxu0 0.0
    %3091 = vmatpush2.msra.mxu0 0.0
    %3092 = vmatprep.subr.mxu0 0.0
    %3093 = vmatpush2.msra.mxu0 0.0
    %3094 = vmatprep.subr.mxu0 0.0
    %3095 = vmatpush2.msra.mxu0 0.0
    %3096 = vmatprep.mubr.f32.mxu0 0.0
    %3097 = vmatmul.mubr.f32.gmra.mxu0 %v3030
    %v3098 = vpop.f32.mrf.mxu0
    %v3099 = vadd.f32 %v2325, %v3098
    %v3100 = vpop.f32.mrf.mxu0
    %3101 = vdwg.mxu0
    %v3103 = vrot.slane %v3023, 2
    %v3105 = vadd.f32 %v2312, %v3103
    %v3106 = vxor.u32 %v3105, 2147483648
    %v3107 = vmul.f32 %v3106, 1.442695
    %v3108 = vpow.pop %v3107
    %v3109 = vadd.f32 %v3108, 1.0
    %v3110 = vrcp.pop %v3109
    %v3111 = vmul.f32 1.0, %v3110
    %3112 = vrot.lane.b32.xlu0 %v3103, 96
    %v3113 = vpop.permute.xlu0 %3112
    %v3115 = vmul.f32 %v3111, %v3113
    %3117 = vrot.lane.b32.xlu0 %v3115, 32
    %v3118 = vpop.permute.xlu0 %3117
    %v3120 = vadd.f32 %v2312, %v3118
    %v3121 = vtanh.pop %v3120
    %v3122 = vsub.f32 1.0, %v3111
    %3124 = vrot.lane.b32.xlu0 %v3121, 112
    %v3125 = vpop.permute.xlu0 %3124
    %v3127 = vmul.f32 %v3122, %v3125
    %v3128 = vrot.slane %v2917, 6
    %v3130 = vmul.f32 %v3111, %v3128
    %v3131 = vadd.f32 %v3127, %v3130
    %3133 = vrot.lane.b32.xlu0 %v3099, 48
    %v3134 = vpop.permute.xlu0 %3133
    %v3136 = vadd.f32 %v2312, %v3134
    %v3137 = vxor.u32 %v3136, 2147483648
    %v3138 = vmul.f32 %v3137, 1.442695
    %v3139 = vpow.pop %v3138
    %v3140 = vadd.f32 %v3139, 1.0
    %v3141 = vrcp.pop %v3140
    %v3142 = vmul.f32 1.0, %v3141
    %3143 = vrot.lane.b32.xlu0 %v3099, 16
    %v3144 = vpop.permute.xlu0 %3143
    %v3146 = vmul.f32 %v3142, %v3144
    %3148 = vrot.lane.b32.xlu0 %v3146, 32
    %v3149 = vpop.permute.xlu0 %3148
    %v3151 = vadd.f32 %v2312, %v3149
    %v3152 = vtanh.pop %v3151
    %v3153 = vsub.f32 1.0, %v3142
    %3155 = vrot.lane.b32.xlu0 %v3152, 112
    %v3156 = vpop.permute.xlu0 %3155
    %v3158 = vmul.f32 %v3153, %v3156
    %v3160 = vmul.f32 %v3142, %v3027
    %v3161 = vadd.f32 %v3158, %v3160
    %3164 = vrot.lane.b32.xlu0 %v3161, 80
    %v3165 = vpop.permute.xlu0 %3164
    %v3167 = vsel %vm272, %v2525, %v3165
    %3168 = vrot.lane.b32.xlu0 %v2703, 112
    %v3169 = vpop.permute.xlu0 %3168
    %3171 = vrot.lane.b32.xlu0 %v2949, 80
    %v3172 = vpop.permute.xlu0 %3171
    %v3174 = vsel %vm272, %v3169, %v3172
    %3175 = vrot.lane.b32.xlu0 %v2917, 112
    %v3176 = vpop.permute.xlu0 %3175
    %3178 = vrot.lane.b32.xlu0 %v2735, 80
    %v3179 = vpop.permute.xlu0 %3178
    %v3181 = vsel %vm272, %v3176, %v3179
    %3183 = vrot.lane.b32.xlu0 %v3131, 112
    %v3184 = vpop.permute.xlu0 %3183
    %3186 = vrot.lane.b32.xlu0 %v2522, 80
    %v3187 = vpop.permute.xlu0 %3186
    %v3189 = vsel %vm272, %v3184, %v3187
    %vm3190 = vcmask 1041408
    %v3191 = vsel %vm3190, %v3167, %v3174
    %vm3192 = vcmask 1043456
    %v3193 = vsel %vm3192, %v3191, %v3181
    %vm3194 = vcmask 1045504
    %v3195 = vsel %vm3194, %v3193, %v3189
    %v3197 = vlaneseq
    %v3198 = vshrl.u32 %v3197, 7
    %v3199 = vsub.s32 0, %v3198
    %v3200 = vrot.slane %v117, %v3199
    %v3203 = vsel %vm130, %v3195, 0
    %3205 = vmatprep.subr.mxu0 0.0
    %3206 = vmatpush1.msra.mxu0 0.0
    %3207 = vmatprep.subr.mxu0 0.0
    %3208 = vmatpush1.msra.mxu0 0.0
    %3209 = vmatprep.subr.mxu0 0.0
    %3210 = vmatpush1.msra.mxu0 0.0
    %3211 = vmatprep.subr.mxu0 0.0
    %3212 = vmatpush1.msra.mxu0 0.0
    %3213 = vmatprep.subr.mxu0 0.0
    %3214 = vmatpush1.msra.mxu0 0.0
    %3215 = vmatprep.subr.mxu0 0.0
    %3216 = vmatpush1.msra.mxu0 0.0
    %3217 = vmatprep.subr.mxu0 0.0
    %3218 = vmatpush1.msra.mxu0 0.0
    %3219 = vmatprep.subr.mxu0 0.0
    %3220 = vmatpush1.msra.mxu0 0.0
    %3221 = vmatprep.subr.mxu0 0.0
    %3222 = vmatpush1.msra.mxu0 0.0
    %3223 = vmatprep.subr.mxu0 0.0
    %3224 = vmatpush1.msra.mxu0 0.0
    %3225 = vmatprep.subr.mxu0 0.0
    %3226 = vmatpush1.msra.mxu0 0.0
    %3227 = vmatprep.subr.mxu0 0.0
    %3228 = vmatpush1.msra.mxu0 0.0
    %3229 = vmatprep.subr.mxu0 0.0
    %3230 = vmatpush1.msra.mxu0 %v116
    %3231 = vmatprep.subr.mxu0 0.0
    %3232 = vmatpush1.msra.mxu0 %v115
    %3233 = vmatprep.subr.mxu0 0.0
    %3234 = vmatpush1.msra.mxu0 %v114
    %3235 = vmatprep.subr.mxu0 0.0
    %3236 = vmatpush1.msra.mxu0 %v113
    %3237 = vmatprep.subr.mxu0 0.0
    %3238 = vmatpush2.msra.mxu0 0.0
    %3239 = vmatprep.subr.mxu0 0.0
    %3240 = vmatpush2.msra.mxu0 0.0
    %3241 = vmatprep.subr.mxu0 0.0
    %3242 = vmatpush2.msra.mxu0 0.0
    %3243 = vmatprep.subr.mxu0 0.0
    %3244 = vmatpush2.msra.mxu0 0.0
    %3245 = vmatprep.subr.mxu0 0.0
    %3246 = vmatpush2.msra.mxu0 0.0
    %3247 = vmatprep.subr.mxu0 0.0
    %3248 = vmatpush2.msra.mxu0 0.0
    %3249 = vmatprep.subr.mxu0 0.0
    %3250 = vmatpush2.msra.mxu0 0.0
    %3251 = vmatprep.subr.mxu0 0.0
    %3252 = vmatpush2.msra.mxu0 0.0
    %3253 = vmatprep.subr.mxu0 0.0
    %3254 = vmatpush2.msra.mxu0 0.0
    %3255 = vmatprep.subr.mxu0 0.0
    %3256 = vmatpush2.msra.mxu0 0.0
    %3257 = vmatprep.subr.mxu0 0.0
    %3258 = vmatpush2.msra.mxu0 0.0
    %3259 = vmatprep.subr.mxu0 0.0
    %3260 = vmatpush2.msra.mxu0 0.0
    %3261 = vmatprep.subr.mxu0 0.0
    %3262 = vmatpush2.msra.mxu0 0.0
    %3263 = vmatprep.subr.mxu0 0.0
    %3264 = vmatpush2.msra.mxu0 0.0
    %3265 = vmatprep.subr.mxu0 0.0
    %3266 = vmatpush2.msra.mxu0 0.0
    %3267 = vmatprep.subr.mxu0 0.0
    %3268 = vmatpush2.msra.mxu0 0.0
    %3269 = vmatprep.mubr.f32.mxu0 0.0
    %3270 = vmatmul.mubr.f32.gmra.mxu0 %v3203
    %v3271 = vpop.f32.mrf.mxu0
    %v3272 = vadd.f32 %v3200, %v3271
    %v3273 = vpop.f32.mrf.mxu0
    %3274 = vdwg.mxu0
    %v3275 = vtanh.pop %v3272
    %v3277 = vlaneseq
    %v3278 = vshrl.u32 %v3277, 7
    %v3279 = vsub.s32 0, %v3278
    %v3280 = vrot.slane %v118, %v3279
    %v3282 = vmul.f32 %v3275, %v3280
    %vm3283 = vcmask 254976
    %v3284 = vsel %vm3283, %v3282, 0.0
    %3285 = vadd.xlane.f32.xlu0 %v3284
    %v3286 = vpop.xlane.xlu0 %3285
    %vm3287 = vcmask 257026
    %v3288 = vsel %vm3287, %v3282, 0.0
    %3289 = vadd.xlane.f32.xlu0 %v3288
    %v3290 = vpop.xlane.xlu0 %3289
    %vm3291 = vcmask 259076
    %v3292 = vsel %vm3291, %v3282, 0.0
    %3293 = vadd.xlane.f32.xlu0 %v3292
    %v3294 = vpop.xlane.xlu0 %3293
    %vm3295 = vcmask 261126
    %v3296 = vsel %vm3295, %v3282, 0.0
    %3297 = vadd.xlane.f32.xlu0 %v3296
    %v3298 = vpop.xlane.xlu0 %3297
    %v3300 = vrot.slane %v3290, 2
    %v3303 = vrot.slane %v3294, 4
    %v3306 = vrot.slane %v3298, 6
    %v3308 = vsel %vm2131, %v3286, %v3300
    %v3309 = vsel %vm2133, %v3308, %v3303
    %v3310 = vsel %vm2135, %v3309, %v3306
    %vm3311 = vcmask 25600
    %v3312 = vsel %vm3311, %v3310, -inf
    %3313 = vmax.xlane.f32.xlu0 %v3312
    %v3314 = vpop.xlane.xlu0 %3313
    %v3315 = vsub.f32 %v3310, %v3314
    %v3316 = vmul.f32 %v3315, 1.442695
    %v3317 = vpow.pop %v3316
    %v3318 = vsel %vm3311, %v3317, 0.0
    %3319 = vadd.xlane.f32.xlu0 %v3318
    %v3320 = vpop.xlane.xlu0 %3319
    %v3321 = vrcp.pop %v3320
    %v3322 = vmul.f32 %v3317, %v3321
    %v3323 = vmul.f32 %v3322, %v84
    %v3324 = vsel %vm3311, %v3323, 0.0
    %3325 = vadd.xlane.f32.xlu0 %v3324
    %v3326 = vpop.xlane.xlu0 %3325
    %v3327 = vadd.f32 %v3326, 0.0001
    %v3328 = vrcp.pop %v3327
    %v3329 = vmul.f32 %v3323, %v3328
    %3331 = vset.pattern.permute.xlu0 0
    %3332 = vperm.xlu0 %3331, %v3329
    %v3333 = vpop.permute.xlu0 %3332
    %v3335 = vmul.f32 %v3333, %v2492
    %v3336 = vmul.f32 %v3333, %v3161
    %3337 = vset.pattern.permute.xlu0 1
    %3338 = vperm.xlu0 %3337, %v3329
    %v3339 = vpop.permute.xlu0 %3338
    %v3342 = vmul.f32 %v3339, %v2739
    %3344 = vrot.lane.b32.xlu0 %v3342, 16
    %v3345 = vpop.permute.xlu0 %3344
    %v3347 = vadd.f32 %v3335, %v3345
    %v3349 = vmul.f32 %v3339, %v3029
    %3351 = vrot.lane.b32.xlu0 %v3349, 64
    %v3352 = vpop.permute.xlu0 %3351
    %v3354 = vadd.f32 %v3336, %v3352
    %3355 = vset.pattern.permute.xlu0 2
    %3356 = vperm.xlu0 %3355, %v3329
    %v3357 = vpop.permute.xlu0 %3356
    %v3360 = vmul.f32 %v3357, %v2953
    %3362 = vrot.lane.b32.xlu0 %v3360, 16
    %v3363 = vpop.permute.xlu0 %3362
    %v3365 = vadd.f32 %v3347, %v3363
    %v3367 = vmul.f32 %v3357, %v2815
    %3369 = vrot.lane.b32.xlu0 %v3367, 64
    %v3370 = vpop.permute.xlu0 %3369
    %v3372 = vadd.f32 %v3354, %v3370
    %3373 = vset.pattern.permute.xlu0 3
    %3374 = vperm.xlu0 %3373, %v3329
    %v3375 = vpop.permute.xlu0 %3374
    %v3377 = vrot.slane %v3131, 6
    %3378 = vrot.lane.b32.xlu0 %v3377, 112
    %v3379 = vpop.permute.xlu0 %3378
    %v3381 = vmul.f32 %v3375, %v3379
    %3383 = vrot.lane.b32.xlu0 %v3381, 16
    %v3384 = vpop.permute.xlu0 %3383
    %v3386 = vadd.f32 %v3365, %v3384
    %v3388 = vmul.f32 %v3375, %v2601
    %3390 = vrot.lane.b32.xlu0 %v3388, 64
    %v3391 = vpop.permute.xlu0 %3390
    %v3393 = vadd.f32 %v3372, %v3391
    %3395 = vrot.lane.b32.xlu0 %v3386, 112
    %v3396 = vpop.permute.xlu0 %3395
    %3399 = vrot.lane.b32.xlu0 %v3393, 80
    %v3400 = vpop.permute.xlu0 %3399
    %v3402 = vsel %vm272, %v3396, %v3400
    %v3404 = vlaneseq
    %v3405 = vshrl.u32 %v3404, 7
    %v3406 = vsub.s32 0, %v3405
    %v3407 = vrot.slane %v123, %v3406
    %v3410 = vsel %vm130, %v3402, 0
    %3412 = vmatprep.subr.mxu0 0.0
    %3413 = vmatpush1.msra.mxu0 0.0
    %3414 = vmatprep.subr.mxu0 0.0
    %3415 = vmatpush1.msra.mxu0 0.0
    %3416 = vmatprep.subr.mxu0 0.0
    %3417 = vmatpush1.msra.mxu0 0.0
    %3418 = vmatprep.subr.mxu0 0.0
    %3419 = vmatpush1.msra.mxu0 0.0
    %3420 = vmatprep.subr.mxu0 0.0
    %3421 = vmatpush1.msra.mxu0 0.0
    %3422 = vmatprep.subr.mxu0 0.0
    %3423 = vmatpush1.msra.mxu0 0.0
    %3424 = vmatprep.subr.mxu0 0.0
    %3425 = vmatpush1.msra.mxu0 0.0
    %3426 = vmatprep.subr.mxu0 0.0
    %3427 = vmatpush1.msra.mxu0 0.0
    %3428 = vmatprep.subr.mxu0 0.0
    %3429 = vmatpush1.msra.mxu0 0.0
    %3430 = vmatprep.subr.mxu0 0.0
    %3431 = vmatpush1.msra.mxu0 0.0
    %3432 = vmatprep.subr.mxu0 0.0
    %3433 = vmatpush1.msra.mxu0 0.0
    %3434 = vmatprep.subr.mxu0 0.0
    %3435 = vmatpush1.msra.mxu0 0.0
    %3436 = vmatprep.subr.mxu0 0.0
    %3437 = vmatpush1.msra.mxu0 %v122
    %3438 = vmatprep.subr.mxu0 0.0
    %3439 = vmatpush1.msra.mxu0 %v121
    %3440 = vmatprep.subr.mxu0 0.0
    %3441 = vmatpush1.msra.mxu0 %v120
    %3442 = vmatprep.subr.mxu0 0.0
    %3443 = vmatpush1.msra.mxu0 %v119
    %3444 = vmatprep.subr.mxu0 0.0
    %3445 = vmatpush2.msra.mxu0 0.0
    %3446 = vmatprep.subr.mxu0 0.0
    %3447 = vmatpush2.msra.mxu0 0.0
    %3448 = vmatprep.subr.mxu0 0.0
    %3449 = vmatpush2.msra.mxu0 0.0
    %3450 = vmatprep.subr.mxu0 0.0
    %3451 = vmatpush2.msra.mxu0 0.0
    %3452 = vmatprep.subr.mxu0 0.0
    %3453 = vmatpush2.msra.mxu0 0.0
    %3454 = vmatprep.subr.mxu0 0.0
    %3455 = vmatpush2.msra.mxu0 0.0
    %3456 = vmatprep.subr.mxu0 0.0
    %3457 = vmatpush2.msra.mxu0 0.0
    %3458 = vmatprep.subr.mxu0 0.0
    %3459 = vmatpush2.msra.mxu0 0.0
    %3460 = vmatprep.subr.mxu0 0.0
    %3461 = vmatpush2.msra.mxu0 0.0
    %3462 = vmatprep.subr.mxu0 0.0
    %3463 = vmatpush2.msra.mxu0 0.0
    %3464 = vmatprep.subr.mxu0 0.0
    %3465 = vmatpush2.msra.mxu0 0.0
    %3466 = vmatprep.subr.mxu0 0.0
    %3467 = vmatpush2.msra.mxu0 0.0
    %3468 = vmatprep.subr.mxu0 0.0
    %3469 = vmatpush2.msra.mxu0 0.0
    %3470 = vmatprep.subr.mxu0 0.0
    %3471 = vmatpush2.msra.mxu0 0.0
    %3472 = vmatprep.subr.mxu0 0.0
    %3473 = vmatpush2.msra.mxu0 0.0
    %3474 = vmatprep.subr.mxu0 0.0
    %3475 = vmatpush2.msra.mxu0 0.0
    %3476 = vmatprep.mubr.f32.mxu0 0.0
    %3477 = vmatmul.mubr.f32.gmra.mxu0 %v3410
    %v3478 = vpop.f32.mrf.mxu0
    %v3479 = vadd.f32 %v3407, %v3478
    %v3480 = vpop.f32.mrf.mxu0
    %3481 = vdwg.mxu0
    %3482 = vst [vmem:[#allocation2] sm:$0x3] %v3479
    // Predicated region
    $region94: #{han_forward.1} parent=1 // pred_check
      _
    $region95: #{han_forward.1} parent=1 // pred_check_branch
      %3484 = sbr.rel (0) target = $region97
    $region96: #{han_forward.1} parent=1 // pred_region
      %s3486 = ssub.s32 32, 32
      %3487 = vsyncadd [#allocation3], %s3486
      %s3489 = sshll.u32 [#allocation2], 4
      %s3490 = int_to_ptr.vmem [resolvable:$true] %s3489
      %3492 = dma.vmem_to_hbm [thread:$0]  %s3490, 32, %s23, [#allocation3]
    $region97: #{han_forward.1} parent=1 // pred_fallthru
      _
    // Predicated region
    $region98: #{han_forward.1} parent=1 // pred_check
      _
    $region99: #{han_forward.1} parent=1 // pred_check_branch
      %3494 = sbr.rel (0) target = $region101
    $region100: #{han_forward.1} parent=1 // pred_region
      %3495 = dma.done [#allocation3], 32
    $region101: #{han_forward.1} parent=1 // pred_fallthru
      _
    %3496 = vsyncpa [#allocation3], 1

</llo_original>
